<compile_context>
chip_gen: v7x
topology: tpu7x:2x2x1
jax: 0.10.0
libtpu: 0.0.40
codegen_flags: <defaults>
</compile_context>

<pallas_src>
import functools

import jax
import jax.numpy as jnp
from jax import lax
from jax.experimental import pallas as pl
from jax.experimental.pallas import tpu as pltpu

LOG_STD_MAX = 2.0
LOG_STD_MIN = -5.0
H = 256  # hidden size fixed by the module definition


# ---------------------------------------------------------------------------
# Fused kernel: fc1+relu+W_ih prologue -> serial LSTM recurrence -> fc2+heads
# epilogue, per chunk of TC timesteps.  Grid iterates over time chunks
# ("arbitrary"); h/c carried in VMEM scratch across the grid.
# ---------------------------------------------------------------------------
def _fused_kernel(x_ref, seq_ref, w1_ref, b1_ref, wih_ref, blstm_ref, whh_ref,
                  w2_ref, b2_ref, wh_ref, bh_ref,
                  heads_ref, h_out_ref, c_out_ref,
                  h_scr, c_scr, out_scr, *, tc, batch, act_dim):
    ci = pl.program_id(0)

    @pl.when(ci == 0)
    def _():
        # in_hidden=None -> zero initial hidden/cell state
        h_scr[...] = jnp.zeros_like(h_scr)
        c_scr[...] = jnp.zeros_like(c_scr)

    # -------- phase-1 prologue: batched over the whole (tc*batch) chunk -----
    x = x_ref[...]                                            # (tc*B, obs)
    a1 = jnp.maximum(
        jnp.dot(x, w1_ref[...], preferred_element_type=jnp.float32)
        + b1_ref[...], 0.0)
    pre_gates = (jnp.dot(a1, wih_ref[...], preferred_element_type=jnp.float32)
                 + blstm_ref[...])                            # (tc*B, 4H)

    whh = whh_ref[...]          # hoist constant weight load out of the loop
    seq = seq_ref[...]          # (B, 1) int32

    # -------- serial LSTM recurrence (the only truly recurrent matmul) ------
    for i in range(tc):         # static unroll; TC kept small/VMEM-aware
        h = h_scr[...]
        c = c_scr[...]
        gates = (pre_gates[i * batch:(i + 1) * batch, :]
                 + jnp.dot(h, whh, preferred_element_type=jnp.float32))
        i_g = jax.nn.sigmoid(gates[:, 0 * H:1 * H])
        f_g = jax.nn.sigmoid(gates[:, 1 * H:2 * H])
        g_g = jnp.tanh(gates[:, 2 * H:3 * H])
        o_g = jax.nn.sigmoid(gates[:, 3 * H:4 * H])
        c_new = f_g * c + i_g * g_g
        h_new = o_g * jnp.tanh(c_new)

        # packed-sequence semantics: freeze state past seq_len, zero-pad out
        t_abs = ci * tc + i
        mask = seq > t_abs                                    # (B, 1) bool
        h_scr[...] = jnp.where(mask, h_new, h)
        c_scr[...] = jnp.where(mask, c_new, c)
        out_scr[i * batch:(i + 1) * batch, :] = jnp.where(mask, h_new, 0.0)

    # final-state writeback every chunk (cheap VMEM store, no pl.when gate)
    h_out_ref[...] = h_scr[...]
    c_out_ref[...] = c_scr[...]

    # -------- phase-3 epilogue: fc2 + packed lane-dense heads ---------------
    o = out_scr[...]                                          # (tc*B, H)
    y = jnp.maximum(
        jnp.dot(o, w2_ref[...], preferred_element_type=jnp.float32)
        + b2_ref[...], 0.0)
    z = (jnp.dot(y, wh_ref[...], preferred_element_type=jnp.float32)
         + bh_ref[...])                                       # (tc*B, HP)
    col = lax.broadcasted_iota(jnp.int32, z.shape, 1)
    is_logstd = (col >= act_dim) & (col < 2 * act_dim)
    ls = LOG_STD_MIN + 0.5 * (LOG_STD_MAX - LOG_STD_MIN) * (jnp.tanh(z) + 1.0)
    heads_ref[...] = jnp.where(is_logstd, ls, z)


# ---------------------------------------------------------------------------
# VMEM-aware time-chunk choice: per-chunk buffers ~ 2*rows*(obs+HP)*4 (x and
# heads chunks, double-buffered) + rows*5H*4 (out scratch + live pre_gates).
# ---------------------------------------------------------------------------
def _pick_time_chunk(t, b, obs, hp, budget_bytes=12 * 1024 * 1024):
    legal = [c for c in range(1, t + 1)
             if t % c == 0 and ((c * b) % 8 == 0 or c == t)]
    fitting = [c for c in legal
               if (2 * c * b * (obs + hp) + c * b * 5 * H) * 4 <= budget_bytes]
    return max(fitting) if fitting else min(legal)


# ---------------------------------------------------------------------------
# Wrapper.
# ---------------------------------------------------------------------------
def recurrent_actor_forward(states, seq_lengths, params):
    """states: (T, B, obs_dim) f32, seq_lengths: (B,) int."""
    T, B, obs_dim = states.shape
    A = params["wm"].shape[1]
    N = T * B
    HP = max(128, ((2 * A + 127) // 128) * 128)   # lane-dense packed head width

    # pack [means | log_std preact | zero pad] into one lane-dense head matmul
    w_head = jnp.zeros((H, HP), jnp.float32)
    w_head = w_head.at[:, :A].set(params["wm"]).at[:, A:2 * A].set(params["wl"])
    b_head = jnp.zeros((1, HP), jnp.float32)
    b_head = b_head.at[:, :A].set(params["bm"]).at[:, A:2 * A].set(params["bl"])

    TC = _pick_time_chunk(T, B, obs_dim, HP)
    n_tc = T // TC

    x2 = states.reshape(N, obs_dim)
    seq2 = seq_lengths.astype(jnp.int32).reshape(B, 1)

    const2 = lambda t: (0, 0)
    # constant-index weights: single-buffer (no point double-buffering them)
    wspec = lambda arr: pl.BlockSpec(arr.shape, const2,
                                     pipeline_mode=pl.Buffered(1))

    heads, h_n, c_n = pl.pallas_call(
        functools.partial(_fused_kernel, tc=TC, batch=B, act_dim=A),
        out_shape=(
            jax.ShapeDtypeStruct((N, HP), jnp.float32),   # packed heads
            jax.ShapeDtypeStruct((B, H), jnp.float32),    # h_n
            jax.ShapeDtypeStruct((B, H), jnp.float32),    # c_n
        ),
        grid_spec=pltpu.PrefetchScalarGridSpec(
            num_scalar_prefetch=0,
            grid=(n_tc,),
            in_specs=[
                pl.BlockSpec((TC * B, obs_dim), lambda t: (t, 0)),  # states chunk
                wspec(seq2),
                wspec(params["w1"]), wspec(params["b1"]),
                wspec(params["wih"]), wspec(params["blstm"]),
                wspec(params["whh"]),
                wspec(params["w2"]), wspec(params["b2"]),
                wspec(w_head), wspec(b_head),
            ],
            out_specs=[
                pl.BlockSpec((TC * B, HP), lambda t: (t, 0)),
                pl.BlockSpec((B, H), const2),
                pl.BlockSpec((B, H), const2),
            ],
            scratch_shapes=[
                pltpu.VMEM((B, H), jnp.float32),          # h carry
                pltpu.VMEM((B, H), jnp.float32),          # c carry
                pltpu.VMEM((TC * B, H), jnp.float32),     # chunk LSTM outputs
            ],
        ),
        compiler_params=pltpu.CompilerParams(
            dimension_semantics=("arbitrary",)),   # recurrence over time
    )(x2, seq2, params["w1"], params["b1"], params["wih"], params["blstm"],
      params["whh"], params["w2"], params["b2"], w_head, b_head)

    means = heads[:, :A].reshape(T, B, A)
    log_stds = heads[:, A:2 * A].reshape(T, B, A)
    return means, log_stds, h_n, c_n


# ---------------------------------------------------------------------------
# Pure-JAX reference matching the PyTorch module semantics.
# ---------------------------------------------------------------------------
def _reference_forward(states, seq_lengths, p):
    T, B, _ = states.shape
    x = jax.nn.relu(states @ p["w1"] + p["b1"])

    def step(carry, inp):
        h, c = carry
        xt, t = inp
        gates = xt @ p["wih"] + h @ p["whh"] + p["blstm"]
        i_g = jax.nn.sigmoid(gates[:, 0 * H:1 * H])
        f_g = jax.nn.sigmoid(gates[:, 1 * H:2 * H])
        g_g = jnp.tanh(gates[:, 2 * H:3 * H])
        o_g = jax.nn.sigmoid(gates[:, 3 * H:4 * H])
        c_new = f_g * c + i_g * g_g
        h_new = o_g * jnp.tanh(c_new)
        mask = (t < seq_lengths)[:, None]
        h2 = jnp.where(mask, h_new, h)
        c2 = jnp.where(mask, c_new, c)
        out = jnp.where(mask, h_new, 0.0)
        return (h2, c2), out

    init = (jnp.zeros((B, H), jnp.float32), jnp.zeros((B, H), jnp.float32))
    (hf, cf), outs = lax.scan(step, init, (x, jnp.arange(T)))
    y = jax.nn.relu(outs @ p["w2"] + p["b2"])
    means = y @ p["wm"] + p["bm"]
    ls = jnp.tanh(y @ p["wl"] + p["bl"])
    ls = LOG_STD_MIN + 0.5 * (LOG_STD_MAX - LOG_STD_MIN) * (ls + 1.0)
    return means, ls, hf, cf


def make_params(key, obs_dim, act_dim):
    ks = jax.random.split(key, 12)
    s = 0.1
    return {
        # fc1: obs_dim -> 256
        "w1": s * jax.random.normal(ks[0], (obs_dim, H), jnp.float32),
        "b1": s * jax.random.normal(ks[1], (1, H), jnp.float32),
        # lstm1: weight_ih / weight_hh stored transposed (in, 4H),
        # gate column order [i, f, g, o]; biases b_ih + b_hh folded together
        "wih": s * jax.random.normal(ks[2], (H, 4 * H), jnp.float32),
        "whh": s * jax.random.normal(ks[3], (H, 4 * H), jnp.float32),
        "blstm": s * jax.random.normal(ks[4], (1, 4 * H), jnp.float32),
        # fc2: 256 -> 256
        "w2": s * jax.random.normal(ks[5], (H, H), jnp.float32),
        "b2": s * jax.random.normal(ks[6], (1, H), jnp.float32),
        # heads: 256 -> act_dim
        "wm": s * jax.random.normal(ks[7], (H, act_dim), jnp.float32),
        "bm": s * jax.random.normal(ks[8], (1, act_dim), jnp.float32),
        "wl": s * jax.random.normal(ks[9], (H, act_dim), jnp.float32),
        "bl": s * jax.random.normal(ks[10], (1, act_dim), jnp.float32),
    }


if __name__ == "__main__":
    T, B, OBS, ACT = 8, 2, 16, 4
    key = jax.random.PRNGKey(0)
    k_states, k_params = jax.random.split(key)

    states = jax.random.normal(k_states, (T, B, OBS), jnp.float32)
    # max(seq_lengths) == T so the padded output length matches PyTorch's
    # pad_packed_sequence result exactly.
    seq_lengths = jnp.array([8, 5], dtype=jnp.int32)
    params = make_params(k_params, OBS, ACT)

    means, log_stds, h_n, c_n = jax.block_until_ready(
        recurrent_actor_forward(states, seq_lengths, params))

    r_means, r_ls, r_h, r_c = _reference_forward(states, seq_lengths, params)
    assert jnp.allclose(means, r_means, atol=1e-4, rtol=1e-4)
    assert jnp.allclose(log_stds, r_ls, atol=1e-4, rtol=1e-4)
    assert jnp.allclose(h_n, r_h, atol=1e-4, rtol=1e-4)
    assert jnp.allclose(c_n, r_c, atol=1e-4, rtol=1e-4)

    print("KERNEL_OK")
</pallas_src>

<mosaic_0001>
module attributes {stable_mosaic.version = 11 : i64} {
  func.func @_fused_kernel(%arg0: i32, %arg1: memref<16x16xf32, #tpu.memory_space<vmem>>, %arg2: memref<2x1xi32, #tpu.memory_space<vmem>>, %arg3: memref<16x256xf32, #tpu.memory_space<vmem>>, %arg4: memref<1x256xf32, #tpu.memory_space<vmem>>, %arg5: memref<256x1024xf32, #tpu.memory_space<vmem>>, %arg6: memref<1x1024xf32, #tpu.memory_space<vmem>>, %arg7: memref<256x1024xf32, #tpu.memory_space<vmem>>, %arg8: memref<256x256xf32, #tpu.memory_space<vmem>>, %arg9: memref<1x256xf32, #tpu.memory_space<vmem>>, %arg10: memref<256x128xf32, #tpu.memory_space<vmem>>, %arg11: memref<1x128xf32, #tpu.memory_space<vmem>>, %arg12: memref<16x128xf32, #tpu.memory_space<vmem>>, %arg13: memref<2x256xf32, #tpu.memory_space<vmem>>, %arg14: memref<2x256xf32, #tpu.memory_space<vmem>>, %arg15: memref<2x256xf32, #tpu.memory_space<vmem>>, %arg16: memref<2x256xf32, #tpu.memory_space<vmem>>, %arg17: memref<16x256xf32, #tpu.memory_space<vmem>>) attributes {dimension_semantics = [#tpu.dimension_semantics<arbitrary>], iteration_bounds = array<i64: 1>, scalar_prefetch = 0 : i64, scratch_operands = 3 : i64, tpu.core_type = #tpu.core_type<tc>, window_params = [{transform_indices = @transform_0, window_bounds = array<i64: 16, 16>}, {pipeline_mode = #tpu.pipeline_mode<synchronous>, transform_indices = @transform_1, window_bounds = array<i64: 2, 1>}, {pipeline_mode = #tpu.pipeline_mode<synchronous>, transform_indices = @transform_2, window_bounds = array<i64: 16, 256>}, {pipeline_mode = #tpu.pipeline_mode<synchronous>, transform_indices = @transform_3, window_bounds = array<i64: 1, 256>}, {pipeline_mode = #tpu.pipeline_mode<synchronous>, transform_indices = @transform_4, window_bounds = array<i64: 256, 1024>}, {pipeline_mode = #tpu.pipeline_mode<synchronous>, transform_indices = @transform_5, window_bounds = array<i64: 1, 1024>}, {pipeline_mode = #tpu.pipeline_mode<synchronous>, transform_indices = @transform_6, window_bounds = array<i64: 256, 1024>}, {pipeline_mode = #tpu.pipeline_mode<synchronous>, transform_indices = @transform_7, window_bounds = array<i64: 256, 256>}, {pipeline_mode = #tpu.pipeline_mode<synchronous>, transform_indices = @transform_8, window_bounds = array<i64: 1, 256>}, {pipeline_mode = #tpu.pipeline_mode<synchronous>, transform_indices = @transform_9, window_bounds = array<i64: 256, 128>}, {pipeline_mode = #tpu.pipeline_mode<synchronous>, transform_indices = @transform_10, window_bounds = array<i64: 1, 128>}, {transform_indices = @transform_11, window_bounds = array<i64: 16, 128>}, {pipeline_mode = #tpu.pipeline_mode<synchronous>, transform_indices = @transform_12, window_bounds = array<i64: 2, 256>}, {pipeline_mode = #tpu.pipeline_mode<synchronous>, transform_indices = @transform_13, window_bounds = array<i64: 2, 256>}]} {
    %c0_i32 = arith.constant 0 : i32
    %0 = arith.cmpi eq, %arg0, %c0_i32 : i32
    %1 = arith.extui %0 : i1 to i32
    %c0_i32_0 = arith.constant 0 : i32
    %2 = arith.cmpi ne, %1, %c0_i32_0 : i32
    scf.if %2 {
      %cst_165 = arith.constant 0.000000e+00 : f32
      %426 = vector.broadcast %cst_165 : f32 to vector<2x256xf32>
      %c0_166 = arith.constant 0 : index
      %c0_167 = arith.constant 0 : index
      %427 = vector.load %arg15[%c0_166, %c0_167] : memref<2x256xf32, #tpu.memory_space<vmem>>, vector<2x256xf32>
      tpu.vector_store %arg15[%c0_166, %c0_167], %426 {strides = array<i32>} : memref<2x256xf32, #tpu.memory_space<vmem>>, vector<2x256xf32>,
      %cst_168 = arith.constant 0.000000e+00 : f32
      %428 = vector.broadcast %cst_168 : f32 to vector<2x256xf32>
      %c0_169 = arith.constant 0 : index
      %c0_170 = arith.constant 0 : index
      %429 = vector.load %arg16[%c0_169, %c0_170] : memref<2x256xf32, #tpu.memory_space<vmem>>, vector<2x256xf32>
      tpu.vector_store %arg16[%c0_169, %c0_170], %428 {strides = array<i32>} : memref<2x256xf32, #tpu.memory_space<vmem>>, vector<2x256xf32>,
    } else {
    }
    %c0 = arith.constant 0 : index
    %c0_1 = arith.constant 0 : index
    %3 = vector.load %arg1[%c0, %c0_1] : memref<16x16xf32, #tpu.memory_space<vmem>>, vector<16x16xf32>
    %c0_2 = arith.constant 0 : index
    %c0_3 = arith.constant 0 : index
    %4 = vector.load %arg3[%c0_2, %c0_3] : memref<16x256xf32, #tpu.memory_space<vmem>>, vector<16x256xf32>
    %cst = arith.constant dense<0.000000e+00> : vector<16x256xf32>
    %5 = tpu.matmul %3, %4, %cst {dimension_numbers = #tpu.dot_dimension_numbers<[1], [0], [0], [1], [0, 0, 1, 1], [], []>} : vector<16x16xf32>, vector<16x256xf32>, vector<16x256xf32> -> vector<16x256xf32>
    %c0_4 = arith.constant 0 : index
    %c0_5 = arith.constant 0 : index
    %6 = vector.load %arg4[%c0_4, %c0_5] : memref<1x256xf32, #tpu.memory_space<vmem>>, vector<1x256xf32>
    %7 = vector.broadcast %6 : vector<1x256xf32> to vector<16x256xf32>
    %8 = arith.addf %5, %7 : vector<16x256xf32>
    %cst_6 = arith.constant 0.000000e+00 : f32
    %9 = vector.broadcast %cst_6 : f32 to vector<16x256xf32>
    %10 = arith.maximumf %8, %9 : vector<16x256xf32>
    %c0_7 = arith.constant 0 : index
    %c0_8 = arith.constant 0 : index
    %11 = vector.load %arg5[%c0_7, %c0_8] : memref<256x1024xf32, #tpu.memory_space<vmem>>, vector<256x1024xf32>
    %cst_9 = arith.constant dense<0.000000e+00> : vector<16x1024xf32>
    %12 = tpu.matmul %10, %11, %cst_9 {dimension_numbers = #tpu.dot_dimension_numbers<[1], [0], [0], [1], [0, 0, 1, 1], [], []>} : vector<16x256xf32>, vector<256x1024xf32>, vector<16x1024xf32> -> vector<16x1024xf32>
    %c0_10 = arith.constant 0 : index
    %c0_11 = arith.constant 0 : index
    %13 = vector.load %arg6[%c0_10, %c0_11] : memref<1x1024xf32, #tpu.memory_space<vmem>>, vector<1x1024xf32>
    %14 = vector.broadcast %13 : vector<1x1024xf32> to vector<16x1024xf32>
    %15 = arith.addf %12, %14 : vector<16x1024xf32>
    %c0_12 = arith.constant 0 : index
    %c0_13 = arith.constant 0 : index
    %16 = vector.load %arg7[%c0_12, %c0_13] : memref<256x1024xf32, #tpu.memory_space<vmem>>, vector<256x1024xf32>
    %c0_14 = arith.constant 0 : index
    %c0_15 = arith.constant 0 : index
    %17 = vector.load %arg2[%c0_14, %c0_15] : memref<2x1xi32, #tpu.memory_space<vmem>>, vector<2x1xi32>
    %c0_16 = arith.constant 0 : index
    %c0_17 = arith.constant 0 : index
    %18 = vector.load %arg15[%c0_16, %c0_17] : memref<2x256xf32, #tpu.memory_space<vmem>>, vector<2x256xf32>
    %c0_18 = arith.constant 0 : index
    %c0_19 = arith.constant 0 : index
    %19 = vector.load %arg16[%c0_18, %c0_19] : memref<2x256xf32, #tpu.memory_space<vmem>>, vector<2x256xf32>
    %20 = vector.extract_strided_slice %15 {offsets = [0, 0], sizes = [2, 1024], strides = [1, 1]} : vector<16x1024xf32> to vector<2x1024xf32>
    %cst_20 = arith.constant dense<0.000000e+00> : vector<2x1024xf32>
    %21 = tpu.matmul %18, %16, %cst_20 {dimension_numbers = #tpu.dot_dimension_numbers<[1], [0], [0], [1], [0, 0, 1, 1], [], []>} : vector<2x256xf32>, vector<256x1024xf32>, vector<2x1024xf32> -> vector<2x1024xf32>
    %22 = arith.addf %20, %21 : vector<2x1024xf32>
    %23 = vector.extract_strided_slice %22 {offsets = [0, 0], sizes = [2, 256], strides = [1, 1]} : vector<2x1024xf32> to vector<2x256xf32>
    %24 = arith.negf %23 : vector<2x256xf32>
    %25 = math.exp %24 : vector<2x256xf32>
    %cst_21 = arith.constant 1.000000e+00 : f32
    %26 = vector.broadcast %cst_21 : f32 to vector<2x256xf32>
    %27 = arith.addf %26, %25 : vector<2x256xf32>
    %28 = arith.divf %26, %27 : vector<2x256xf32>
    %29 = vector.extract_strided_slice %22 {offsets = [0, 256], sizes = [2, 256], strides = [1, 1]} : vector<2x1024xf32> to vector<2x256xf32>
    %30 = arith.negf %29 : vector<2x256xf32>
    %31 = math.exp %30 : vector<2x256xf32>
    %cst_22 = arith.constant 1.000000e+00 : f32
    %32 = vector.broadcast %cst_22 : f32 to vector<2x256xf32>
    %33 = arith.addf %32, %31 : vector<2x256xf32>
    %34 = arith.divf %32, %33 : vector<2x256xf32>
    %35 = vector.extract_strided_slice %22 {offsets = [0, 512], sizes = [2, 256], strides = [1, 1]} : vector<2x1024xf32> to vector<2x256xf32>
    %36 = math.tanh %35 : vector<2x256xf32>
    %37 = vector.extract_strided_slice %22 {offsets = [0, 768], sizes = [2, 256], strides = [1, 1]} : vector<2x1024xf32> to vector<2x256xf32>
    %38 = arith.negf %37 : vector<2x256xf32>
    %39 = math.exp %38 : vector<2x256xf32>
    %cst_23 = arith.constant 1.000000e+00 : f32
    %40 = vector.broadcast %cst_23 : f32 to vector<2x256xf32>
    %41 = arith.addf %40, %39 : vector<2x256xf32>
    %42 = arith.divf %40, %41 : vector<2x256xf32>
    %43 = arith.mulf %34, %19 : vector<2x256xf32>
    %44 = arith.mulf %28, %36 : vector<2x256xf32>
    %45 = arith.addf %43, %44 : vector<2x256xf32>
    %46 = math.tanh %45 : vector<2x256xf32>
    %47 = arith.mulf %42, %46 : vector<2x256xf32>
    %c8_i32 = arith.constant 8 : i32
    %48 = arith.muli %arg0, %c8_i32 : i32
    %c0_i32_24 = arith.constant 0 : i32
    %49 = arith.addi %48, %c0_i32_24 : i32
    %50 = vector.broadcast %49 : i32 to vector<2x1xi32>
    %51 = arith.cmpi sgt, %17, %50 : vector<2x1xi32>
    %52 = vector.shape_cast %51 : vector<2x1xi1> to vector<2x1xi1>
    %53 = vector.broadcast %52 : vector<2x1xi1> to vector<2x256xi1>
    %54 = arith.select %53, %47, %18 : vector<2x256xi1>, vector<2x256xf32>
    %c0_25 = arith.constant 0 : index
    %c0_26 = arith.constant 0 : index
    %55 = vector.load %arg15[%c0_25, %c0_26] : memref<2x256xf32, #tpu.memory_space<vmem>>, vector<2x256xf32>
    tpu.vector_store %arg15[%c0_25, %c0_26], %54 {strides = array<i32>} : memref<2x256xf32, #tpu.memory_space<vmem>>, vector<2x256xf32>,
    %56 = vector.shape_cast %51 : vector<2x1xi1> to vector<2x1xi1>
    %57 = vector.broadcast %56 : vector<2x1xi1> to vector<2x256xi1>
    %58 = arith.select %57, %45, %19 : vector<2x256xi1>, vector<2x256xf32>
    %c0_27 = arith.constant 0 : index
    %c0_28 = arith.constant 0 : index
    %59 = vector.load %arg16[%c0_27, %c0_28] : memref<2x256xf32, #tpu.memory_space<vmem>>, vector<2x256xf32>
    tpu.vector_store %arg16[%c0_27, %c0_28], %58 {strides = array<i32>} : memref<2x256xf32, #tpu.memory_space<vmem>>, vector<2x256xf32>,
    %cst_29 = arith.constant 0.000000e+00 : f32
    %60 = vector.shape_cast %51 : vector<2x1xi1> to vector<2x1xi1>
    %61 = vector.broadcast %60 : vector<2x1xi1> to vector<2x256xi1>
    %62 = vector.broadcast %cst_29 : f32 to vector<2x256xf32>
    %63 = arith.select %61, %47, %62 : vector<2x256xi1>, vector<2x256xf32>
    %c0_30 = arith.constant 0 : index
    %c0_31 = arith.constant 0 : index
    %64 = vector.load %arg17[%c0_30, %c0_31] : memref<16x256xf32, #tpu.memory_space<vmem>>, vector<2x256xf32>
    tpu.vector_store %arg17[%c0_30, %c0_31], %63 {strides = array<i32>} : memref<16x256xf32, #tpu.memory_space<vmem>>, vector<2x256xf32>,
    %c0_32 = arith.constant 0 : index
    %c0_33 = arith.constant 0 : index
    %65 = vector.load %arg15[%c0_32, %c0_33] : memref<2x256xf32, #tpu.memory_space<vmem>>, vector<2x256xf32>
    %c0_34 = arith.constant 0 : index
    %c0_35 = arith.constant 0 : index
    %66 = vector.load %arg16[%c0_34, %c0_35] : memref<2x256xf32, #tpu.memory_space<vmem>>, vector<2x256xf32>
    %67 = vector.extract_strided_slice %15 {offsets = [2, 0], sizes = [2, 1024], strides = [1, 1]} : vector<16x1024xf32> to vector<2x1024xf32>
    %cst_36 = arith.constant dense<0.000000e+00> : vector<2x1024xf32>
    %68 = tpu.matmul %65, %16, %cst_36 {dimension_numbers = #tpu.dot_dimension_numbers<[1], [0], [0], [1], [0, 0, 1, 1], [], []>} : vector<2x256xf32>, vector<256x1024xf32>, vector<2x1024xf32> -> vector<2x1024xf32>
    %69 = arith.addf %67, %68 : vector<2x1024xf32>
    %70 = vector.extract_strided_slice %69 {offsets = [0, 0], sizes = [2, 256], strides = [1, 1]} : vector<2x1024xf32> to vector<2x256xf32>
    %71 = arith.negf %70 : vector<2x256xf32>
    %72 = math.exp %71 : vector<2x256xf32>
    %cst_37 = arith.constant 1.000000e+00 : f32
    %73 = vector.broadcast %cst_37 : f32 to vector<2x256xf32>
    %74 = arith.addf %73, %72 : vector<2x256xf32>
    %75 = arith.divf %73, %74 : vector<2x256xf32>
    %76 = vector.extract_strided_slice %69 {offsets = [0, 256], sizes = [2, 256], strides = [1, 1]} : vector<2x1024xf32> to vector<2x256xf32>
    %77 = arith.negf %76 : vector<2x256xf32>
    %78 = math.exp %77 : vector<2x256xf32>
    %cst_38 = arith.constant 1.000000e+00 : f32
    %79 = vector.broadcast %cst_38 : f32 to vector<2x256xf32>
    %80 = arith.addf %79, %78 : vector<2x256xf32>
    %81 = arith.divf %79, %80 : vector<2x256xf32>
    %82 = vector.extract_strided_slice %69 {offsets = [0, 512], sizes = [2, 256], strides = [1, 1]} : vector<2x1024xf32> to vector<2x256xf32>
    %83 = math.tanh %82 : vector<2x256xf32>
    %84 = vector.extract_strided_slice %69 {offsets = [0, 768], sizes = [2, 256], strides = [1, 1]} : vector<2x1024xf32> to vector<2x256xf32>
    %85 = arith.negf %84 : vector<2x256xf32>
    %86 = math.exp %85 : vector<2x256xf32>
    %cst_39 = arith.constant 1.000000e+00 : f32
    %87 = vector.broadcast %cst_39 : f32 to vector<2x256xf32>
    %88 = arith.addf %87, %86 : vector<2x256xf32>
    %89 = arith.divf %87, %88 : vector<2x256xf32>
    %90 = arith.mulf %81, %66 : vector<2x256xf32>
    %91 = arith.mulf %75, %83 : vector<2x256xf32>
    %92 = arith.addf %90, %91 : vector<2x256xf32>
    %93 = math.tanh %92 : vector<2x256xf32>
    %94 = arith.mulf %89, %93 : vector<2x256xf32>
    %c8_i32_40 = arith.constant 8 : i32
    %95 = arith.muli %arg0, %c8_i32_40 : i32
    %c1_i32 = arith.constant 1 : i32
    %96 = arith.addi %95, %c1_i32 : i32
    %97 = vector.broadcast %96 : i32 to vector<2x1xi32>
    %98 = arith.cmpi sgt, %17, %97 : vector<2x1xi32>
    %99 = vector.shape_cast %98 : vector<2x1xi1> to vector<2x1xi1>
    %100 = vector.broadcast %99 : vector<2x1xi1> to vector<2x256xi1>
    %101 = arith.select %100, %94, %65 : vector<2x256xi1>, vector<2x256xf32>
    %c0_41 = arith.constant 0 : index
    %c0_42 = arith.constant 0 : index
    %102 = vector.load %arg15[%c0_41, %c0_42] : memref<2x256xf32, #tpu.memory_space<vmem>>, vector<2x256xf32>
    tpu.vector_store %arg15[%c0_41, %c0_42], %101 {strides = array<i32>} : memref<2x256xf32, #tpu.memory_space<vmem>>, vector<2x256xf32>,
    %103 = vector.shape_cast %98 : vector<2x1xi1> to vector<2x1xi1>
    %104 = vector.broadcast %103 : vector<2x1xi1> to vector<2x256xi1>
    %105 = arith.select %104, %92, %66 : vector<2x256xi1>, vector<2x256xf32>
    %c0_43 = arith.constant 0 : index
    %c0_44 = arith.constant 0 : index
    %106 = vector.load %arg16[%c0_43, %c0_44] : memref<2x256xf32, #tpu.memory_space<vmem>>, vector<2x256xf32>
    tpu.vector_store %arg16[%c0_43, %c0_44], %105 {strides = array<i32>} : memref<2x256xf32, #tpu.memory_space<vmem>>, vector<2x256xf32>,
    %cst_45 = arith.constant 0.000000e+00 : f32
    %107 = vector.shape_cast %98 : vector<2x1xi1> to vector<2x1xi1>
    %108 = vector.broadcast %107 : vector<2x1xi1> to vector<2x256xi1>
    %109 = vector.broadcast %cst_45 : f32 to vector<2x256xf32>
    %110 = arith.select %108, %94, %109 : vector<2x256xi1>, vector<2x256xf32>
    %c2 = arith.constant 2 : index
    %c0_46 = arith.constant 0 : index
    %111 = vector.load %arg17[%c2, %c0_46] : memref<16x256xf32, #tpu.memory_space<vmem>>, vector<2x256xf32>
    tpu.vector_store %arg17[%c2, %c0_46], %110 {strides = array<i32>} : memref<16x256xf32, #tpu.memory_space<vmem>>, vector<2x256xf32>,
    %c0_47 = arith.constant 0 : index
    %c0_48 = arith.constant 0 : index
    %112 = vector.load %arg15[%c0_47, %c0_48] : memref<2x256xf32, #tpu.memory_space<vmem>>, vector<2x256xf32>
    %c0_49 = arith.constant 0 : index
    %c0_50 = arith.constant 0 : index
    %113 = vector.load %arg16[%c0_49, %c0_50] : memref<2x256xf32, #tpu.memory_space<vmem>>, vector<2x256xf32>
    %114 = vector.extract_strided_slice %15 {offsets = [4, 0], sizes = [2, 1024], strides = [1, 1]} : vector<16x1024xf32> to vector<2x1024xf32>
    %cst_51 = arith.constant dense<0.000000e+00> : vector<2x1024xf32>
    %115 = tpu.matmul %112, %16, %cst_51 {dimension_numbers = #tpu.dot_dimension_numbers<[1], [0], [0], [1], [0, 0, 1, 1], [], []>} : vector<2x256xf32>, vector<256x1024xf32>, vector<2x1024xf32> -> vector<2x1024xf32>
    %116 = arith.addf %114, %115 : vector<2x1024xf32>
    %117 = vector.extract_strided_slice %116 {offsets = [0, 0], sizes = [2, 256], strides = [1, 1]} : vector<2x1024xf32> to vector<2x256xf32>
    %118 = arith.negf %117 : vector<2x256xf32>
    %119 = math.exp %118 : vector<2x256xf32>
    %cst_52 = arith.constant 1.000000e+00 : f32
    %120 = vector.broadcast %cst_52 : f32 to vector<2x256xf32>
    %121 = arith.addf %120, %119 : vector<2x256xf32>
    %122 = arith.divf %120, %121 : vector<2x256xf32>
    %123 = vector.extract_strided_slice %116 {offsets = [0, 256], sizes = [2, 256], strides = [1, 1]} : vector<2x1024xf32> to vector<2x256xf32>
    %124 = arith.negf %123 : vector<2x256xf32>
    %125 = math.exp %124 : vector<2x256xf32>
    %cst_53 = arith.constant 1.000000e+00 : f32
    %126 = vector.broadcast %cst_53 : f32 to vector<2x256xf32>
    %127 = arith.addf %126, %125 : vector<2x256xf32>
    %128 = arith.divf %126, %127 : vector<2x256xf32>
    %129 = vector.extract_strided_slice %116 {offsets = [0, 512], sizes = [2, 256], strides = [1, 1]} : vector<2x1024xf32> to vector<2x256xf32>
    %130 = math.tanh %129 : vector<2x256xf32>
    %131 = vector.extract_strided_slice %116 {offsets = [0, 768], sizes = [2, 256], strides = [1, 1]} : vector<2x1024xf32> to vector<2x256xf32>
    %132 = arith.negf %131 : vector<2x256xf32>
    %133 = math.exp %132 : vector<2x256xf32>
    %cst_54 = arith.constant 1.000000e+00 : f32
    %134 = vector.broadcast %cst_54 : f32 to vector<2x256xf32>
    %135 = arith.addf %134, %133 : vector<2x256xf32>
    %136 = arith.divf %134, %135 : vector<2x256xf32>
    %137 = arith.mulf %128, %113 : vector<2x256xf32>
    %138 = arith.mulf %122, %130 : vector<2x256xf32>
    %139 = arith.addf %137, %138 : vector<2x256xf32>
    %140 = math.tanh %139 : vector<2x256xf32>
    %141 = arith.mulf %136, %140 : vector<2x256xf32>
    %c8_i32_55 = arith.constant 8 : i32
    %142 = arith.muli %arg0, %c8_i32_55 : i32
    %c2_i32 = arith.constant 2 : i32
    %143 = arith.addi %142, %c2_i32 : i32
    %144 = vector.broadcast %143 : i32 to vector<2x1xi32>
    %145 = arith.cmpi sgt, %17, %144 : vector<2x1xi32>
    %146 = vector.shape_cast %145 : vector<2x1xi1> to vector<2x1xi1>
    %147 = vector.broadcast %146 : vector<2x1xi1> to vector<2x256xi1>
    %148 = arith.select %147, %141, %112 : vector<2x256xi1>, vector<2x256xf32>
    %c0_56 = arith.constant 0 : index
    %c0_57 = arith.constant 0 : index
    %149 = vector.load %arg15[%c0_56, %c0_57] : memref<2x256xf32, #tpu.memory_space<vmem>>, vector<2x256xf32>
    tpu.vector_store %arg15[%c0_56, %c0_57], %148 {strides = array<i32>} : memref<2x256xf32, #tpu.memory_space<vmem>>, vector<2x256xf32>,
    %150 = vector.shape_cast %145 : vector<2x1xi1> to vector<2x1xi1>
    %151 = vector.broadcast %150 : vector<2x1xi1> to vector<2x256xi1>
    %152 = arith.select %151, %139, %113 : vector<2x256xi1>, vector<2x256xf32>
    %c0_58 = arith.constant 0 : index
    %c0_59 = arith.constant 0 : index
    %153 = vector.load %arg16[%c0_58, %c0_59] : memref<2x256xf32, #tpu.memory_space<vmem>>, vector<2x256xf32>
    tpu.vector_store %arg16[%c0_58, %c0_59], %152 {strides = array<i32>} : memref<2x256xf32, #tpu.memory_space<vmem>>, vector<2x256xf32>,
    %cst_60 = arith.constant 0.000000e+00 : f32
    %154 = vector.shape_cast %145 : vector<2x1xi1> to vector<2x1xi1>
    %155 = vector.broadcast %154 : vector<2x1xi1> to vector<2x256xi1>
    %156 = vector.broadcast %cst_60 : f32 to vector<2x256xf32>
    %157 = arith.select %155, %141, %156 : vector<2x256xi1>, vector<2x256xf32>
    %c4 = arith.constant 4 : index
    %c0_61 = arith.constant 0 : index
    %158 = vector.load %arg17[%c4, %c0_61] : memref<16x256xf32, #tpu.memory_space<vmem>>, vector<2x256xf32>
    tpu.vector_store %arg17[%c4, %c0_61], %157 {strides = array<i32>} : memref<16x256xf32, #tpu.memory_space<vmem>>, vector<2x256xf32>,
    %c0_62 = arith.constant 0 : index
    %c0_63 = arith.constant 0 : index
    %159 = vector.load %arg15[%c0_62, %c0_63] : memref<2x256xf32, #tpu.memory_space<vmem>>, vector<2x256xf32>
    %c0_64 = arith.constant 0 : index
    %c0_65 = arith.constant 0 : index
    %160 = vector.load %arg16[%c0_64, %c0_65] : memref<2x256xf32, #tpu.memory_space<vmem>>, vector<2x256xf32>
    %161 = vector.extract_strided_slice %15 {offsets = [6, 0], sizes = [2, 1024], strides = [1, 1]} : vector<16x1024xf32> to vector<2x1024xf32>
    %cst_66 = arith.constant dense<0.000000e+00> : vector<2x1024xf32>
    %162 = tpu.matmul %159, %16, %cst_66 {dimension_numbers = #tpu.dot_dimension_numbers<[1], [0], [0], [1], [0, 0, 1, 1], [], []>} : vector<2x256xf32>, vector<256x1024xf32>, vector<2x1024xf32> -> vector<2x1024xf32>
    %163 = arith.addf %161, %162 : vector<2x1024xf32>
    %164 = vector.extract_strided_slice %163 {offsets = [0, 0], sizes = [2, 256], strides = [1, 1]} : vector<2x1024xf32> to vector<2x256xf32>
    %165 = arith.negf %164 : vector<2x256xf32>
    %166 = math.exp %165 : vector<2x256xf32>
    %cst_67 = arith.constant 1.000000e+00 : f32
    %167 = vector.broadcast %cst_67 : f32 to vector<2x256xf32>
    %168 = arith.addf %167, %166 : vector<2x256xf32>
    %169 = arith.divf %167, %168 : vector<2x256xf32>
    %170 = vector.extract_strided_slice %163 {offsets = [0, 256], sizes = [2, 256], strides = [1, 1]} : vector<2x1024xf32> to vector<2x256xf32>
    %171 = arith.negf %170 : vector<2x256xf32>
    %172 = math.exp %171 : vector<2x256xf32>
    %cst_68 = arith.constant 1.000000e+00 : f32
    %173 = vector.broadcast %cst_68 : f32 to vector<2x256xf32>
    %174 = arith.addf %173, %172 : vector<2x256xf32>
    %175 = arith.divf %173, %174 : vector<2x256xf32>
    %176 = vector.extract_strided_slice %163 {offsets = [0, 512], sizes = [2, 256], strides = [1, 1]} : vector<2x1024xf32> to vector<2x256xf32>
    %177 = math.tanh %176 : vector<2x256xf32>
    %178 = vector.extract_strided_slice %163 {offsets = [0, 768], sizes = [2, 256], strides = [1, 1]} : vector<2x1024xf32> to vector<2x256xf32>
    %179 = arith.negf %178 : vector<2x256xf32>
    %180 = math.exp %179 : vector<2x256xf32>
    %cst_69 = arith.constant 1.000000e+00 : f32
    %181 = vector.broadcast %cst_69 : f32 to vector<2x256xf32>
    %182 = arith.addf %181, %180 : vector<2x256xf32>
    %183 = arith.divf %181, %182 : vector<2x256xf32>
    %184 = arith.mulf %175, %160 : vector<2x256xf32>
    %185 = arith.mulf %169, %177 : vector<2x256xf32>
    %186 = arith.addf %184, %185 : vector<2x256xf32>
    %187 = math.tanh %186 : vector<2x256xf32>
    %188 = arith.mulf %183, %187 : vector<2x256xf32>
    %c8_i32_70 = arith.constant 8 : i32
    %189 = arith.muli %arg0, %c8_i32_70 : i32
    %c3_i32 = arith.constant 3 : i32
    %190 = arith.addi %189, %c3_i32 : i32
    %191 = vector.broadcast %190 : i32 to vector<2x1xi32>
    %192 = arith.cmpi sgt, %17, %191 : vector<2x1xi32>
    %193 = vector.shape_cast %192 : vector<2x1xi1> to vector<2x1xi1>
    %194 = vector.broadcast %193 : vector<2x1xi1> to vector<2x256xi1>
    %195 = arith.select %194, %188, %159 : vector<2x256xi1>, vector<2x256xf32>
    %c0_71 = arith.constant 0 : index
    %c0_72 = arith.constant 0 : index
    %196 = vector.load %arg15[%c0_71, %c0_72] : memref<2x256xf32, #tpu.memory_space<vmem>>, vector<2x256xf32>
    tpu.vector_store %arg15[%c0_71, %c0_72], %195 {strides = array<i32>} : memref<2x256xf32, #tpu.memory_space<vmem>>, vector<2x256xf32>,
    %197 = vector.shape_cast %192 : vector<2x1xi1> to vector<2x1xi1>
    %198 = vector.broadcast %197 : vector<2x1xi1> to vector<2x256xi1>
    %199 = arith.select %198, %186, %160 : vector<2x256xi1>, vector<2x256xf32>
    %c0_73 = arith.constant 0 : index
    %c0_74 = arith.constant 0 : index
    %200 = vector.load %arg16[%c0_73, %c0_74] : memref<2x256xf32, #tpu.memory_space<vmem>>, vector<2x256xf32>
    tpu.vector_store %arg16[%c0_73, %c0_74], %199 {strides = array<i32>} : memref<2x256xf32, #tpu.memory_space<vmem>>, vector<2x256xf32>,
    %cst_75 = arith.constant 0.000000e+00 : f32
    %201 = vector.shape_cast %192 : vector<2x1xi1> to vector<2x1xi1>
    %202 = vector.broadcast %201 : vector<2x1xi1> to vector<2x256xi1>
    %203 = vector.broadcast %cst_75 : f32 to vector<2x256xf32>
    %204 = arith.select %202, %188, %203 : vector<2x256xi1>, vector<2x256xf32>
    %c6 = arith.constant 6 : index
    %c0_76 = arith.constant 0 : index
    %205 = vector.load %arg17[%c6, %c0_76] : memref<16x256xf32, #tpu.memory_space<vmem>>, vector<2x256xf32>
    tpu.vector_store %arg17[%c6, %c0_76], %204 {strides = array<i32>} : memref<16x256xf32, #tpu.memory_space<vmem>>, vector<2x256xf32>,
    %c0_77 = arith.constant 0 : index
    %c0_78 = arith.constant 0 : index
    %206 = vector.load %arg15[%c0_77, %c0_78] : memref<2x256xf32, #tpu.memory_space<vmem>>, vector<2x256xf32>
    %c0_79 = arith.constant 0 : index
    %c0_80 = arith.constant 0 : index
    %207 = vector.load %arg16[%c0_79, %c0_80] : memref<2x256xf32, #tpu.memory_space<vmem>>, vector<2x256xf32>
    %208 = vector.extract_strided_slice %15 {offsets = [8, 0], sizes = [2, 1024], strides = [1, 1]} : vector<16x1024xf32> to vector<2x1024xf32>
    %cst_81 = arith.constant dense<0.000000e+00> : vector<2x1024xf32>
    %209 = tpu.matmul %206, %16, %cst_81 {dimension_numbers = #tpu.dot_dimension_numbers<[1], [0], [0], [1], [0, 0, 1, 1], [], []>} : vector<2x256xf32>, vector<256x1024xf32>, vector<2x1024xf32> -> vector<2x1024xf32>
    %210 = arith.addf %208, %209 : vector<2x1024xf32>
    %211 = vector.extract_strided_slice %210 {offsets = [0, 0], sizes = [2, 256], strides = [1, 1]} : vector<2x1024xf32> to vector<2x256xf32>
    %212 = arith.negf %211 : vector<2x256xf32>
    %213 = math.exp %212 : vector<2x256xf32>
    %cst_82 = arith.constant 1.000000e+00 : f32
    %214 = vector.broadcast %cst_82 : f32 to vector<2x256xf32>
    %215 = arith.addf %214, %213 : vector<2x256xf32>
    %216 = arith.divf %214, %215 : vector<2x256xf32>
    %217 = vector.extract_strided_slice %210 {offsets = [0, 256], sizes = [2, 256], strides = [1, 1]} : vector<2x1024xf32> to vector<2x256xf32>
    %218 = arith.negf %217 : vector<2x256xf32>
    %219 = math.exp %218 : vector<2x256xf32>
    %cst_83 = arith.constant 1.000000e+00 : f32
    %220 = vector.broadcast %cst_83 : f32 to vector<2x256xf32>
    %221 = arith.addf %220, %219 : vector<2x256xf32>
    %222 = arith.divf %220, %221 : vector<2x256xf32>
    %223 = vector.extract_strided_slice %210 {offsets = [0, 512], sizes = [2, 256], strides = [1, 1]} : vector<2x1024xf32> to vector<2x256xf32>
    %224 = math.tanh %223 : vector<2x256xf32>
    %225 = vector.extract_strided_slice %210 {offsets = [0, 768], sizes = [2, 256], strides = [1, 1]} : vector<2x1024xf32> to vector<2x256xf32>
    %226 = arith.negf %225 : vector<2x256xf32>
    %227 = math.exp %226 : vector<2x256xf32>
    %cst_84 = arith.constant 1.000000e+00 : f32
    %228 = vector.broadcast %cst_84 : f32 to vector<2x256xf32>
    %229 = arith.addf %228, %227 : vector<2x256xf32>
    %230 = arith.divf %228, %229 : vector<2x256xf32>
    %231 = arith.mulf %222, %207 : vector<2x256xf32>
    %232 = arith.mulf %216, %224 : vector<2x256xf32>
    %233 = arith.addf %231, %232 : vector<2x256xf32>
    %234 = math.tanh %233 : vector<2x256xf32>
    %235 = arith.mulf %230, %234 : vector<2x256xf32>
    %c8_i32_85 = arith.constant 8 : i32
    %236 = arith.muli %arg0, %c8_i32_85 : i32
    %c4_i32 = arith.constant 4 : i32
    %237 = arith.addi %236, %c4_i32 : i32
    %238 = vector.broadcast %237 : i32 to vector<2x1xi32>
    %239 = arith.cmpi sgt, %17, %238 : vector<2x1xi32>
    %240 = vector.shape_cast %239 : vector<2x1xi1> to vector<2x1xi1>
    %241 = vector.broadcast %240 : vector<2x1xi1> to vector<2x256xi1>
    %242 = arith.select %241, %235, %206 : vector<2x256xi1>, vector<2x256xf32>
    %c0_86 = arith.constant 0 : index
    %c0_87 = arith.constant 0 : index
    %243 = vector.load %arg15[%c0_86, %c0_87] : memref<2x256xf32, #tpu.memory_space<vmem>>, vector<2x256xf32>
    tpu.vector_store %arg15[%c0_86, %c0_87], %242 {strides = array<i32>} : memref<2x256xf32, #tpu.memory_space<vmem>>, vector<2x256xf32>,
    %244 = vector.shape_cast %239 : vector<2x1xi1> to vector<2x1xi1>
    %245 = vector.broadcast %244 : vector<2x1xi1> to vector<2x256xi1>
    %246 = arith.select %245, %233, %207 : vector<2x256xi1>, vector<2x256xf32>
    %c0_88 = arith.constant 0 : index
    %c0_89 = arith.constant 0 : index
    %247 = vector.load %arg16[%c0_88, %c0_89] : memref<2x256xf32, #tpu.memory_space<vmem>>, vector<2x256xf32>
    tpu.vector_store %arg16[%c0_88, %c0_89], %246 {strides = array<i32>} : memref<2x256xf32, #tpu.memory_space<vmem>>, vector<2x256xf32>,
    %cst_90 = arith.constant 0.000000e+00 : f32
    %248 = vector.shape_cast %239 : vector<2x1xi1> to vector<2x1xi1>
    %249 = vector.broadcast %248 : vector<2x1xi1> to vector<2x256xi1>
    %250 = vector.broadcast %cst_90 : f32 to vector<2x256xf32>
    %251 = arith.select %249, %235, %250 : vector<2x256xi1>, vector<2x256xf32>
    %c8 = arith.constant 8 : index
    %c0_91 = arith.constant 0 : index
    %252 = vector.load %arg17[%c8, %c0_91] : memref<16x256xf32, #tpu.memory_space<vmem>>, vector<2x256xf32>
    tpu.vector_store %arg17[%c8, %c0_91], %251 {strides = array<i32>} : memref<16x256xf32, #tpu.memory_space<vmem>>, vector<2x256xf32>,
    %c0_92 = arith.constant 0 : index
    %c0_93 = arith.constant 0 : index
    %253 = vector.load %arg15[%c0_92, %c0_93] : memref<2x256xf32, #tpu.memory_space<vmem>>, vector<2x256xf32>
    %c0_94 = arith.constant 0 : index
    %c0_95 = arith.constant 0 : index
    %254 = vector.load %arg16[%c0_94, %c0_95] : memref<2x256xf32, #tpu.memory_space<vmem>>, vector<2x256xf32>
    %255 = vector.extract_strided_slice %15 {offsets = [10, 0], sizes = [2, 1024], strides = [1, 1]} : vector<16x1024xf32> to vector<2x1024xf32>
    %cst_96 = arith.constant dense<0.000000e+00> : vector<2x1024xf32>
    %256 = tpu.matmul %253, %16, %cst_96 {dimension_numbers = #tpu.dot_dimension_numbers<[1], [0], [0], [1], [0, 0, 1, 1], [], []>} : vector<2x256xf32>, vector<256x1024xf32>, vector<2x1024xf32> -> vector<2x1024xf32>
    %257 = arith.addf %255, %256 : vector<2x1024xf32>
    %258 = vector.extract_strided_slice %257 {offsets = [0, 0], sizes = [2, 256], strides = [1, 1]} : vector<2x1024xf32> to vector<2x256xf32>
    %259 = arith.negf %258 : vector<2x256xf32>
    %260 = math.exp %259 : vector<2x256xf32>
    %cst_97 = arith.constant 1.000000e+00 : f32
    %261 = vector.broadcast %cst_97 : f32 to vector<2x256xf32>
    %262 = arith.addf %261, %260 : vector<2x256xf32>
    %263 = arith.divf %261, %262 : vector<2x256xf32>
    %264 = vector.extract_strided_slice %257 {offsets = [0, 256], sizes = [2, 256], strides = [1, 1]} : vector<2x1024xf32> to vector<2x256xf32>
    %265 = arith.negf %264 : vector<2x256xf32>
    %266 = math.exp %265 : vector<2x256xf32>
    %cst_98 = arith.constant 1.000000e+00 : f32
    %267 = vector.broadcast %cst_98 : f32 to vector<2x256xf32>
    %268 = arith.addf %267, %266 : vector<2x256xf32>
    %269 = arith.divf %267, %268 : vector<2x256xf32>
    %270 = vector.extract_strided_slice %257 {offsets = [0, 512], sizes = [2, 256], strides = [1, 1]} : vector<2x1024xf32> to vector<2x256xf32>
    %271 = math.tanh %270 : vector<2x256xf32>
    %272 = vector.extract_strided_slice %257 {offsets = [0, 768], sizes = [2, 256], strides = [1, 1]} : vector<2x1024xf32> to vector<2x256xf32>
    %273 = arith.negf %272 : vector<2x256xf32>
    %274 = math.exp %273 : vector<2x256xf32>
    %cst_99 = arith.constant 1.000000e+00 : f32
    %275 = vector.broadcast %cst_99 : f32 to vector<2x256xf32>
    %276 = arith.addf %275, %274 : vector<2x256xf32>
    %277 = arith.divf %275, %276 : vector<2x256xf32>
    %278 = arith.mulf %269, %254 : vector<2x256xf32>
    %279 = arith.mulf %263, %271 : vector<2x256xf32>
    %280 = arith.addf %278, %279 : vector<2x256xf32>
    %281 = math.tanh %280 : vector<2x256xf32>
    %282 = arith.mulf %277, %281 : vector<2x256xf32>
    %c8_i32_100 = arith.constant 8 : i32
    %283 = arith.muli %arg0, %c8_i32_100 : i32
    %c5_i32 = arith.constant 5 : i32
    %284 = arith.addi %283, %c5_i32 : i32
    %285 = vector.broadcast %284 : i32 to vector<2x1xi32>
    %286 = arith.cmpi sgt, %17, %285 : vector<2x1xi32>
    %287 = vector.shape_cast %286 : vector<2x1xi1> to vector<2x1xi1>
    %288 = vector.broadcast %287 : vector<2x1xi1> to vector<2x256xi1>
    %289 = arith.select %288, %282, %253 : vector<2x256xi1>, vector<2x256xf32>
    %c0_101 = arith.constant 0 : index
    %c0_102 = arith.constant 0 : index
    %290 = vector.load %arg15[%c0_101, %c0_102] : memref<2x256xf32, #tpu.memory_space<vmem>>, vector<2x256xf32>
    tpu.vector_store %arg15[%c0_101, %c0_102], %289 {strides = array<i32>} : memref<2x256xf32, #tpu.memory_space<vmem>>, vector<2x256xf32>,
    %291 = vector.shape_cast %286 : vector<2x1xi1> to vector<2x1xi1>
    %292 = vector.broadcast %291 : vector<2x1xi1> to vector<2x256xi1>
    %293 = arith.select %292, %280, %254 : vector<2x256xi1>, vector<2x256xf32>
    %c0_103 = arith.constant 0 : index
    %c0_104 = arith.constant 0 : index
    %294 = vector.load %arg16[%c0_103, %c0_104] : memref<2x256xf32, #tpu.memory_space<vmem>>, vector<2x256xf32>
    tpu.vector_store %arg16[%c0_103, %c0_104], %293 {strides = array<i32>} : memref<2x256xf32, #tpu.memory_space<vmem>>, vector<2x256xf32>,
    %cst_105 = arith.constant 0.000000e+00 : f32
    %295 = vector.shape_cast %286 : vector<2x1xi1> to vector<2x1xi1>
    %296 = vector.broadcast %295 : vector<2x1xi1> to vector<2x256xi1>
    %297 = vector.broadcast %cst_105 : f32 to vector<2x256xf32>
    %298 = arith.select %296, %282, %297 : vector<2x256xi1>, vector<2x256xf32>
    %c10 = arith.constant 10 : index
    %c0_106 = arith.constant 0 : index
    %299 = vector.load %arg17[%c10, %c0_106] : memref<16x256xf32, #tpu.memory_space<vmem>>, vector<2x256xf32>
    tpu.vector_store %arg17[%c10, %c0_106], %298 {strides = array<i32>} : memref<16x256xf32, #tpu.memory_space<vmem>>, vector<2x256xf32>,
    %c0_107 = arith.constant 0 : index
    %c0_108 = arith.constant 0 : index
    %300 = vector.load %arg15[%c0_107, %c0_108] : memref<2x256xf32, #tpu.memory_space<vmem>>, vector<2x256xf32>
    %c0_109 = arith.constant 0 : index
    %c0_110 = arith.constant 0 : index
    %301 = vector.load %arg16[%c0_109, %c0_110] : memref<2x256xf32, #tpu.memory_space<vmem>>, vector<2x256xf32>
    %302 = vector.extract_strided_slice %15 {offsets = [12, 0], sizes = [2, 1024], strides = [1, 1]} : vector<16x1024xf32> to vector<2x1024xf32>
    %cst_111 = arith.constant dense<0.000000e+00> : vector<2x1024xf32>
    %303 = tpu.matmul %300, %16, %cst_111 {dimension_numbers = #tpu.dot_dimension_numbers<[1], [0], [0], [1], [0, 0, 1, 1], [], []>} : vector<2x256xf32>, vector<256x1024xf32>, vector<2x1024xf32> -> vector<2x1024xf32>
    %304 = arith.addf %302, %303 : vector<2x1024xf32>
    %305 = vector.extract_strided_slice %304 {offsets = [0, 0], sizes = [2, 256], strides = [1, 1]} : vector<2x1024xf32> to vector<2x256xf32>
    %306 = arith.negf %305 : vector<2x256xf32>
    %307 = math.exp %306 : vector<2x256xf32>
    %cst_112 = arith.constant 1.000000e+00 : f32
    %308 = vector.broadcast %cst_112 : f32 to vector<2x256xf32>
    %309 = arith.addf %308, %307 : vector<2x256xf32>
    %310 = arith.divf %308, %309 : vector<2x256xf32>
    %311 = vector.extract_strided_slice %304 {offsets = [0, 256], sizes = [2, 256], strides = [1, 1]} : vector<2x1024xf32> to vector<2x256xf32>
    %312 = arith.negf %311 : vector<2x256xf32>
    %313 = math.exp %312 : vector<2x256xf32>
    %cst_113 = arith.constant 1.000000e+00 : f32
    %314 = vector.broadcast %cst_113 : f32 to vector<2x256xf32>
    %315 = arith.addf %314, %313 : vector<2x256xf32>
    %316 = arith.divf %314, %315 : vector<2x256xf32>
    %317 = vector.extract_strided_slice %304 {offsets = [0, 512], sizes = [2, 256], strides = [1, 1]} : vector<2x1024xf32> to vector<2x256xf32>
    %318 = math.tanh %317 : vector<2x256xf32>
    %319 = vector.extract_strided_slice %304 {offsets = [0, 768], sizes = [2, 256], strides = [1, 1]} : vector<2x1024xf32> to vector<2x256xf32>
    %320 = arith.negf %319 : vector<2x256xf32>
    %321 = math.exp %320 : vector<2x256xf32>
    %cst_114 = arith.constant 1.000000e+00 : f32
    %322 = vector.broadcast %cst_114 : f32 to vector<2x256xf32>
    %323 = arith.addf %322, %321 : vector<2x256xf32>
    %324 = arith.divf %322, %323 : vector<2x256xf32>
    %325 = arith.mulf %316, %301 : vector<2x256xf32>
    %326 = arith.mulf %310, %318 : vector<2x256xf32>
    %327 = arith.addf %325, %326 : vector<2x256xf32>
    %328 = math.tanh %327 : vector<2x256xf32>
    %329 = arith.mulf %324, %328 : vector<2x256xf32>
    %c8_i32_115 = arith.constant 8 : i32
    %330 = arith.muli %arg0, %c8_i32_115 : i32
    %c6_i32 = arith.constant 6 : i32
    %331 = arith.addi %330, %c6_i32 : i32
    %332 = vector.broadcast %331 : i32 to vector<2x1xi32>
    %333 = arith.cmpi sgt, %17, %332 : vector<2x1xi32>
    %334 = vector.shape_cast %333 : vector<2x1xi1> to vector<2x1xi1>
    %335 = vector.broadcast %334 : vector<2x1xi1> to vector<2x256xi1>
    %336 = arith.select %335, %329, %300 : vector<2x256xi1>, vector<2x256xf32>
    %c0_116 = arith.constant 0 : index
    %c0_117 = arith.constant 0 : index
    %337 = vector.load %arg15[%c0_116, %c0_117] : memref<2x256xf32, #tpu.memory_space<vmem>>, vector<2x256xf32>
    tpu.vector_store %arg15[%c0_116, %c0_117], %336 {strides = array<i32>} : memref<2x256xf32, #tpu.memory_space<vmem>>, vector<2x256xf32>,
    %338 = vector.shape_cast %333 : vector<2x1xi1> to vector<2x1xi1>
    %339 = vector.broadcast %338 : vector<2x1xi1> to vector<2x256xi1>
    %340 = arith.select %339, %327, %301 : vector<2x256xi1>, vector<2x256xf32>
    %c0_118 = arith.constant 0 : index
    %c0_119 = arith.constant 0 : index
    %341 = vector.load %arg16[%c0_118, %c0_119] : memref<2x256xf32, #tpu.memory_space<vmem>>, vector<2x256xf32>
    tpu.vector_store %arg16[%c0_118, %c0_119], %340 {strides = array<i32>} : memref<2x256xf32, #tpu.memory_space<vmem>>, vector<2x256xf32>,
    %cst_120 = arith.constant 0.000000e+00 : f32
    %342 = vector.shape_cast %333 : vector<2x1xi1> to vector<2x1xi1>
    %343 = vector.broadcast %342 : vector<2x1xi1> to vector<2x256xi1>
    %344 = vector.broadcast %cst_120 : f32 to vector<2x256xf32>
    %345 = arith.select %343, %329, %344 : vector<2x256xi1>, vector<2x256xf32>
    %c12 = arith.constant 12 : index
    %c0_121 = arith.constant 0 : index
    %346 = vector.load %arg17[%c12, %c0_121] : memref<16x256xf32, #tpu.memory_space<vmem>>, vector<2x256xf32>
    tpu.vector_store %arg17[%c12, %c0_121], %345 {strides = array<i32>} : memref<16x256xf32, #tpu.memory_space<vmem>>, vector<2x256xf32>,
    %c0_122 = arith.constant 0 : index
    %c0_123 = arith.constant 0 : index
    %347 = vector.load %arg15[%c0_122, %c0_123] : memref<2x256xf32, #tpu.memory_space<vmem>>, vector<2x256xf32>
    %c0_124 = arith.constant 0 : index
    %c0_125 = arith.constant 0 : index
    %348 = vector.load %arg16[%c0_124, %c0_125] : memref<2x256xf32, #tpu.memory_space<vmem>>, vector<2x256xf32>
    %349 = vector.extract_strided_slice %15 {offsets = [14, 0], sizes = [2, 1024], strides = [1, 1]} : vector<16x1024xf32> to vector<2x1024xf32>
    %cst_126 = arith.constant dense<0.000000e+00> : vector<2x1024xf32>
    %350 = tpu.matmul %347, %16, %cst_126 {dimension_numbers = #tpu.dot_dimension_numbers<[1], [0], [0], [1], [0, 0, 1, 1], [], []>} : vector<2x256xf32>, vector<256x1024xf32>, vector<2x1024xf32> -> vector<2x1024xf32>
    %351 = arith.addf %349, %350 : vector<2x1024xf32>
    %352 = vector.extract_strided_slice %351 {offsets = [0, 0], sizes = [2, 256], strides = [1, 1]} : vector<2x1024xf32> to vector<2x256xf32>
    %353 = arith.negf %352 : vector<2x256xf32>
    %354 = math.exp %353 : vector<2x256xf32>
    %cst_127 = arith.constant 1.000000e+00 : f32
    %355 = vector.broadcast %cst_127 : f32 to vector<2x256xf32>
    %356 = arith.addf %355, %354 : vector<2x256xf32>
    %357 = arith.divf %355, %356 : vector<2x256xf32>
    %358 = vector.extract_strided_slice %351 {offsets = [0, 256], sizes = [2, 256], strides = [1, 1]} : vector<2x1024xf32> to vector<2x256xf32>
    %359 = arith.negf %358 : vector<2x256xf32>
    %360 = math.exp %359 : vector<2x256xf32>
    %cst_128 = arith.constant 1.000000e+00 : f32
    %361 = vector.broadcast %cst_128 : f32 to vector<2x256xf32>
    %362 = arith.addf %361, %360 : vector<2x256xf32>
    %363 = arith.divf %361, %362 : vector<2x256xf32>
    %364 = vector.extract_strided_slice %351 {offsets = [0, 512], sizes = [2, 256], strides = [1, 1]} : vector<2x1024xf32> to vector<2x256xf32>
    %365 = math.tanh %364 : vector<2x256xf32>
    %366 = vector.extract_strided_slice %351 {offsets = [0, 768], sizes = [2, 256], strides = [1, 1]} : vector<2x1024xf32> to vector<2x256xf32>
    %367 = arith.negf %366 : vector<2x256xf32>
    %368 = math.exp %367 : vector<2x256xf32>
    %cst_129 = arith.constant 1.000000e+00 : f32
    %369 = vector.broadcast %cst_129 : f32 to vector<2x256xf32>
    %370 = arith.addf %369, %368 : vector<2x256xf32>
    %371 = arith.divf %369, %370 : vector<2x256xf32>
    %372 = arith.mulf %363, %348 : vector<2x256xf32>
    %373 = arith.mulf %357, %365 : vector<2x256xf32>
    %374 = arith.addf %372, %373 : vector<2x256xf32>
    %375 = math.tanh %374 : vector<2x256xf32>
    %376 = arith.mulf %371, %375 : vector<2x256xf32>
    %c8_i32_130 = arith.constant 8 : i32
    %377 = arith.muli %arg0, %c8_i32_130 : i32
    %c7_i32 = arith.constant 7 : i32
    %378 = arith.addi %377, %c7_i32 : i32
    %379 = vector.broadcast %378 : i32 to vector<2x1xi32>
    %380 = arith.cmpi sgt, %17, %379 : vector<2x1xi32>
    %381 = vector.shape_cast %380 : vector<2x1xi1> to vector<2x1xi1>
    %382 = vector.broadcast %381 : vector<2x1xi1> to vector<2x256xi1>
    %383 = arith.select %382, %376, %347 : vector<2x256xi1>, vector<2x256xf32>
    %c0_131 = arith.constant 0 : index
    %c0_132 = arith.constant 0 : index
    %384 = vector.load %arg15[%c0_131, %c0_132] : memref<2x256xf32, #tpu.memory_space<vmem>>, vector<2x256xf32>
    tpu.vector_store %arg15[%c0_131, %c0_132], %383 {strides = array<i32>} : memref<2x256xf32, #tpu.memory_space<vmem>>, vector<2x256xf32>,
    %385 = vector.shape_cast %380 : vector<2x1xi1> to vector<2x1xi1>
    %386 = vector.broadcast %385 : vector<2x1xi1> to vector<2x256xi1>
    %387 = arith.select %386, %374, %348 : vector<2x256xi1>, vector<2x256xf32>
    %c0_133 = arith.constant 0 : index
    %c0_134 = arith.constant 0 : index
    %388 = vector.load %arg16[%c0_133, %c0_134] : memref<2x256xf32, #tpu.memory_space<vmem>>, vector<2x256xf32>
    tpu.vector_store %arg16[%c0_133, %c0_134], %387 {strides = array<i32>} : memref<2x256xf32, #tpu.memory_space<vmem>>, vector<2x256xf32>,
    %cst_135 = arith.constant 0.000000e+00 : f32
    %389 = vector.shape_cast %380 : vector<2x1xi1> to vector<2x1xi1>
    %390 = vector.broadcast %389 : vector<2x1xi1> to vector<2x256xi1>
    %391 = vector.broadcast %cst_135 : f32 to vector<2x256xf32>
    %392 = arith.select %390, %376, %391 : vector<2x256xi1>, vector<2x256xf32>
    %c14 = arith.constant 14 : index
    %c0_136 = arith.constant 0 : index
    %393 = vector.load %arg17[%c14, %c0_136] : memref<16x256xf32, #tpu.memory_space<vmem>>, vector<2x256xf32>
    tpu.vector_store %arg17[%c14, %c0_136], %392 {strides = array<i32>} : memref<16x256xf32, #tpu.memory_space<vmem>>, vector<2x256xf32>,
    %c0_137 = arith.constant 0 : index
    %c0_138 = arith.constant 0 : index
    %394 = vector.load %arg15[%c0_137, %c0_138] : memref<2x256xf32, #tpu.memory_space<vmem>>, vector<2x256xf32>
    %c0_139 = arith.constant 0 : index
    %c0_140 = arith.constant 0 : index
    %395 = vector.load %arg13[%c0_139, %c0_140] : memref<2x256xf32, #tpu.memory_space<vmem>>, vector<2x256xf32>
    tpu.vector_store %arg13[%c0_139, %c0_140], %394 {strides = array<i32>} : memref<2x256xf32, #tpu.memory_space<vmem>>, vector<2x256xf32>,
    %c0_141 = arith.constant 0 : index
    %c0_142 = arith.constant 0 : index
    %396 = vector.load %arg16[%c0_141, %c0_142] : memref<2x256xf32, #tpu.memory_space<vmem>>, vector<2x256xf32>
    %c0_143 = arith.constant 0 : index
    %c0_144 = arith.constant 0 : index
    %397 = vector.load %arg14[%c0_143, %c0_144] : memref<2x256xf32, #tpu.memory_space<vmem>>, vector<2x256xf32>
    tpu.vector_store %arg14[%c0_143, %c0_144], %396 {strides = array<i32>} : memref<2x256xf32, #tpu.memory_space<vmem>>, vector<2x256xf32>,
    %c0_145 = arith.constant 0 : index
    %c0_146 = arith.constant 0 : index
    %398 = vector.load %arg17[%c0_145, %c0_146] : memref<16x256xf32, #tpu.memory_space<vmem>>, vector<16x256xf32>
    %c0_147 = arith.constant 0 : index
    %c0_148 = arith.constant 0 : index
    %399 = vector.load %arg8[%c0_147, %c0_148] : memref<256x256xf32, #tpu.memory_space<vmem>>, vector<256x256xf32>
    %cst_149 = arith.constant dense<0.000000e+00> : vector<16x256xf32>
    %400 = tpu.matmul %398, %399, %cst_149 {dimension_numbers = #tpu.dot_dimension_numbers<[1], [0], [0], [1], [0, 0, 1, 1], [], []>} : vector<16x256xf32>, vector<256x256xf32>, vector<16x256xf32> -> vector<16x256xf32>
    %c0_150 = arith.constant 0 : index
    %c0_151 = arith.constant 0 : index
    %401 = vector.load %arg9[%c0_150, %c0_151] : memref<1x256xf32, #tpu.memory_space<vmem>>, vector<1x256xf32>
    %402 = vector.broadcast %401 : vector<1x256xf32> to vector<16x256xf32>
    %403 = arith.addf %400, %402 : vector<16x256xf32>
    %cst_152 = arith.constant 0.000000e+00 : f32
    %404 = vector.broadcast %cst_152 : f32 to vector<16x256xf32>
    %405 = arith.maximumf %403, %404 : vector<16x256xf32>
    %c0_153 = arith.constant 0 : index
    %c0_154 = arith.constant 0 : index
    %406 = vector.load %arg10[%c0_153, %c0_154] : memref<256x128xf32, #tpu.memory_space<vmem>>, vector<256x128xf32>
    %cst_155 = arith.constant dense<0.000000e+00> : vector<16x128xf32>
    %407 = tpu.matmul %405, %406, %cst_155 {dimension_numbers = #tpu.dot_dimension_numbers<[1], [0], [0], [1], [0, 0, 1, 1], [], []>} : vector<16x256xf32>, vector<256x128xf32>, vector<16x128xf32> -> vector<16x128xf32>
    %c0_156 = arith.constant 0 : index
    %c0_157 = arith.constant 0 : index
    %408 = vector.load %arg11[%c0_156, %c0_157] : memref<1x128xf32, #tpu.memory_space<vmem>>, vector<1x128xf32>
    %409 = vector.broadcast %408 : vector<1x128xf32> to vector<16x128xf32>
    %410 = arith.addf %407, %409 : vector<16x128xf32>
    %411 = tpu.iota {dimensions = array<i32: 1>} : vector<16x128xi32>
    %c4_i32_158 = arith.constant 4 : i32
    %412 = vector.broadcast %c4_i32_158 : i32 to vector<16x128xi32>
    %413 = arith.cmpi sge, %411, %412 : vector<16x128xi32>
    %c8_i32_159 = arith.constant 8 : i32
    %414 = vector.broadcast %c8_i32_159 : i32 to vector<16x128xi32>
    %415 = arith.cmpi slt, %411, %414 : vector<16x128xi32>
    %416 = arith.andi %413, %415 : vector<16x128xi1>
    %417 = math.tanh %410 : vector<16x128xf32>
    %cst_160 = arith.constant 1.000000e+00 : f32
    %418 = vector.broadcast %cst_160 : f32 to vector<16x128xf32>
    %419 = arith.addf %417, %418 : vector<16x128xf32>
    %cst_161 = arith.constant 3.500000e+00 : f32
    %420 = vector.broadcast %cst_161 : f32 to vector<16x128xf32>
    %421 = arith.mulf %420, %419 : vector<16x128xf32>
    %cst_162 = arith.constant -5.000000e+00 : f32
    %422 = vector.broadcast %cst_162 : f32 to vector<16x128xf32>
    %423 = arith.addf %422, %421 : vector<16x128xf32>
    %424 = arith.select %416, %423, %410 : vector<16x128xi1>, vector<16x128xf32>
    %c0_163 = arith.constant 0 : index
    %c0_164 = arith.constant 0 : index
    %425 = vector.load %arg12[%c0_163, %c0_164] : memref<16x128xf32, #tpu.memory_space<vmem>>, vector<16x128xf32>
    tpu.vector_store %arg12[%c0_163, %c0_164], %424 {strides = array<i32>} : memref<16x128xf32, #tpu.memory_space<vmem>>, vector<16x128xf32>,
    return
  }
  func.func @transform_0(%arg0: i32) -> (i32, i32) {
    %c0_i32 = arith.constant 0 : i32
    %c0_i32_0 = arith.constant 0 : i32
    return %arg0, %c0_i32 : i32, i32
  }
  func.func @transform_1(%arg0: i32) -> (i32, i32) {
    %c0_i32 = arith.constant 0 : i32
    %c0_i32_0 = arith.constant 0 : i32
    %c0_i32_1 = arith.constant 0 : i32
    return %c0_i32, %c0_i32_0 : i32, i32
  }
  func.func @transform_2(%arg0: i32) -> (i32, i32) {
    %c0_i32 = arith.constant 0 : i32
    %c0_i32_0 = arith.constant 0 : i32
    %c0_i32_1 = arith.constant 0 : i32
    return %c0_i32, %c0_i32_0 : i32, i32
  }
  func.func @transform_3(%arg0: i32) -> (i32, i32) {
    %c0_i32 = arith.constant 0 : i32
    %c0_i32_0 = arith.constant 0 : i32
    %c0_i32_1 = arith.constant 0 : i32
    return %c0_i32, %c0_i32_0 : i32, i32
  }
  func.func @transform_4(%arg0: i32) -> (i32, i32) {
    %c0_i32 = arith.constant 0 : i32
    %c0_i32_0 = arith.constant 0 : i32
    %c0_i32_1 = arith.constant 0 : i32
    return %c0_i32, %c0_i32_0 : i32, i32
  }
  func.func @transform_5(%arg0: i32) -> (i32, i32) {
    %c0_i32 = arith.constant 0 : i32
    %c0_i32_0 = arith.constant 0 : i32
    %c0_i32_1 = arith.constant 0 : i32
    return %c0_i32, %c0_i32_0 : i32, i32
  }
  func.func @transform_6(%arg0: i32) -> (i32, i32) {
    %c0_i32 = arith.constant 0 : i32
    %c0_i32_0 = arith.constant 0 : i32
    %c0_i32_1 = arith.constant 0 : i32
    return %c0_i32, %c0_i32_0 : i32, i32
  }
  func.func @transform_7(%arg0: i32) -> (i32, i32) {
    %c0_i32 = arith.constant 0 : i32
    %c0_i32_0 = arith.constant 0 : i32
    %c0_i32_1 = arith.constant 0 : i32
    return %c0_i32, %c0_i32_0 : i32, i32
  }
  func.func @transform_8(%arg0: i32) -> (i32, i32) {
    %c0_i32 = arith.constant 0 : i32
    %c0_i32_0 = arith.constant 0 : i32
    %c0_i32_1 = arith.constant 0 : i32
    return %c0_i32, %c0_i32_0 : i32, i32
  }
  func.func @transform_9(%arg0: i32) -> (i32, i32) {
    %c0_i32 = arith.constant 0 : i32
    %c0_i32_0 = arith.constant 0 : i32
    %c0_i32_1 = arith.constant 0 : i32
    return %c0_i32, %c0_i32_0 : i32, i32
  }
  func.func @transform_10(%arg0: i32) -> (i32, i32) {
    %c0_i32 = arith.constant 0 : i32
    %c0_i32_0 = arith.constant 0 : i32
    %c0_i32_1 = arith.constant 0 : i32
    return %c0_i32, %c0_i32_0 : i32, i32
  }
  func.func @transform_11(%arg0: i32) -> (i32, i32) {
    %c0_i32 = arith.constant 0 : i32
    %c0_i32_0 = arith.constant 0 : i32
    return %arg0, %c0_i32 : i32, i32
  }
  func.func @transform_12(%arg0: i32) -> (i32, i32) {
    %c0_i32 = arith.constant 0 : i32
    %c0_i32_0 = arith.constant 0 : i32
    %c0_i32_1 = arith.constant 0 : i32
    return %c0_i32, %c0_i32_0 : i32, i32
  }
  func.func @transform_13(%arg0: i32) -> (i32, i32) {
    %c0_i32 = arith.constant 0 : i32
    %c0_i32_0 = arith.constant 0 : i32
    %c0_i32_1 = arith.constant 0 : i32
    return %c0_i32, %c0_i32_0 : i32, i32
  }
}

</mosaic_0001>

<llo_original>
// kernel: tpu_custom_call.1
$region0: #{tpu_custom_call.1}
  #allocation0 [shape = 'u32[]', space=smem, size = 0x4, offset = 0x4, fixed_abs, tag = 'smem constant byte address 0x4 - core index']
  #allocation1 [shape = 'u32[144,128]{1,0:T(1,128)}', space=vmem, size = 0x12000, scoped, tag = 'internal scratch']
  #allocation2 [shape = 'f32[2,256]{1,0:T(2,128)}', space=vmem, size = 0x800, scoped, tag = 'scratch operand']
  #allocation3 [shape = 'f32[2,256]{1,0:T(2,128)}', space=vmem, size = 0x800, scoped, tag = 'scratch operand']
  #allocation4 [shape = 'f32[16,256]{1,0:T(8,128)}', space=vmem, size = 0x4000, scoped, tag = 'scratch operand']
  %s0 = inlined_call_operand.hbm [shape: f32[16,16], index: 0, kind: input, shape index: {}]
  %s1 = inlined_call_operand.vmem [shape: s32[2,1], index: 1, kind: input, shape index: {}]
  %s2 = inlined_call_operand.hbm [shape: f32[16,256], index: 2, kind: input, shape index: {}]
  %s3 = inlined_call_operand.vmem [shape: f32[1,256], index: 3, kind: input, shape index: {}]
  %s4 = inlined_call_operand.hbm [shape: f32[256,1024], index: 4, kind: input, shape index: {}]
  %s5 = inlined_call_operand.vmem [shape: f32[1,1024], index: 5, kind: input, shape index: {}]
  %s6 = inlined_call_operand.hbm [shape: f32[256,1024], index: 6, kind: input, shape index: {}]
  %s7 = inlined_call_operand.hbm [shape: f32[256,256], index: 7, kind: input, shape index: {}]
  %s8 = inlined_call_operand.vmem [shape: f32[1,256], index: 8, kind: input, shape index: {}]
  %s9 = inlined_call_operand.hbm [shape: f32[256,128], index: 9, kind: input, shape index: {}]
  %s10 = inlined_call_operand.vmem [shape: f32[1,128], index: 10, kind: input, shape index: {}]
  %s11 = inlined_call_operand.hbm [shape: f32[16,128], index: 11, kind: output, shape index: {0}]
  %s12 = inlined_call_operand.hbm [shape: f32[2,256], index: 12, kind: output, shape index: {1}]
  %s13 = inlined_call_operand.hbm [shape: f32[2,256], index: 13, kind: output, shape index: {2}]
  %14 = xla_tuple %s11, %s12, %s13
  %s15 = sld [smem:[#allocation0]]
  $region98: #{tpu_custom_call.1} parent=0
    _
  %s17 = ssub.s32 1, %s15
  %s18 = scalar_select 0, %s17, %s15
  $region1: #{tpu_custom_call.1} parent=0
    #allocation5 [shape = 'u8[8192]{0}', space=vmem, size = 0x2000, scoped, tag = 'input window, operand 0, single buffered']
    #allocation6 [shape = 's32[1]{0}', space=sflag, size = 0x4, scoped, tag = 'scoped memory for tpu_custom_call.1']
    #allocation7 [shape = 's32[1]{0}', space=sflag, size = 0x4, scoped, tag = 'scoped memory for tpu_custom_call.1']
    #allocation8 [shape = 'u8[16384]{0}', space=vmem, size = 0x4000, scoped, tag = 'input window, operand 2, single buffered']
    #allocation9 [shape = 's32[1]{0}', space=sflag, size = 0x4, scoped, tag = 'scoped memory for tpu_custom_call.1']
    #allocation10 [shape = 'u8[1048576]{0}', space=vmem, size = 0x100000, scoped, tag = 'input window, operand 4, single buffered']
    #allocation11 [shape = 'u8[1048576]{0}', space=vmem, size = 0x100000, scoped, tag = 'input window, operand 6, single buffered']
    #allocation12 [shape = 's32[1]{0}', space=sflag, size = 0x4, scoped, tag = 'scoped memory for tpu_custom_call.1']
    #allocation13 [shape = 'u8[262144]{0}', space=vmem, size = 0x40000, scoped, tag = 'input window, operand 7, single buffered']
    #allocation14 [shape = 'u8[131072]{0}', space=vmem, size = 0x20000, scoped, tag = 'input window, operand 9, single buffered']
    #allocation15 [shape = 's32[1]{0}', space=sflag, size = 0x4, scoped, tag = 'scoped memory for tpu_custom_call.1']
    #allocation16 [shape = 'u8[8192]{0}', space=vmem, size = 0x2000, scoped, tag = 'output window, operand 0, single buffered']
    #allocation17 [shape = 'u8[2048]{0}', space=vmem, size = 0x800, scoped, tag = 'output window, operand 1, single buffered']
    #allocation18 [shape = 's32[1]{0}', space=sflag, size = 0x4, scoped, tag = 'scoped memory for tpu_custom_call.1']
    #allocation19 [shape = 'u8[2048]{0}', space=vmem, size = 0x800, scoped, tag = 'output window, operand 2, single buffered']
    %19 = vsyncpa [#allocation6], 0
    %20 = vsyncpa [#allocation9], 0
    %21 = vsyncpa [#allocation12], 0
    %22 = vsyncpa [#allocation15], 0
    %23 = vsyncpa [#allocation7], 0
    %24 = vsyncpa [#allocation18], 0
    // Predicated region
    $region2: #{tpu_custom_call.1} parent=1 // pred_check
      _
    $region3: #{tpu_custom_call.1} parent=1 // pred_check_branch
      %26 = sbr.rel (0) target = $region5
    $region4: #{tpu_custom_call.1} parent=1 // pred_region
      %s28 = ssub.s32 256, 256
      %29 = vsyncadd [#allocation6], %s28
      %s30 = sshll.u32 [#allocation5], 4
      %s31 = int_to_ptr.vmem [resolvable:$true] %s30
      %36 = dma.hbm_to_vmem [thread:$0]  %s0, 256, %s31, [#allocation6], 128, 128, 8
    $region5: #{tpu_custom_call.1} parent=1 // pred_fallthru
      _
    // Predicated region
    $region6: #{tpu_custom_call.1} parent=1 // pred_check
      _
    $region7: #{tpu_custom_call.1} parent=1 // pred_check_branch
      %38 = sbr.rel (0) target = $region9
    $region8: #{tpu_custom_call.1} parent=1 // pred_region
      _
    $region9: #{tpu_custom_call.1} parent=1 // pred_fallthru
      _
    // Predicated region
    $region10: #{tpu_custom_call.1} parent=1 // pred_check
      _
    $region11: #{tpu_custom_call.1} parent=1 // pred_check_branch
      %40 = sbr.rel (0) target = $region13
    $region12: #{tpu_custom_call.1} parent=1 // pred_region
      %s42 = ssub.s32 512, 512
      %43 = vsyncadd [#allocation9], %s42
      %s44 = sshll.u32 [#allocation8], 4
      %s45 = int_to_ptr.vmem [resolvable:$true] %s44
      %50 = dma.hbm_to_vmem [thread:$0]  %s2, 512, %s45, [#allocation9], 256, 256, 16
    $region13: #{tpu_custom_call.1} parent=1 // pred_fallthru
      _
    // Predicated region
    $region14: #{tpu_custom_call.1} parent=1 // pred_check
      _
    $region15: #{tpu_custom_call.1} parent=1 // pred_check_branch
      %52 = sbr.rel (0) target = $region17
    $region16: #{tpu_custom_call.1} parent=1 // pred_region
      _
    $region17: #{tpu_custom_call.1} parent=1 // pred_fallthru
      _
    // Predicated region
    $region18: #{tpu_custom_call.1} parent=1 // pred_check
      _
    $region19: #{tpu_custom_call.1} parent=1 // pred_check_branch
      %54 = sbr.rel (0) target = $region21
    $region20: #{tpu_custom_call.1} parent=1 // pred_region
      %s56 = ssub.s32 32768, 32768
      %57 = vsyncadd [#allocation9], %s56
      %s58 = sshll.u32 [#allocation10], 4
      %s59 = int_to_ptr.vmem [resolvable:$true] %s58
      %64 = dma.hbm_to_vmem [thread:$0]  %s4, 32768, %s59, [#allocation9], 1024, 1024, 64
    $region21: #{tpu_custom_call.1} parent=1 // pred_fallthru
      _
    // Predicated region
    $region22: #{tpu_custom_call.1} parent=1 // pred_check
      _
    $region23: #{tpu_custom_call.1} parent=1 // pred_check_branch
      %66 = sbr.rel (0) target = $region25
    $region24: #{tpu_custom_call.1} parent=1 // pred_region
      _
    $region25: #{tpu_custom_call.1} parent=1 // pred_fallthru
      _
    // Predicated region
    $region26: #{tpu_custom_call.1} parent=1 // pred_check
      _
    $region27: #{tpu_custom_call.1} parent=1 // pred_check_branch
      %68 = sbr.rel (0) target = $region29
    $region28: #{tpu_custom_call.1} parent=1 // pred_region
      %s70 = ssub.s32 32768, 32768
      %71 = vsyncadd [#allocation12], %s70
      %s72 = sshll.u32 [#allocation11], 4
      %s73 = int_to_ptr.vmem [resolvable:$true] %s72
      %78 = dma.hbm_to_vmem [thread:$0]  %s6, 32768, %s73, [#allocation12], 1024, 1024, 64
    $region29: #{tpu_custom_call.1} parent=1 // pred_fallthru
      _
    // Predicated region
    $region30: #{tpu_custom_call.1} parent=1 // pred_check
      _
    $region31: #{tpu_custom_call.1} parent=1 // pred_check_branch
      %80 = sbr.rel (0) target = $region33
    $region32: #{tpu_custom_call.1} parent=1 // pred_region
      %s82 = ssub.s32 8192, 8192
      %83 = vsyncadd [#allocation12], %s82
      %s84 = sshll.u32 [#allocation13], 4
      %s85 = int_to_ptr.vmem [resolvable:$true] %s84
      %90 = dma.hbm_to_vmem [thread:$0]  %s7, 8192, %s85, [#allocation12], 256, 256, 16
    $region33: #{tpu_custom_call.1} parent=1 // pred_fallthru
      _
    // Predicated region
    $region34: #{tpu_custom_call.1} parent=1 // pred_check
      _
    $region35: #{tpu_custom_call.1} parent=1 // pred_check_branch
      %92 = sbr.rel (0) target = $region37
    $region36: #{tpu_custom_call.1} parent=1 // pred_region
      _
    $region37: #{tpu_custom_call.1} parent=1 // pred_fallthru
      _
    // Predicated region
    $region38: #{tpu_custom_call.1} parent=1 // pred_check
      _
    $region39: #{tpu_custom_call.1} parent=1 // pred_check_branch
      %94 = sbr.rel (0) target = $region41
    $region40: #{tpu_custom_call.1} parent=1 // pred_region
      %s96 = ssub.s32 4096, 4096
      %97 = vsyncadd [#allocation15], %s96
      %s98 = sshll.u32 [#allocation14], 4
      %s99 = int_to_ptr.vmem [resolvable:$true] %s98
      %104 = dma.hbm_to_vmem [thread:$0]  %s9, 4096, %s99, [#allocation15], 128, 128, 8
    $region41: #{tpu_custom_call.1} parent=1 // pred_fallthru
      _
    // Predicated region
    $region42: #{tpu_custom_call.1} parent=1 // pred_check
      _
    $region43: #{tpu_custom_call.1} parent=1 // pred_check_branch
      %106 = sbr.rel (0) target = $region45
    $region44: #{tpu_custom_call.1} parent=1 // pred_region
      _
    $region45: #{tpu_custom_call.1} parent=1 // pred_fallthru
      _
    // Predicated region
    $region46: #{tpu_custom_call.1} parent=1 // pred_check
      _
    $region47: #{tpu_custom_call.1} parent=1 // pred_check_branch
      %108 = sbr.rel (0) target = $region49
    $region48: #{tpu_custom_call.1} parent=1 // pred_region
      %109 = dma.done [#allocation6], 256
    $region49: #{tpu_custom_call.1} parent=1 // pred_fallthru
      _
    // Predicated region
    $region50: #{tpu_custom_call.1} parent=1 // pred_check
      _
    $region51: #{tpu_custom_call.1} parent=1 // pred_check_branch
      %111 = sbr.rel (0) target = $region53
    $region52: #{tpu_custom_call.1} parent=1 // pred_region
      %112 = dma.done [#allocation9], 512
    $region53: #{tpu_custom_call.1} parent=1 // pred_fallthru
      _
    // Predicated region
    $region54: #{tpu_custom_call.1} parent=1 // pred_check
      _
    $region55: #{tpu_custom_call.1} parent=1 // pred_check_branch
      %114 = sbr.rel (0) target = $region57
    $region56: #{tpu_custom_call.1} parent=1 // pred_region
      %115 = dma.done [#allocation9], 32768
    $region57: #{tpu_custom_call.1} parent=1 // pred_fallthru
      _
    // Predicated region
    $region58: #{tpu_custom_call.1} parent=1 // pred_check
      _
    $region59: #{tpu_custom_call.1} parent=1 // pred_check_branch
      %117 = sbr.rel (0) target = $region61
    $region60: #{tpu_custom_call.1} parent=1 // pred_region
      %118 = dma.done [#allocation12], 32768
    $region61: #{tpu_custom_call.1} parent=1 // pred_fallthru
      _
    // Predicated region
    $region62: #{tpu_custom_call.1} parent=1 // pred_check
      _
    $region63: #{tpu_custom_call.1} parent=1 // pred_check_branch
      %120 = sbr.rel (0) target = $region65
    $region64: #{tpu_custom_call.1} parent=1 // pred_region
      %121 = dma.done [#allocation12], 8192
    $region65: #{tpu_custom_call.1} parent=1 // pred_fallthru
      _
    // Predicated region
    $region66: #{tpu_custom_call.1} parent=1 // pred_check
      _
    $region67: #{tpu_custom_call.1} parent=1 // pred_check_branch
      %123 = sbr.rel (0) target = $region69
    $region68: #{tpu_custom_call.1} parent=1 // pred_region
      %124 = dma.done [#allocation15], 4096
    $region69: #{tpu_custom_call.1} parent=1 // pred_fallthru
      _
    %p125 = scmp.eq.s32.totalorder 0, 0
    // Predicated region
    $region70: #{tpu_custom_call.1} parent=1 // pred_check
      %p126 = pneg %p125
    $region71: #{tpu_custom_call.1} parent=1 // pred_check_branch
      %128 = sbr.rel (%p126) target = $region73
    $region72: #{tpu_custom_call.1} parent=1 // pred_region
      %129 = vst [vmem:[#allocation2] sm:$0xf] 0.0
      %130 = vst [vmem:[#allocation3] sm:$0xf] 0.0
    $region73: #{tpu_custom_call.1} parent=1 // pred_fallthru
      _
    %v131 = vld [vmem:[#allocation5] sm:$0xff]
    %v132 = vld [vmem:[#allocation5 + $0x8] sm:$0xff]
    %v133 = vld [vmem:[#allocation8] sm:$0xff]
    %v134 = vld [vmem:[#allocation8 + $0x8] sm:$0xff]
    %v135 = vld [vmem:[#allocation8 + $0x10] sm:$0xff]
    %v136 = vld [vmem:[#allocation8 + $0x18] sm:$0xff]
    %v137 = vld [vmem:[%s3] sm:$0x3]
    %v139 = vlaneseq
    %v140 = vshrl.u32 %v139, 7
    %v141 = vsub.s32 0, %v140
    %v142 = vrot.slane %v137, %v141
    %v143 = vlaneseq
    %v144 = vshrl.u32 %v143, 7
    %v145 = vsub.s32 1, %v144
    %v146 = vrot.slane %v137, %v145
    %vm149 = vcmask 130048
    %v151 = vsel %vm149, %v131, 0
    %v154 = vsel %vm149, %v132, 0
    %156 = vmatprep.subr.mxu0 %v134
    %157 = vmatpush1.msra.mxu0 %v133
    %158 = vmatprep.subr.mxu0 %v136
    %159 = vmatpush1.msra.mxu0 %v135
    %160 = vmatprep.subr.mxu0 0.0
    %161 = vmatpush1.msra.mxu0 0.0
    %162 = vmatprep.subr.mxu0 0.0
    %163 = vmatpush1.msra.mxu0 0.0
    %164 = vmatprep.subr.mxu0 0.0
    %165 = vmatpush1.msra.mxu0 0.0
    %166 = vmatprep.subr.mxu0 0.0
    %167 = vmatpush1.msra.mxu0 0.0
    %168 = vmatprep.subr.mxu0 0.0
    %169 = vmatpush1.msra.mxu0 0.0
    %170 = vmatprep.subr.mxu0 0.0
    %171 = vmatpush1.msra.mxu0 0.0
    %172 = vmatprep.subr.mxu0 0.0
    %173 = vmatpush1.msra.mxu0 0.0
    %174 = vmatprep.subr.mxu0 0.0
    %175 = vmatpush1.msra.mxu0 0.0
    %176 = vmatprep.subr.mxu0 0.0
    %177 = vmatpush1.msra.mxu0 0.0
    %178 = vmatprep.subr.mxu0 0.0
    %179 = vmatpush1.msra.mxu0 0.0
    %180 = vmatprep.subr.mxu0 0.0
    %181 = vmatpush1.msra.mxu0 0.0
    %182 = vmatprep.subr.mxu0 0.0
    %183 = vmatpush1.msra.mxu0 0.0
    %184 = vmatprep.subr.mxu0 0.0
    %185 = vmatpush1.msra.mxu0 0.0
    %186 = vmatprep.subr.mxu0 0.0
    %187 = vmatpush1.msra.mxu0 0.0
    %188 = vmatprep.subr.mxu0 0.0
    %189 = vmatpush1.msra.mxu0 0.0
    %190 = vmatprep.subr.mxu0 0.0
    %191 = vmatpush1.msra.mxu0 0.0
    %192 = vmatprep.subr.mxu0 0.0
    %193 = vmatpush1.msra.mxu0 0.0
    %194 = vmatprep.subr.mxu0 0.0
    %195 = vmatpush1.msra.mxu0 0.0
    %196 = vmatprep.subr.mxu0 0.0
    %197 = vmatpush1.msra.mxu0 0.0
    %198 = vmatprep.subr.mxu0 0.0
    %199 = vmatpush1.msra.mxu0 0.0
    %200 = vmatprep.subr.mxu0 0.0
    %201 = vmatpush1.msra.mxu0 0.0
    %202 = vmatprep.subr.mxu0 0.0
    %203 = vmatpush1.msra.mxu0 0.0
    %204 = vmatprep.subr.mxu0 0.0
    %205 = vmatpush1.msra.mxu0 0.0
    %206 = vmatprep.subr.mxu0 0.0
    %207 = vmatpush1.msra.mxu0 0.0
    %208 = vmatprep.subr.mxu0 0.0
    %209 = vmatpush1.msra.mxu0 0.0
    %210 = vmatprep.subr.mxu0 0.0
    %211 = vmatpush1.msra.mxu0 0.0
    %212 = vmatprep.subr.mxu0 0.0
    %213 = vmatpush1.msra.mxu0 0.0
    %214 = vmatprep.subr.mxu0 0.0
    %215 = vmatpush1.msra.mxu0 0.0
    %216 = vmatprep.subr.mxu0 0.0
    %217 = vmatpush1.msra.mxu0 0.0
    %218 = vmatprep.subr.mxu0 0.0
    %219 = vmatpush1.msra.mxu0 0.0
    %220 = vmatprep.mubr.f32.mxu0 0.0
    %221 = vmatmul.mubr.f32.gmra.mrb[0].mxu0 %v151
    %v222 = vpop.f32.mrb[0].mxu0
    %v223 = vadd.f32 %v142, %v222
    %v224 = vpop.f32.mrb[0].mxu0
    %v225 = vadd.f32 %v146, %v224
    %226 = vmatprep.mubr.f32.mxu0 0.0
    %227 = vmatmul.mubr.f32.gmra.mrb[0].mxu0 %v154
    %v228 = vpop.f32.mrb[0].mxu0
    %v229 = vadd.f32 %v142, %v228
    %v230 = vpop.f32.mrb[0].mxu0
    %v231 = vadd.f32 %v146, %v230
    %232 = vdwg.mxu0
    %v233 = vmax.f32 %v223, 0.0
    %v234 = vmax.f32 %v225, 0.0
    %v235 = vmax.f32 %v229, 0.0
    %v236 = vmax.f32 %v231, 0.0
    %v237 = vld [vmem:[#allocation10] sm:$0xff]
    %v238 = vld [vmem:[#allocation10 + $0x8] sm:$0xff]
    %v239 = vld [vmem:[#allocation10 + $0x10] sm:$0xff]
    %v240 = vld [vmem:[#allocation10 + $0x18] sm:$0xff]
    %v241 = vld [vmem:[#allocation10 + $0x20] sm:$0xff]
    %v242 = vld [vmem:[#allocation10 + $0x28] sm:$0xff]
    %v243 = vld [vmem:[#allocation10 + $0x30] sm:$0xff]
    %v244 = vld [vmem:[#allocation10 + $0x38] sm:$0xff]
    %v245 = vld [vmem:[#allocation10 + $0x40] sm:$0xff]
    %v246 = vld [vmem:[#allocation10 + $0x48] sm:$0xff]
    %v247 = vld [vmem:[#allocation10 + $0x50] sm:$0xff]
    %v248 = vld [vmem:[#allocation10 + $0x58] sm:$0xff]
    %v249 = vld [vmem:[#allocation10 + $0x60] sm:$0xff]
    %v250 = vld [vmem:[#allocation10 + $0x68] sm:$0xff]
    %v251 = vld [vmem:[#allocation10 + $0x70] sm:$0xff]
    %v252 = vld [vmem:[#allocation10 + $0x78] sm:$0xff]
    %v253 = vld [vmem:[#allocation10 + $0x80] sm:$0xff]
    %v254 = vld [vmem:[#allocation10 + $0x88] sm:$0xff]
    %v255 = vld [vmem:[#allocation10 + $0x90] sm:$0xff]
    %v256 = vld [vmem:[#allocation10 + $0x98] sm:$0xff]
    %v257 = vld [vmem:[#allocation10 + $0xa0] sm:$0xff]
    %v258 = vld [vmem:[#allocation10 + $0xa8] sm:$0xff]
    %v259 = vld [vmem:[#allocation10 + $0xb0] sm:$0xff]
    %v260 = vld [vmem:[#allocation10 + $0xb8] sm:$0xff]
    %v261 = vld [vmem:[#allocation10 + $0xc0] sm:$0xff]
    %v262 = vld [vmem:[#allocation10 + $0xc8] sm:$0xff]
    %v263 = vld [vmem:[#allocation10 + $0xd0] sm:$0xff]
    %v264 = vld [vmem:[#allocation10 + $0xd8] sm:$0xff]
    %v265 = vld [vmem:[#allocation10 + $0xe0] sm:$0xff]
    %v266 = vld [vmem:[#allocation10 + $0xe8] sm:$0xff]
    %v267 = vld [vmem:[#allocation10 + $0xf0] sm:$0xff]
    %v268 = vld [vmem:[#allocation10 + $0xf8] sm:$0xff]
    %v269 = vld [vmem:[#allocation10 + $0x100] sm:$0xff]
    %v270 = vld [vmem:[#allocation10 + $0x108] sm:$0xff]
    %v271 = vld [vmem:[#allocation10 + $0x110] sm:$0xff]
    %v272 = vld [vmem:[#allocation10 + $0x118] sm:$0xff]
    %v273 = vld [vmem:[#allocation10 + $0x120] sm:$0xff]
    %v274 = vld [vmem:[#allocation10 + $0x128] sm:$0xff]
    %v275 = vld [vmem:[#allocation10 + $0x130] sm:$0xff]
    %v276 = vld [vmem:[#allocation10 + $0x138] sm:$0xff]
    %v277 = vld [vmem:[#allocation10 + $0x140] sm:$0xff]
    %v278 = vld [vmem:[#allocation10 + $0x148] sm:$0xff]
    %v279 = vld [vmem:[#allocation10 + $0x150] sm:$0xff]
    %v280 = vld [vmem:[#allocation10 + $0x158] sm:$0xff]
    %v281 = vld [vmem:[#allocation10 + $0x160] sm:$0xff]
    %v282 = vld [vmem:[#allocation10 + $0x168] sm:$0xff]
    %v283 = vld [vmem:[#allocation10 + $0x170] sm:$0xff]
    %v284 = vld [vmem:[#allocation10 + $0x178] sm:$0xff]
    %v285 = vld [vmem:[#allocation10 + $0x180] sm:$0xff]
    %v286 = vld [vmem:[#allocation10 + $0x188] sm:$0xff]
    %v287 = vld [vmem:[#allocation10 + $0x190] sm:$0xff]
    %v288 = vld [vmem:[#allocation10 + $0x198] sm:$0xff]
    %v289 = vld [vmem:[#allocation10 + $0x1a0] sm:$0xff]
    %v290 = vld [vmem:[#allocation10 + $0x1a8] sm:$0xff]
    %v291 = vld [vmem:[#allocation10 + $0x1b0] sm:$0xff]
    %v292 = vld [vmem:[#allocation10 + $0x1b8] sm:$0xff]
    %v293 = vld [vmem:[#allocation10 + $0x1c0] sm:$0xff]
    %v294 = vld [vmem:[#allocation10 + $0x1c8] sm:$0xff]
    %v295 = vld [vmem:[#allocation10 + $0x1d0] sm:$0xff]
    %v296 = vld [vmem:[#allocation10 + $0x1d8] sm:$0xff]
    %v297 = vld [vmem:[#allocation10 + $0x1e0] sm:$0xff]
    %v298 = vld [vmem:[#allocation10 + $0x1e8] sm:$0xff]
    %v299 = vld [vmem:[#allocation10 + $0x1f0] sm:$0xff]
    %v300 = vld [vmem:[#allocation10 + $0x1f8] sm:$0xff]
    %v301 = vld [vmem:[#allocation10 + $0x200] sm:$0xff]
    %v302 = vld [vmem:[#allocation10 + $0x208] sm:$0xff]
    %v303 = vld [vmem:[#allocation10 + $0x210] sm:$0xff]
    %v304 = vld [vmem:[#allocation10 + $0x218] sm:$0xff]
    %v305 = vld [vmem:[#allocation10 + $0x220] sm:$0xff]
    %v306 = vld [vmem:[#allocation10 + $0x228] sm:$0xff]
    %v307 = vld [vmem:[#allocation10 + $0x230] sm:$0xff]
    %v308 = vld [vmem:[#allocation10 + $0x238] sm:$0xff]
    %v309 = vld [vmem:[#allocation10 + $0x240] sm:$0xff]
    %v310 = vld [vmem:[#allocation10 + $0x248] sm:$0xff]
    %v311 = vld [vmem:[#allocation10 + $0x250] sm:$0xff]
    %v312 = vld [vmem:[#allocation10 + $0x258] sm:$0xff]
    %v313 = vld [vmem:[#allocation10 + $0x260] sm:$0xff]
    %v314 = vld [vmem:[#allocation10 + $0x268] sm:$0xff]
    %v315 = vld [vmem:[#allocation10 + $0x270] sm:$0xff]
    %v316 = vld [vmem:[#allocation10 + $0x278] sm:$0xff]
    %v317 = vld [vmem:[#allocation10 + $0x280] sm:$0xff]
    %v318 = vld [vmem:[#allocation10 + $0x288] sm:$0xff]
    %v319 = vld [vmem:[#allocation10 + $0x290] sm:$0xff]
    %v320 = vld [vmem:[#allocation10 + $0x298] sm:$0xff]
    %v321 = vld [vmem:[#allocation10 + $0x2a0] sm:$0xff]
    %v322 = vld [vmem:[#allocation10 + $0x2a8] sm:$0xff]
    %v323 = vld [vmem:[#allocation10 + $0x2b0] sm:$0xff]
    %v324 = vld [vmem:[#allocation10 + $0x2b8] sm:$0xff]
    %v325 = vld [vmem:[#allocation10 + $0x2c0] sm:$0xff]
    %v326 = vld [vmem:[#allocation10 + $0x2c8] sm:$0xff]
    %v327 = vld [vmem:[#allocation10 + $0x2d0] sm:$0xff]
    %v328 = vld [vmem:[#allocation10 + $0x2d8] sm:$0xff]
    %v329 = vld [vmem:[#allocation10 + $0x2e0] sm:$0xff]
    %v330 = vld [vmem:[#allocation10 + $0x2e8] sm:$0xff]
    %v331 = vld [vmem:[#allocation10 + $0x2f0] sm:$0xff]
    %v332 = vld [vmem:[#allocation10 + $0x2f8] sm:$0xff]
    %v333 = vld [vmem:[#allocation10 + $0x300] sm:$0xff]
    %v334 = vld [vmem:[#allocation10 + $0x308] sm:$0xff]
    %v335 = vld [vmem:[#allocation10 + $0x310] sm:$0xff]
    %v336 = vld [vmem:[#allocation10 + $0x318] sm:$0xff]
    %v337 = vld [vmem:[#allocation10 + $0x320] sm:$0xff]
    %v338 = vld [vmem:[#allocation10 + $0x328] sm:$0xff]
    %v339 = vld [vmem:[#allocation10 + $0x330] sm:$0xff]
    %v340 = vld [vmem:[#allocation10 + $0x338] sm:$0xff]
    %v341 = vld [vmem:[#allocation10 + $0x340] sm:$0xff]
    %v342 = vld [vmem:[#allocation10 + $0x348] sm:$0xff]
    %v343 = vld [vmem:[#allocation10 + $0x350] sm:$0xff]
    %v344 = vld [vmem:[#allocation10 + $0x358] sm:$0xff]
    %v345 = vld [vmem:[#allocation10 + $0x360] sm:$0xff]
    %v346 = vld [vmem:[#allocation10 + $0x368] sm:$0xff]
    %v347 = vld [vmem:[#allocation10 + $0x370] sm:$0xff]
    %v348 = vld [vmem:[#allocation10 + $0x378] sm:$0xff]
    %v349 = vld [vmem:[#allocation10 + $0x380] sm:$0xff]
    %v350 = vld [vmem:[#allocation10 + $0x388] sm:$0xff]
    %v351 = vld [vmem:[#allocation10 + $0x390] sm:$0xff]
    %v352 = vld [vmem:[#allocation10 + $0x398] sm:$0xff]
    %v353 = vld [vmem:[#allocation10 + $0x3a0] sm:$0xff]
    %v354 = vld [vmem:[#allocation10 + $0x3a8] sm:$0xff]
    %v355 = vld [vmem:[#allocation10 + $0x3b0] sm:$0xff]
    %v356 = vld [vmem:[#allocation10 + $0x3b8] sm:$0xff]
    %v357 = vld [vmem:[#allocation10 + $0x3c0] sm:$0xff]
    %v358 = vld [vmem:[#allocation10 + $0x3c8] sm:$0xff]
    %v359 = vld [vmem:[#allocation10 + $0x3d0] sm:$0xff]
    %v360 = vld [vmem:[#allocation10 + $0x3d8] sm:$0xff]
    %v361 = vld [vmem:[#allocation10 + $0x3e0] sm:$0xff]
    %v362 = vld [vmem:[#allocation10 + $0x3e8] sm:$0xff]
    %v363 = vld [vmem:[#allocation10 + $0x3f0] sm:$0xff]
    %v364 = vld [vmem:[#allocation10 + $0x3f8] sm:$0xff]
    %v365 = vld [vmem:[#allocation10 + $0x400] sm:$0xff]
    %v366 = vld [vmem:[#allocation10 + $0x408] sm:$0xff]
    %v367 = vld [vmem:[#allocation10 + $0x410] sm:$0xff]
    %v368 = vld [vmem:[#allocation10 + $0x418] sm:$0xff]
    %v369 = vld [vmem:[#allocation10 + $0x420] sm:$0xff]
    %v370 = vld [vmem:[#allocation10 + $0x428] sm:$0xff]
    %v371 = vld [vmem:[#allocation10 + $0x430] sm:$0xff]
    %v372 = vld [vmem:[#allocation10 + $0x438] sm:$0xff]
    %v373 = vld [vmem:[#allocation10 + $0x440] sm:$0xff]
    %v374 = vld [vmem:[#allocation10 + $0x448] sm:$0xff]
    %v375 = vld [vmem:[#allocation10 + $0x450] sm:$0xff]
    %v376 = vld [vmem:[#allocation10 + $0x458] sm:$0xff]
    %v377 = vld [vmem:[#allocation10 + $0x460] sm:$0xff]
    %v378 = vld [vmem:[#allocation10 + $0x468] sm:$0xff]
    %v379 = vld [vmem:[#allocation10 + $0x470] sm:$0xff]
    %v380 = vld [vmem:[#allocation10 + $0x478] sm:$0xff]
    %v381 = vld [vmem:[#allocation10 + $0x480] sm:$0xff]
    %v382 = vld [vmem:[#allocation10 + $0x488] sm:$0xff]
    %v383 = vld [vmem:[#allocation10 + $0x490] sm:$0xff]
    %v384 = vld [vmem:[#allocation10 + $0x498] sm:$0xff]
    %v385 = vld [vmem:[#allocation10 + $0x4a0] sm:$0xff]
    %v386 = vld [vmem:[#allocation10 + $0x4a8] sm:$0xff]
    %v387 = vld [vmem:[#allocation10 + $0x4b0] sm:$0xff]
    %v388 = vld [vmem:[#allocation10 + $0x4b8] sm:$0xff]
    %v389 = vld [vmem:[#allocation10 + $0x4c0] sm:$0xff]
    %v390 = vld [vmem:[#allocation10 + $0x4c8] sm:$0xff]
    %v391 = vld [vmem:[#allocation10 + $0x4d0] sm:$0xff]
    %v392 = vld [vmem:[#allocation10 + $0x4d8] sm:$0xff]
    %v393 = vld [vmem:[#allocation10 + $0x4e0] sm:$0xff]
    %v394 = vld [vmem:[#allocation10 + $0x4e8] sm:$0xff]
    %v395 = vld [vmem:[#allocation10 + $0x4f0] sm:$0xff]
    %v396 = vld [vmem:[#allocation10 + $0x4f8] sm:$0xff]
    %v397 = vld [vmem:[#allocation10 + $0x500] sm:$0xff]
    %v398 = vld [vmem:[#allocation10 + $0x508] sm:$0xff]
    %v399 = vld [vmem:[#allocation10 + $0x510] sm:$0xff]
    %v400 = vld [vmem:[#allocation10 + $0x518] sm:$0xff]
    %v401 = vld [vmem:[#allocation10 + $0x520] sm:$0xff]
    %v402 = vld [vmem:[#allocation10 + $0x528] sm:$0xff]
    %v403 = vld [vmem:[#allocation10 + $0x530] sm:$0xff]
    %v404 = vld [vmem:[#allocation10 + $0x538] sm:$0xff]
    %v405 = vld [vmem:[#allocation10 + $0x540] sm:$0xff]
    %v406 = vld [vmem:[#allocation10 + $0x548] sm:$0xff]
    %v407 = vld [vmem:[#allocation10 + $0x550] sm:$0xff]
    %v408 = vld [vmem:[#allocation10 + $0x558] sm:$0xff]
    %v409 = vld [vmem:[#allocation10 + $0x560] sm:$0xff]
    %v410 = vld [vmem:[#allocation10 + $0x568] sm:$0xff]
    %v411 = vld [vmem:[#allocation10 + $0x570] sm:$0xff]
    %v412 = vld [vmem:[#allocation10 + $0x578] sm:$0xff]
    %v413 = vld [vmem:[#allocation10 + $0x580] sm:$0xff]
    %v414 = vld [vmem:[#allocation10 + $0x588] sm:$0xff]
    %v415 = vld [vmem:[#allocation10 + $0x590] sm:$0xff]
    %v416 = vld [vmem:[#allocation10 + $0x598] sm:$0xff]
    %v417 = vld [vmem:[#allocation10 + $0x5a0] sm:$0xff]
    %v418 = vld [vmem:[#allocation10 + $0x5a8] sm:$0xff]
    %v419 = vld [vmem:[#allocation10 + $0x5b0] sm:$0xff]
    %v420 = vld [vmem:[#allocation10 + $0x5b8] sm:$0xff]
    %v421 = vld [vmem:[#allocation10 + $0x5c0] sm:$0xff]
    %v422 = vld [vmem:[#allocation10 + $0x5c8] sm:$0xff]
    %v423 = vld [vmem:[#allocation10 + $0x5d0] sm:$0xff]
    %v424 = vld [vmem:[#allocation10 + $0x5d8] sm:$0xff]
    %v425 = vld [vmem:[#allocation10 + $0x5e0] sm:$0xff]
    %v426 = vld [vmem:[#allocation10 + $0x5e8] sm:$0xff]
    %v427 = vld [vmem:[#allocation10 + $0x5f0] sm:$0xff]
    %v428 = vld [vmem:[#allocation10 + $0x5f8] sm:$0xff]
    %v429 = vld [vmem:[#allocation10 + $0x600] sm:$0xff]
    %v430 = vld [vmem:[#allocation10 + $0x608] sm:$0xff]
    %v431 = vld [vmem:[#allocation10 + $0x610] sm:$0xff]
    %v432 = vld [vmem:[#allocation10 + $0x618] sm:$0xff]
    %v433 = vld [vmem:[#allocation10 + $0x620] sm:$0xff]
    %v434 = vld [vmem:[#allocation10 + $0x628] sm:$0xff]
    %v435 = vld [vmem:[#allocation10 + $0x630] sm:$0xff]
    %v436 = vld [vmem:[#allocation10 + $0x638] sm:$0xff]
    %v437 = vld [vmem:[#allocation10 + $0x640] sm:$0xff]
    %v438 = vld [vmem:[#allocation10 + $0x648] sm:$0xff]
    %v439 = vld [vmem:[#allocation10 + $0x650] sm:$0xff]
    %v440 = vld [vmem:[#allocation10 + $0x658] sm:$0xff]
    %v441 = vld [vmem:[#allocation10 + $0x660] sm:$0xff]
    %v442 = vld [vmem:[#allocation10 + $0x668] sm:$0xff]
    %v443 = vld [vmem:[#allocation10 + $0x670] sm:$0xff]
    %v444 = vld [vmem:[#allocation10 + $0x678] sm:$0xff]
    %v445 = vld [vmem:[#allocation10 + $0x680] sm:$0xff]
    %v446 = vld [vmem:[#allocation10 + $0x688] sm:$0xff]
    %v447 = vld [vmem:[#allocation10 + $0x690] sm:$0xff]
    %v448 = vld [vmem:[#allocation10 + $0x698] sm:$0xff]
    %v449 = vld [vmem:[#allocation10 + $0x6a0] sm:$0xff]
    %v450 = vld [vmem:[#allocation10 + $0x6a8] sm:$0xff]
    %v451 = vld [vmem:[#allocation10 + $0x6b0] sm:$0xff]
    %v452 = vld [vmem:[#allocation10 + $0x6b8] sm:$0xff]
    %v453 = vld [vmem:[#allocation10 + $0x6c0] sm:$0xff]
    %v454 = vld [vmem:[#allocation10 + $0x6c8] sm:$0xff]
    %v455 = vld [vmem:[#allocation10 + $0x6d0] sm:$0xff]
    %v456 = vld [vmem:[#allocation10 + $0x6d8] sm:$0xff]
    %v457 = vld [vmem:[#allocation10 + $0x6e0] sm:$0xff]
    %v458 = vld [vmem:[#allocation10 + $0x6e8] sm:$0xff]
    %v459 = vld [vmem:[#allocation10 + $0x6f0] sm:$0xff]
    %v460 = vld [vmem:[#allocation10 + $0x6f8] sm:$0xff]
    %v461 = vld [vmem:[#allocation10 + $0x700] sm:$0xff]
    %v462 = vld [vmem:[#allocation10 + $0x708] sm:$0xff]
    %v463 = vld [vmem:[#allocation10 + $0x710] sm:$0xff]
    %v464 = vld [vmem:[#allocation10 + $0x718] sm:$0xff]
    %v465 = vld [vmem:[#allocation10 + $0x720] sm:$0xff]
    %v466 = vld [vmem:[#allocation10 + $0x728] sm:$0xff]
    %v467 = vld [vmem:[#allocation10 + $0x730] sm:$0xff]
    %v468 = vld [vmem:[#allocation10 + $0x738] sm:$0xff]
    %v469 = vld [vmem:[#allocation10 + $0x740] sm:$0xff]
    %v470 = vld [vmem:[#allocation10 + $0x748] sm:$0xff]
    %v471 = vld [vmem:[#allocation10 + $0x750] sm:$0xff]
    %v472 = vld [vmem:[#allocation10 + $0x758] sm:$0xff]
    %v473 = vld [vmem:[#allocation10 + $0x760] sm:$0xff]
    %v474 = vld [vmem:[#allocation10 + $0x768] sm:$0xff]
    %v475 = vld [vmem:[#allocation10 + $0x770] sm:$0xff]
    %v476 = vld [vmem:[#allocation10 + $0x778] sm:$0xff]
    %v477 = vld [vmem:[#allocation10 + $0x780] sm:$0xff]
    %v478 = vld [vmem:[#allocation10 + $0x788] sm:$0xff]
    %v479 = vld [vmem:[#allocation10 + $0x790] sm:$0xff]
    %v480 = vld [vmem:[#allocation10 + $0x798] sm:$0xff]
    %v481 = vld [vmem:[#allocation10 + $0x7a0] sm:$0xff]
    %v482 = vld [vmem:[#allocation10 + $0x7a8] sm:$0xff]
    %v483 = vld [vmem:[#allocation10 + $0x7b0] sm:$0xff]
    %v484 = vld [vmem:[#allocation10 + $0x7b8] sm:$0xff]
    %v485 = vld [vmem:[#allocation10 + $0x7c0] sm:$0xff]
    %v486 = vld [vmem:[#allocation10 + $0x7c8] sm:$0xff]
    %v487 = vld [vmem:[#allocation10 + $0x7d0] sm:$0xff]
    %v488 = vld [vmem:[#allocation10 + $0x7d8] sm:$0xff]
    %v489 = vld [vmem:[#allocation10 + $0x7e0] sm:$0xff]
    %v490 = vld [vmem:[#allocation10 + $0x7e8] sm:$0xff]
    %v491 = vld [vmem:[#allocation10 + $0x7f0] sm:$0xff]
    %v492 = vld [vmem:[#allocation10 + $0x7f8] sm:$0xff]
    %v493 = vld [vmem:[%s5] sm:$0xff]
    %v495 = vlaneseq
    %v496 = vshrl.u32 %v495, 7
    %v497 = vsub.s32 0, %v496
    %v498 = vrot.slane %v493, %v497
    %v499 = vlaneseq
    %v500 = vshrl.u32 %v499, 7
    %v501 = vsub.s32 1, %v500
    %v502 = vrot.slane %v493, %v501
    %v503 = vlaneseq
    %v504 = vshrl.u32 %v503, 7
    %v505 = vsub.s32 2, %v504
    %v506 = vrot.slane %v493, %v505
    %v507 = vlaneseq
    %v508 = vshrl.u32 %v507, 7
    %v509 = vsub.s32 3, %v508
    %v510 = vrot.slane %v493, %v509
    %v511 = vlaneseq
    %v512 = vshrl.u32 %v511, 7
    %v513 = vsub.s32 4, %v512
    %v514 = vrot.slane %v493, %v513
    %v515 = vlaneseq
    %v516 = vshrl.u32 %v515, 7
    %v517 = vsub.s32 5, %v516
    %v518 = vrot.slane %v493, %v517
    %v519 = vlaneseq
    %v520 = vshrl.u32 %v519, 7
    %v521 = vsub.s32 6, %v520
    %v522 = vrot.slane %v493, %v521
    %v523 = vlaneseq
    %v524 = vshrl.u32 %v523, 7
    %v525 = vsub.s32 7, %v524
    %v526 = vrot.slane %v493, %v525
    %535 = vmatprep.subr.mxu0 %v238
    %536 = vmatpush1.msra.mxu0 %v237
    %537 = vmatprep.subr.mxu0 %v246
    %538 = vmatpush1.msra.mxu0 %v245
    %539 = vmatprep.subr.mxu0 %v254
    %540 = vmatpush1.msra.mxu0 %v253
    %541 = vmatprep.subr.mxu0 %v262
    %542 = vmatpush1.msra.mxu0 %v261
    %543 = vmatprep.subr.mxu0 %v270
    %544 = vmatpush1.msra.mxu0 %v269
    %545 = vmatprep.subr.mxu0 %v278
    %546 = vmatpush1.msra.mxu0 %v277
    %547 = vmatprep.subr.mxu0 %v286
    %548 = vmatpush1.msra.mxu0 %v285
    %549 = vmatprep.subr.mxu0 %v294
    %550 = vmatpush1.msra.mxu0 %v293
    %551 = vmatprep.subr.mxu0 %v302
    %552 = vmatpush1.msra.mxu0 %v301
    %553 = vmatprep.subr.mxu0 %v310
    %554 = vmatpush1.msra.mxu0 %v309
    %555 = vmatprep.subr.mxu0 %v318
    %556 = vmatpush1.msra.mxu0 %v317
    %557 = vmatprep.subr.mxu0 %v326
    %558 = vmatpush1.msra.mxu0 %v325
    %559 = vmatprep.subr.mxu0 %v334
    %560 = vmatpush1.msra.mxu0 %v333
    %561 = vmatprep.subr.mxu0 %v342
    %562 = vmatpush1.msra.mxu0 %v341
    %563 = vmatprep.subr.mxu0 %v350
    %564 = vmatpush1.msra.mxu0 %v349
    %565 = vmatprep.subr.mxu0 %v358
    %566 = vmatpush1.msra.mxu0 %v357
    %567 = vmatprep.subr.mxu0 %v366
    %568 = vmatpush1.msra.mxu0 %v365
    %569 = vmatprep.subr.mxu0 %v374
    %570 = vmatpush1.msra.mxu0 %v373
    %571 = vmatprep.subr.mxu0 %v382
    %572 = vmatpush1.msra.mxu0 %v381
    %573 = vmatprep.subr.mxu0 %v390
    %574 = vmatpush1.msra.mxu0 %v389
    %575 = vmatprep.subr.mxu0 %v398
    %576 = vmatpush1.msra.mxu0 %v397
    %577 = vmatprep.subr.mxu0 %v406
    %578 = vmatpush1.msra.mxu0 %v405
    %579 = vmatprep.subr.mxu0 %v414
    %580 = vmatpush1.msra.mxu0 %v413
    %581 = vmatprep.subr.mxu0 %v422
    %582 = vmatpush1.msra.mxu0 %v421
    %583 = vmatprep.subr.mxu0 %v430
    %584 = vmatpush1.msra.mxu0 %v429
    %585 = vmatprep.subr.mxu0 %v438
    %586 = vmatpush1.msra.mxu0 %v437
    %587 = vmatprep.subr.mxu0 %v446
    %588 = vmatpush1.msra.mxu0 %v445
    %589 = vmatprep.subr.mxu0 %v454
    %590 = vmatpush1.msra.mxu0 %v453
    %591 = vmatprep.subr.mxu0 %v462
    %592 = vmatpush1.msra.mxu0 %v461
    %593 = vmatprep.subr.mxu0 %v470
    %594 = vmatpush1.msra.mxu0 %v469
    %595 = vmatprep.subr.mxu0 %v478
    %596 = vmatpush1.msra.mxu0 %v477
    %597 = vmatprep.subr.mxu0 %v486
    %598 = vmatpush1.msra.mxu0 %v485
    %599 = vmatprep.mubr.f32.mxu0 %v234
    %600 = vmatmul.mubr.f32.gmra.mrb[0].mxu0 %v233
    %v601 = vpop.f32.mrb[0].mxu0
    %v602 = vadd.f32 %v498, %v601
    %v603 = vpop.f32.mrb[0].mxu0
    %v604 = vadd.f32 %v502, %v603
    %605 = vmatprep.mubr.f32.mxu0 %v236
    %606 = vmatmul.mubr.f32.gmra.mrb[0].mxu0 %v235
    %v607 = vpop.f32.mrb[0].mxu0
    %v608 = vadd.f32 %v498, %v607
    %v609 = vpop.f32.mrb[0].mxu0
    %v610 = vadd.f32 %v502, %v609
    %611 = vdwg.mxu0
    %612 = vmatprep.subr.mxu0 %v240
    %613 = vmatpush1.msra.mxu0 %v239
    %614 = vmatprep.subr.mxu0 %v248
    %615 = vmatpush1.msra.mxu0 %v247
    %616 = vmatprep.subr.mxu0 %v256
    %617 = vmatpush1.msra.mxu0 %v255
    %618 = vmatprep.subr.mxu0 %v264
    %619 = vmatpush1.msra.mxu0 %v263
    %620 = vmatprep.subr.mxu0 %v272
    %621 = vmatpush1.msra.mxu0 %v271
    %622 = vmatprep.subr.mxu0 %v280
    %623 = vmatpush1.msra.mxu0 %v279
    %624 = vmatprep.subr.mxu0 %v288
    %625 = vmatpush1.msra.mxu0 %v287
    %626 = vmatprep.subr.mxu0 %v296
    %627 = vmatpush1.msra.mxu0 %v295
    %628 = vmatprep.subr.mxu0 %v304
    %629 = vmatpush1.msra.mxu0 %v303
    %630 = vmatprep.subr.mxu0 %v312
    %631 = vmatpush1.msra.mxu0 %v311
    %632 = vmatprep.subr.mxu0 %v320
    %633 = vmatpush1.msra.mxu0 %v319
    %634 = vmatprep.subr.mxu0 %v328
    %635 = vmatpush1.msra.mxu0 %v327
    %636 = vmatprep.subr.mxu0 %v336
    %637 = vmatpush1.msra.mxu0 %v335
    %638 = vmatprep.subr.mxu0 %v344
    %639 = vmatpush1.msra.mxu0 %v343
    %640 = vmatprep.subr.mxu0 %v352
    %641 = vmatpush1.msra.mxu0 %v351
    %642 = vmatprep.subr.mxu0 %v360
    %643 = vmatpush1.msra.mxu0 %v359
    %644 = vmatprep.subr.mxu0 %v368
    %645 = vmatpush1.msra.mxu0 %v367
    %646 = vmatprep.subr.mxu0 %v376
    %647 = vmatpush1.msra.mxu0 %v375
    %648 = vmatprep.subr.mxu0 %v384
    %649 = vmatpush1.msra.mxu0 %v383
    %650 = vmatprep.subr.mxu0 %v392
    %651 = vmatpush1.msra.mxu0 %v391
    %652 = vmatprep.subr.mxu0 %v400
    %653 = vmatpush1.msra.mxu0 %v399
    %654 = vmatprep.subr.mxu0 %v408
    %655 = vmatpush1.msra.mxu0 %v407
    %656 = vmatprep.subr.mxu0 %v416
    %657 = vmatpush1.msra.mxu0 %v415
    %658 = vmatprep.subr.mxu0 %v424
    %659 = vmatpush1.msra.mxu0 %v423
    %660 = vmatprep.subr.mxu0 %v432
    %661 = vmatpush1.msra.mxu0 %v431
    %662 = vmatprep.subr.mxu0 %v440
    %663 = vmatpush1.msra.mxu0 %v439
    %664 = vmatprep.subr.mxu0 %v448
    %665 = vmatpush1.msra.mxu0 %v447
    %666 = vmatprep.subr.mxu0 %v456
    %667 = vmatpush1.msra.mxu0 %v455
    %668 = vmatprep.subr.mxu0 %v464
    %669 = vmatpush1.msra.mxu0 %v463
    %670 = vmatprep.subr.mxu0 %v472
    %671 = vmatpush1.msra.mxu0 %v471
    %672 = vmatprep.subr.mxu0 %v480
    %673 = vmatpush1.msra.mxu0 %v479
    %674 = vmatprep.subr.mxu0 %v488
    %675 = vmatpush1.msra.mxu0 %v487
    %676 = vmatprep.mubr.f32.mxu0 %v234
    %677 = vmatmul.mubr.f32.gmra.mrb[0].mxu0 %v233
    %v678 = vpop.f32.mrb[0].mxu0
    %v679 = vadd.f32 %v506, %v678
    %v680 = vpop.f32.mrb[0].mxu0
    %v681 = vadd.f32 %v510, %v680
    %682 = vmatprep.mubr.f32.mxu0 %v236
    %683 = vmatmul.mubr.f32.gmra.mrb[0].mxu0 %v235
    %v684 = vpop.f32.mrb[0].mxu0
    %v685 = vadd.f32 %v506, %v684
    %v686 = vpop.f32.mrb[0].mxu0
    %v687 = vadd.f32 %v510, %v686
    %688 = vdwg.mxu0
    %689 = vmatprep.subr.mxu0 %v242
    %690 = vmatpush1.msra.mxu0 %v241
    %691 = vmatprep.subr.mxu0 %v250
    %692 = vmatpush1.msra.mxu0 %v249
    %693 = vmatprep.subr.mxu0 %v258
    %694 = vmatpush1.msra.mxu0 %v257
    %695 = vmatprep.subr.mxu0 %v266
    %696 = vmatpush1.msra.mxu0 %v265
    %697 = vmatprep.subr.mxu0 %v274
    %698 = vmatpush1.msra.mxu0 %v273
    %699 = vmatprep.subr.mxu0 %v282
    %700 = vmatpush1.msra.mxu0 %v281
    %701 = vmatprep.subr.mxu0 %v290
    %702 = vmatpush1.msra.mxu0 %v289
    %703 = vmatprep.subr.mxu0 %v298
    %704 = vmatpush1.msra.mxu0 %v297
    %705 = vmatprep.subr.mxu0 %v306
    %706 = vmatpush1.msra.mxu0 %v305
    %707 = vmatprep.subr.mxu0 %v314
    %708 = vmatpush1.msra.mxu0 %v313
    %709 = vmatprep.subr.mxu0 %v322
    %710 = vmatpush1.msra.mxu0 %v321
    %711 = vmatprep.subr.mxu0 %v330
    %712 = vmatpush1.msra.mxu0 %v329
    %713 = vmatprep.subr.mxu0 %v338
    %714 = vmatpush1.msra.mxu0 %v337
    %715 = vmatprep.subr.mxu0 %v346
    %716 = vmatpush1.msra.mxu0 %v345
    %717 = vmatprep.subr.mxu0 %v354
    %718 = vmatpush1.msra.mxu0 %v353
    %719 = vmatprep.subr.mxu0 %v362
    %720 = vmatpush1.msra.mxu0 %v361
    %721 = vmatprep.subr.mxu0 %v370
    %722 = vmatpush1.msra.mxu0 %v369
    %723 = vmatprep.subr.mxu0 %v378
    %724 = vmatpush1.msra.mxu0 %v377
    %725 = vmatprep.subr.mxu0 %v386
    %726 = vmatpush1.msra.mxu0 %v385
    %727 = vmatprep.subr.mxu0 %v394
    %728 = vmatpush1.msra.mxu0 %v393
    %729 = vmatprep.subr.mxu0 %v402
    %730 = vmatpush1.msra.mxu0 %v401
    %731 = vmatprep.subr.mxu0 %v410
    %732 = vmatpush1.msra.mxu0 %v409
    %733 = vmatprep.subr.mxu0 %v418
    %734 = vmatpush1.msra.mxu0 %v417
    %735 = vmatprep.subr.mxu0 %v426
    %736 = vmatpush1.msra.mxu0 %v425
    %737 = vmatprep.subr.mxu0 %v434
    %738 = vmatpush1.msra.mxu0 %v433
    %739 = vmatprep.subr.mxu0 %v442
    %740 = vmatpush1.msra.mxu0 %v441
    %741 = vmatprep.subr.mxu0 %v450
    %742 = vmatpush1.msra.mxu0 %v449
    %743 = vmatprep.subr.mxu0 %v458
    %744 = vmatpush1.msra.mxu0 %v457
    %745 = vmatprep.subr.mxu0 %v466
    %746 = vmatpush1.msra.mxu0 %v465
    %747 = vmatprep.subr.mxu0 %v474
    %748 = vmatpush1.msra.mxu0 %v473
    %749 = vmatprep.subr.mxu0 %v482
    %750 = vmatpush1.msra.mxu0 %v481
    %751 = vmatprep.subr.mxu0 %v490
    %752 = vmatpush1.msra.mxu0 %v489
    %753 = vmatprep.mubr.f32.mxu0 %v234
    %754 = vmatmul.mubr.f32.gmra.mrb[0].mxu0 %v233
    %v755 = vpop.f32.mrb[0].mxu0
    %v756 = vadd.f32 %v514, %v755
    %v757 = vpop.f32.mrb[0].mxu0
    %v758 = vadd.f32 %v518, %v757
    %759 = vmatprep.mubr.f32.mxu0 %v236
    %760 = vmatmul.mubr.f32.gmra.mrb[0].mxu0 %v235
    %v761 = vpop.f32.mrb[0].mxu0
    %v762 = vadd.f32 %v514, %v761
    %v763 = vpop.f32.mrb[0].mxu0
    %v764 = vadd.f32 %v518, %v763
    %765 = vdwg.mxu0
    %766 = vmatprep.subr.mxu0 %v244
    %767 = vmatpush1.msra.mxu0 %v243
    %768 = vmatprep.subr.mxu0 %v252
    %769 = vmatpush1.msra.mxu0 %v251
    %770 = vmatprep.subr.mxu0 %v260
    %771 = vmatpush1.msra.mxu0 %v259
    %772 = vmatprep.subr.mxu0 %v268
    %773 = vmatpush1.msra.mxu0 %v267
    %774 = vmatprep.subr.mxu0 %v276
    %775 = vmatpush1.msra.mxu0 %v275
    %776 = vmatprep.subr.mxu0 %v284
    %777 = vmatpush1.msra.mxu0 %v283
    %778 = vmatprep.subr.mxu0 %v292
    %779 = vmatpush1.msra.mxu0 %v291
    %780 = vmatprep.subr.mxu0 %v300
    %781 = vmatpush1.msra.mxu0 %v299
    %782 = vmatprep.subr.mxu0 %v308
    %783 = vmatpush1.msra.mxu0 %v307
    %784 = vmatprep.subr.mxu0 %v316
    %785 = vmatpush1.msra.mxu0 %v315
    %786 = vmatprep.subr.mxu0 %v324
    %787 = vmatpush1.msra.mxu0 %v323
    %788 = vmatprep.subr.mxu0 %v332
    %789 = vmatpush1.msra.mxu0 %v331
    %790 = vmatprep.subr.mxu0 %v340
    %791 = vmatpush1.msra.mxu0 %v339
    %792 = vmatprep.subr.mxu0 %v348
    %793 = vmatpush1.msra.mxu0 %v347
    %794 = vmatprep.subr.mxu0 %v356
    %795 = vmatpush1.msra.mxu0 %v355
    %796 = vmatprep.subr.mxu0 %v364
    %797 = vmatpush1.msra.mxu0 %v363
    %798 = vmatprep.subr.mxu0 %v372
    %799 = vmatpush1.msra.mxu0 %v371
    %800 = vmatprep.subr.mxu0 %v380
    %801 = vmatpush1.msra.mxu0 %v379
    %802 = vmatprep.subr.mxu0 %v388
    %803 = vmatpush1.msra.mxu0 %v387
    %804 = vmatprep.subr.mxu0 %v396
    %805 = vmatpush1.msra.mxu0 %v395
    %806 = vmatprep.subr.mxu0 %v404
    %807 = vmatpush1.msra.mxu0 %v403
    %808 = vmatprep.subr.mxu0 %v412
    %809 = vmatpush1.msra.mxu0 %v411
    %810 = vmatprep.subr.mxu0 %v420
    %811 = vmatpush1.msra.mxu0 %v419
    %812 = vmatprep.subr.mxu0 %v428
    %813 = vmatpush1.msra.mxu0 %v427
    %814 = vmatprep.subr.mxu0 %v436
    %815 = vmatpush1.msra.mxu0 %v435
    %816 = vmatprep.subr.mxu0 %v444
    %817 = vmatpush1.msra.mxu0 %v443
    %818 = vmatprep.subr.mxu0 %v452
    %819 = vmatpush1.msra.mxu0 %v451
    %820 = vmatprep.subr.mxu0 %v460
    %821 = vmatpush1.msra.mxu0 %v459
    %822 = vmatprep.subr.mxu0 %v468
    %823 = vmatpush1.msra.mxu0 %v467
    %824 = vmatprep.subr.mxu0 %v476
    %825 = vmatpush1.msra.mxu0 %v475
    %826 = vmatprep.subr.mxu0 %v484
    %827 = vmatpush1.msra.mxu0 %v483
    %828 = vmatprep.subr.mxu0 %v492
    %829 = vmatpush1.msra.mxu0 %v491
    %830 = vmatprep.mubr.f32.mxu0 %v234
    %831 = vmatmul.mubr.f32.gmra.mrb[0].mxu0 %v233
    %v832 = vpop.f32.mrb[0].mxu0
    %v833 = vadd.f32 %v522, %v832
    %v834 = vpop.f32.mrb[0].mxu0
    %v835 = vadd.f32 %v526, %v834
    %836 = vmatprep.mubr.f32.mxu0 %v236
    %837 = vmatmul.mubr.f32.gmra.mrb[0].mxu0 %v235
    %v838 = vpop.f32.mrb[0].mxu0
    %v839 = vadd.f32 %v522, %v838
    %v840 = vpop.f32.mrb[0].mxu0
    %v841 = vadd.f32 %v526, %v840
    %842 = vdwg.mxu0
    %v843 = vld [vmem:[#allocation11] sm:$0xff]
    %v844 = vld [vmem:[#allocation11 + $0x8] sm:$0xff]
    %v845 = vld [vmem:[#allocation11 + $0x10] sm:$0xff]
    %v846 = vld [vmem:[#allocation11 + $0x18] sm:$0xff]
    %v847 = vld [vmem:[#allocation11 + $0x20] sm:$0xff]
    %v848 = vld [vmem:[#allocation11 + $0x28] sm:$0xff]
    %v849 = vld [vmem:[#allocation11 + $0x30] sm:$0xff]
    %v850 = vld [vmem:[#allocation11 + $0x38] sm:$0xff]
    %v851 = vld [vmem:[#allocation11 + $0x40] sm:$0xff]
    %v852 = vld [vmem:[#allocation11 + $0x48] sm:$0xff]
    %v853 = vld [vmem:[#allocation11 + $0x50] sm:$0xff]
    %v854 = vld [vmem:[#allocation11 + $0x58] sm:$0xff]
    %v855 = vld [vmem:[#allocation11 + $0x60] sm:$0xff]
    %v856 = vld [vmem:[#allocation11 + $0x68] sm:$0xff]
    %v857 = vld [vmem:[#allocation11 + $0x70] sm:$0xff]
    %v858 = vld [vmem:[#allocation11 + $0x78] sm:$0xff]
    %v859 = vld [vmem:[#allocation11 + $0x80] sm:$0xff]
    %v860 = vld [vmem:[#allocation11 + $0x88] sm:$0xff]
    %v861 = vld [vmem:[#allocation11 + $0x90] sm:$0xff]
    %v862 = vld [vmem:[#allocation11 + $0x98] sm:$0xff]
    %v863 = vld [vmem:[#allocation11 + $0xa0] sm:$0xff]
    %v864 = vld [vmem:[#allocation11 + $0xa8] sm:$0xff]
    %v865 = vld [vmem:[#allocation11 + $0xb0] sm:$0xff]
    %v866 = vld [vmem:[#allocation11 + $0xb8] sm:$0xff]
    %v867 = vld [vmem:[#allocation11 + $0xc0] sm:$0xff]
    %v868 = vld [vmem:[#allocation11 + $0xc8] sm:$0xff]
    %v869 = vld [vmem:[#allocation11 + $0xd0] sm:$0xff]
    %v870 = vld [vmem:[#allocation11 + $0xd8] sm:$0xff]
    %v871 = vld [vmem:[#allocation11 + $0xe0] sm:$0xff]
    %v872 = vld [vmem:[#allocation11 + $0xe8] sm:$0xff]
    %v873 = vld [vmem:[#allocation11 + $0xf0] sm:$0xff]
    %v874 = vld [vmem:[#allocation11 + $0xf8] sm:$0xff]
    %v875 = vld [vmem:[#allocation11 + $0x100] sm:$0xff]
    %v876 = vld [vmem:[#allocation11 + $0x108] sm:$0xff]
    %v877 = vld [vmem:[#allocation11 + $0x110] sm:$0xff]
    %v878 = vld [vmem:[#allocation11 + $0x118] sm:$0xff]
    %v879 = vld [vmem:[#allocation11 + $0x120] sm:$0xff]
    %v880 = vld [vmem:[#allocation11 + $0x128] sm:$0xff]
    %v881 = vld [vmem:[#allocation11 + $0x130] sm:$0xff]
    %v882 = vld [vmem:[#allocation11 + $0x138] sm:$0xff]
    %v883 = vld [vmem:[#allocation11 + $0x140] sm:$0xff]
    %v884 = vld [vmem:[#allocation11 + $0x148] sm:$0xff]
    %v885 = vld [vmem:[#allocation11 + $0x150] sm:$0xff]
    %v886 = vld [vmem:[#allocation11 + $0x158] sm:$0xff]
    %v887 = vld [vmem:[#allocation11 + $0x160] sm:$0xff]
    %v888 = vld [vmem:[#allocation11 + $0x168] sm:$0xff]
    %v889 = vld [vmem:[#allocation11 + $0x170] sm:$0xff]
    %v890 = vld [vmem:[#allocation11 + $0x178] sm:$0xff]
    %v891 = vld [vmem:[#allocation11 + $0x180] sm:$0xff]
    %v892 = vld [vmem:[#allocation11 + $0x188] sm:$0xff]
    %v893 = vld [vmem:[#allocation11 + $0x190] sm:$0xff]
    %v894 = vld [vmem:[#allocation11 + $0x198] sm:$0xff]
    %v895 = vld [vmem:[#allocation11 + $0x1a0] sm:$0xff]
    %v896 = vld [vmem:[#allocation11 + $0x1a8] sm:$0xff]
    %v897 = vld [vmem:[#allocation11 + $0x1b0] sm:$0xff]
    %v898 = vld [vmem:[#allocation11 + $0x1b8] sm:$0xff]
    %v899 = vld [vmem:[#allocation11 + $0x1c0] sm:$0xff]
    %v900 = vld [vmem:[#allocation11 + $0x1c8] sm:$0xff]
    %v901 = vld [vmem:[#allocation11 + $0x1d0] sm:$0xff]
    %v902 = vld [vmem:[#allocation11 + $0x1d8] sm:$0xff]
    %v903 = vld [vmem:[#allocation11 + $0x1e0] sm:$0xff]
    %v904 = vld [vmem:[#allocation11 + $0x1e8] sm:$0xff]
    %v905 = vld [vmem:[#allocation11 + $0x1f0] sm:$0xff]
    %v906 = vld [vmem:[#allocation11 + $0x1f8] sm:$0xff]
    %v907 = vld [vmem:[#allocation11 + $0x200] sm:$0xff]
    %v908 = vld [vmem:[#allocation11 + $0x208] sm:$0xff]
    %v909 = vld [vmem:[#allocation11 + $0x210] sm:$0xff]
    %v910 = vld [vmem:[#allocation11 + $0x218] sm:$0xff]
    %v911 = vld [vmem:[#allocation11 + $0x220] sm:$0xff]
    %v912 = vld [vmem:[#allocation11 + $0x228] sm:$0xff]
    %v913 = vld [vmem:[#allocation11 + $0x230] sm:$0xff]
    %v914 = vld [vmem:[#allocation11 + $0x238] sm:$0xff]
    %v915 = vld [vmem:[#allocation11 + $0x240] sm:$0xff]
    %v916 = vld [vmem:[#allocation11 + $0x248] sm:$0xff]
    %v917 = vld [vmem:[#allocation11 + $0x250] sm:$0xff]
    %v918 = vld [vmem:[#allocation11 + $0x258] sm:$0xff]
    %v919 = vld [vmem:[#allocation11 + $0x260] sm:$0xff]
    %v920 = vld [vmem:[#allocation11 + $0x268] sm:$0xff]
    %v921 = vld [vmem:[#allocation11 + $0x270] sm:$0xff]
    %v922 = vld [vmem:[#allocation11 + $0x278] sm:$0xff]
    %v923 = vld [vmem:[#allocation11 + $0x280] sm:$0xff]
    %v924 = vld [vmem:[#allocation11 + $0x288] sm:$0xff]
    %v925 = vld [vmem:[#allocation11 + $0x290] sm:$0xff]
    %v926 = vld [vmem:[#allocation11 + $0x298] sm:$0xff]
    %v927 = vld [vmem:[#allocation11 + $0x2a0] sm:$0xff]
    %v928 = vld [vmem:[#allocation11 + $0x2a8] sm:$0xff]
    %v929 = vld [vmem:[#allocation11 + $0x2b0] sm:$0xff]
    %v930 = vld [vmem:[#allocation11 + $0x2b8] sm:$0xff]
    %v931 = vld [vmem:[#allocation11 + $0x2c0] sm:$0xff]
    %v932 = vld [vmem:[#allocation11 + $0x2c8] sm:$0xff]
    %v933 = vld [vmem:[#allocation11 + $0x2d0] sm:$0xff]
    %v934 = vld [vmem:[#allocation11 + $0x2d8] sm:$0xff]
    %v935 = vld [vmem:[#allocation11 + $0x2e0] sm:$0xff]
    %v936 = vld [vmem:[#allocation11 + $0x2e8] sm:$0xff]
    %v937 = vld [vmem:[#allocation11 + $0x2f0] sm:$0xff]
    %v938 = vld [vmem:[#allocation11 + $0x2f8] sm:$0xff]
    %v939 = vld [vmem:[#allocation11 + $0x300] sm:$0xff]
    %v940 = vld [vmem:[#allocation11 + $0x308] sm:$0xff]
    %v941 = vld [vmem:[#allocation11 + $0x310] sm:$0xff]
    %v942 = vld [vmem:[#allocation11 + $0x318] sm:$0xff]
    %v943 = vld [vmem:[#allocation11 + $0x320] sm:$0xff]
    %v944 = vld [vmem:[#allocation11 + $0x328] sm:$0xff]
    %v945 = vld [vmem:[#allocation11 + $0x330] sm:$0xff]
    %v946 = vld [vmem:[#allocation11 + $0x338] sm:$0xff]
    %v947 = vld [vmem:[#allocation11 + $0x340] sm:$0xff]
    %v948 = vld [vmem:[#allocation11 + $0x348] sm:$0xff]
    %v949 = vld [vmem:[#allocation11 + $0x350] sm:$0xff]
    %v950 = vld [vmem:[#allocation11 + $0x358] sm:$0xff]
    %v951 = vld [vmem:[#allocation11 + $0x360] sm:$0xff]
    %v952 = vld [vmem:[#allocation11 + $0x368] sm:$0xff]
    %v953 = vld [vmem:[#allocation11 + $0x370] sm:$0xff]
    %v954 = vld [vmem:[#allocation11 + $0x378] sm:$0xff]
    %v955 = vld [vmem:[#allocation11 + $0x380] sm:$0xff]
    %v956 = vld [vmem:[#allocation11 + $0x388] sm:$0xff]
    %v957 = vld [vmem:[#allocation11 + $0x390] sm:$0xff]
    %v958 = vld [vmem:[#allocation11 + $0x398] sm:$0xff]
    %v959 = vld [vmem:[#allocation11 + $0x3a0] sm:$0xff]
    %v960 = vld [vmem:[#allocation11 + $0x3a8] sm:$0xff]
    %v961 = vld [vmem:[#allocation11 + $0x3b0] sm:$0xff]
    %v962 = vld [vmem:[#allocation11 + $0x3b8] sm:$0xff]
    %v963 = vld [vmem:[#allocation11 + $0x3c0] sm:$0xff]
    %v964 = vld [vmem:[#allocation11 + $0x3c8] sm:$0xff]
    %v965 = vld [vmem:[#allocation11 + $0x3d0] sm:$0xff]
    %v966 = vld [vmem:[#allocation11 + $0x3d8] sm:$0xff]
    %v967 = vld [vmem:[#allocation11 + $0x3e0] sm:$0xff]
    %v968 = vld [vmem:[#allocation11 + $0x3e8] sm:$0xff]
    %v969 = vld [vmem:[#allocation11 + $0x3f0] sm:$0xff]
    %v970 = vld [vmem:[#allocation11 + $0x3f8] sm:$0xff]
    %v971 = vld [vmem:[#allocation11 + $0x400] sm:$0xff]
    %v972 = vld [vmem:[#allocation11 + $0x408] sm:$0xff]
    %v973 = vld [vmem:[#allocation11 + $0x410] sm:$0xff]
    %v974 = vld [vmem:[#allocation11 + $0x418] sm:$0xff]
    %v975 = vld [vmem:[#allocation11 + $0x420] sm:$0xff]
    %v976 = vld [vmem:[#allocation11 + $0x428] sm:$0xff]
    %v977 = vld [vmem:[#allocation11 + $0x430] sm:$0xff]
    %v978 = vld [vmem:[#allocation11 + $0x438] sm:$0xff]
    %v979 = vld [vmem:[#allocation11 + $0x440] sm:$0xff]
    %v980 = vld [vmem:[#allocation11 + $0x448] sm:$0xff]
    %v981 = vld [vmem:[#allocation11 + $0x450] sm:$0xff]
    %v982 = vld [vmem:[#allocation11 + $0x458] sm:$0xff]
    %v983 = vld [vmem:[#allocation11 + $0x460] sm:$0xff]
    %v984 = vld [vmem:[#allocation11 + $0x468] sm:$0xff]
    %v985 = vld [vmem:[#allocation11 + $0x470] sm:$0xff]
    %v986 = vld [vmem:[#allocation11 + $0x478] sm:$0xff]
    %v987 = vld [vmem:[#allocation11 + $0x480] sm:$0xff]
    %v988 = vld [vmem:[#allocation11 + $0x488] sm:$0xff]
    %v989 = vld [vmem:[#allocation11 + $0x490] sm:$0xff]
    %v990 = vld [vmem:[#allocation11 + $0x498] sm:$0xff]
    %v991 = vld [vmem:[#allocation11 + $0x4a0] sm:$0xff]
    %v992 = vld [vmem:[#allocation11 + $0x4a8] sm:$0xff]
    %v993 = vld [vmem:[#allocation11 + $0x4b0] sm:$0xff]
    %v994 = vld [vmem:[#allocation11 + $0x4b8] sm:$0xff]
    %v995 = vld [vmem:[#allocation11 + $0x4c0] sm:$0xff]
    %v996 = vld [vmem:[#allocation11 + $0x4c8] sm:$0xff]
    %v997 = vld [vmem:[#allocation11 + $0x4d0] sm:$0xff]
    %v998 = vld [vmem:[#allocation11 + $0x4d8] sm:$0xff]
    %v999 = vld [vmem:[#allocation11 + $0x4e0] sm:$0xff]
    %v1000 = vld [vmem:[#allocation11 + $0x4e8] sm:$0xff]
    %v1001 = vld [vmem:[#allocation11 + $0x4f0] sm:$0xff]
    %v1002 = vld [vmem:[#allocation11 + $0x4f8] sm:$0xff]
    %v1003 = vld [vmem:[#allocation11 + $0x500] sm:$0xff]
    %v1004 = vld [vmem:[#allocation11 + $0x508] sm:$0xff]
    %v1005 = vld [vmem:[#allocation11 + $0x510] sm:$0xff]
    %v1006 = vld [vmem:[#allocation11 + $0x518] sm:$0xff]
    %v1007 = vld [vmem:[#allocation11 + $0x520] sm:$0xff]
    %v1008 = vld [vmem:[#allocation11 + $0x528] sm:$0xff]
    %v1009 = vld [vmem:[#allocation11 + $0x530] sm:$0xff]
    %v1010 = vld [vmem:[#allocation11 + $0x538] sm:$0xff]
    %v1011 = vld [vmem:[#allocation11 + $0x540] sm:$0xff]
    %v1012 = vld [vmem:[#allocation11 + $0x548] sm:$0xff]
    %v1013 = vld [vmem:[#allocation11 + $0x550] sm:$0xff]
    %v1014 = vld [vmem:[#allocation11 + $0x558] sm:$0xff]
    %v1015 = vld [vmem:[#allocation11 + $0x560] sm:$0xff]
    %v1016 = vld [vmem:[#allocation11 + $0x568] sm:$0xff]
    %v1017 = vld [vmem:[#allocation11 + $0x570] sm:$0xff]
    %v1018 = vld [vmem:[#allocation11 + $0x578] sm:$0xff]
    %v1019 = vld [vmem:[#allocation11 + $0x580] sm:$0xff]
    %v1020 = vld [vmem:[#allocation11 + $0x588] sm:$0xff]
    %v1021 = vld [vmem:[#allocation11 + $0x590] sm:$0xff]
    %v1022 = vld [vmem:[#allocation11 + $0x598] sm:$0xff]
    %v1023 = vld [vmem:[#allocation11 + $0x5a0] sm:$0xff]
    %v1024 = vld [vmem:[#allocation11 + $0x5a8] sm:$0xff]
    %v1025 = vld [vmem:[#allocation11 + $0x5b0] sm:$0xff]
    %v1026 = vld [vmem:[#allocation11 + $0x5b8] sm:$0xff]
    %v1027 = vld [vmem:[#allocation11 + $0x5c0] sm:$0xff]
    %v1028 = vld [vmem:[#allocation11 + $0x5c8] sm:$0xff]
    %v1029 = vld [vmem:[#allocation11 + $0x5d0] sm:$0xff]
    %v1030 = vld [vmem:[#allocation11 + $0x5d8] sm:$0xff]
    %v1031 = vld [vmem:[#allocation11 + $0x5e0] sm:$0xff]
    %v1032 = vld [vmem:[#allocation11 + $0x5e8] sm:$0xff]
    %v1033 = vld [vmem:[#allocation11 + $0x5f0] sm:$0xff]
    %v1034 = vld [vmem:[#allocation11 + $0x5f8] sm:$0xff]
    %v1035 = vld [vmem:[#allocation11 + $0x600] sm:$0xff]
    %v1036 = vld [vmem:[#allocation11 + $0x608] sm:$0xff]
    %v1037 = vld [vmem:[#allocation11 + $0x610] sm:$0xff]
    %v1038 = vld [vmem:[#allocation11 + $0x618] sm:$0xff]
    %v1039 = vld [vmem:[#allocation11 + $0x620] sm:$0xff]
    %v1040 = vld [vmem:[#allocation11 + $0x628] sm:$0xff]
    %v1041 = vld [vmem:[#allocation11 + $0x630] sm:$0xff]
    %v1042 = vld [vmem:[#allocation11 + $0x638] sm:$0xff]
    %v1043 = vld [vmem:[#allocation11 + $0x640] sm:$0xff]
    %v1044 = vld [vmem:[#allocation11 + $0x648] sm:$0xff]
    %v1045 = vld [vmem:[#allocation11 + $0x650] sm:$0xff]
    %v1046 = vld [vmem:[#allocation11 + $0x658] sm:$0xff]
    %v1047 = vld [vmem:[#allocation11 + $0x660] sm:$0xff]
    %v1048 = vld [vmem:[#allocation11 + $0x668] sm:$0xff]
    %v1049 = vld [vmem:[#allocation11 + $0x670] sm:$0xff]
    %v1050 = vld [vmem:[#allocation11 + $0x678] sm:$0xff]
    %v1051 = vld [vmem:[#allocation11 + $0x680] sm:$0xff]
    %v1052 = vld [vmem:[#allocation11 + $0x688] sm:$0xff]
    %v1053 = vld [vmem:[#allocation11 + $0x690] sm:$0xff]
    %v1054 = vld [vmem:[#allocation11 + $0x698] sm:$0xff]
    %v1055 = vld [vmem:[#allocation11 + $0x6a0] sm:$0xff]
    %v1056 = vld [vmem:[#allocation11 + $0x6a8] sm:$0xff]
    %v1057 = vld [vmem:[#allocation11 + $0x6b0] sm:$0xff]
    %v1058 = vld [vmem:[#allocation11 + $0x6b8] sm:$0xff]
    %v1059 = vld [vmem:[#allocation11 + $0x6c0] sm:$0xff]
    %v1060 = vld [vmem:[#allocation11 + $0x6c8] sm:$0xff]
    %v1061 = vld [vmem:[#allocation11 + $0x6d0] sm:$0xff]
    %v1062 = vld [vmem:[#allocation11 + $0x6d8] sm:$0xff]
    %v1063 = vld [vmem:[#allocation11 + $0x6e0] sm:$0xff]
    %v1064 = vld [vmem:[#allocation11 + $0x6e8] sm:$0xff]
    %v1065 = vld [vmem:[#allocation11 + $0x6f0] sm:$0xff]
    %v1066 = vld [vmem:[#allocation11 + $0x6f8] sm:$0xff]
    %v1067 = vld [vmem:[#allocation11 + $0x700] sm:$0xff]
    %v1068 = vld [vmem:[#allocation11 + $0x708] sm:$0xff]
    %v1069 = vld [vmem:[#allocation11 + $0x710] sm:$0xff]
    %v1070 = vld [vmem:[#allocation11 + $0x718] sm:$0xff]
    %v1071 = vld [vmem:[#allocation11 + $0x720] sm:$0xff]
    %v1072 = vld [vmem:[#allocation11 + $0x728] sm:$0xff]
    %v1073 = vld [vmem:[#allocation11 + $0x730] sm:$0xff]
    %v1074 = vld [vmem:[#allocation11 + $0x738] sm:$0xff]
    %v1075 = vld [vmem:[#allocation11 + $0x740] sm:$0xff]
    %v1076 = vld [vmem:[#allocation11 + $0x748] sm:$0xff]
    %v1077 = vld [vmem:[#allocation11 + $0x750] sm:$0xff]
    %v1078 = vld [vmem:[#allocation11 + $0x758] sm:$0xff]
    %v1079 = vld [vmem:[#allocation11 + $0x760] sm:$0xff]
    %v1080 = vld [vmem:[#allocation11 + $0x768] sm:$0xff]
    %v1081 = vld [vmem:[#allocation11 + $0x770] sm:$0xff]
    %v1082 = vld [vmem:[#allocation11 + $0x778] sm:$0xff]
    %v1083 = vld [vmem:[#allocation11 + $0x780] sm:$0xff]
    %v1084 = vld [vmem:[#allocation11 + $0x788] sm:$0xff]
    %v1085 = vld [vmem:[#allocation11 + $0x790] sm:$0xff]
    %v1086 = vld [vmem:[#allocation11 + $0x798] sm:$0xff]
    %v1087 = vld [vmem:[#allocation11 + $0x7a0] sm:$0xff]
    %v1088 = vld [vmem:[#allocation11 + $0x7a8] sm:$0xff]
    %v1089 = vld [vmem:[#allocation11 + $0x7b0] sm:$0xff]
    %v1090 = vld [vmem:[#allocation11 + $0x7b8] sm:$0xff]
    %v1091 = vld [vmem:[#allocation11 + $0x7c0] sm:$0xff]
    %v1092 = vld [vmem:[#allocation11 + $0x7c8] sm:$0xff]
    %v1093 = vld [vmem:[#allocation11 + $0x7d0] sm:$0xff]
    %v1094 = vld [vmem:[#allocation11 + $0x7d8] sm:$0xff]
    %v1095 = vld [vmem:[#allocation11 + $0x7e0] sm:$0xff]
    %v1096 = vld [vmem:[#allocation11 + $0x7e8] sm:$0xff]
    %v1097 = vld [vmem:[#allocation11 + $0x7f0] sm:$0xff]
    %v1098 = vld [vmem:[#allocation11 + $0x7f8] sm:$0xff]
    %v1099 = vld [vmem:[%s1] sm:$0x3]
    %v1100 = vld [vmem:[#allocation2] sm:$0xf]
    %v1101 = vld [vmem:[#allocation3] sm:$0xf]
    %v1104 = vunpack.c.l.s4 1983009808
    %v1105 = vunpack.c.0.s8 %v1104
    %v1106 = vlaneseq
    %v1107 = vshrl.u32 %v1106, 7
    %v1108 = vsub.s32 %v1105, %v1107
    %v1109 = vrot.slane %v1100, %v1108
    %v1110 = vcombine.high %v1109, %v1109
    %1113 = vmatprep.subr.mxu0 %v844
    %1114 = vmatpush1.msra.mxu0 %v843
    %1115 = vmatprep.subr.mxu0 %v852
    %1116 = vmatpush1.msra.mxu0 %v851
    %1117 = vmatprep.subr.mxu0 %v860
    %1118 = vmatpush1.msra.mxu0 %v859
    %1119 = vmatprep.subr.mxu0 %v868
    %1120 = vmatpush1.msra.mxu0 %v867
    %1121 = vmatprep.subr.mxu0 %v876
    %1122 = vmatpush1.msra.mxu0 %v875
    %1123 = vmatprep.subr.mxu0 %v884
    %1124 = vmatpush1.msra.mxu0 %v883
    %1125 = vmatprep.subr.mxu0 %v892
    %1126 = vmatpush1.msra.mxu0 %v891
    %1127 = vmatprep.subr.mxu0 %v900
    %1128 = vmatpush1.msra.mxu0 %v899
    %1129 = vmatprep.subr.mxu0 %v908
    %1130 = vmatpush1.msra.mxu0 %v907
    %1131 = vmatprep.subr.mxu0 %v916
    %1132 = vmatpush1.msra.mxu0 %v915
    %1133 = vmatprep.subr.mxu0 %v924
    %1134 = vmatpush1.msra.mxu0 %v923
    %1135 = vmatprep.subr.mxu0 %v932
    %1136 = vmatpush1.msra.mxu0 %v931
    %1137 = vmatprep.subr.mxu0 %v940
    %1138 = vmatpush1.msra.mxu0 %v939
    %1139 = vmatprep.subr.mxu0 %v948
    %1140 = vmatpush1.msra.mxu0 %v947
    %1141 = vmatprep.subr.mxu0 %v956
    %1142 = vmatpush1.msra.mxu0 %v955
    %1143 = vmatprep.subr.mxu0 %v964
    %1144 = vmatpush1.msra.mxu0 %v963
    %1145 = vmatprep.subr.mxu0 %v972
    %1146 = vmatpush1.msra.mxu0 %v971
    %1147 = vmatprep.subr.mxu0 %v980
    %1148 = vmatpush1.msra.mxu0 %v979
    %1149 = vmatprep.subr.mxu0 %v988
    %1150 = vmatpush1.msra.mxu0 %v987
    %1151 = vmatprep.subr.mxu0 %v996
    %1152 = vmatpush1.msra.mxu0 %v995
    %1153 = vmatprep.subr.mxu0 %v1004
    %1154 = vmatpush1.msra.mxu0 %v1003
    %1155 = vmatprep.subr.mxu0 %v1012
    %1156 = vmatpush1.msra.mxu0 %v1011
    %1157 = vmatprep.subr.mxu0 %v1020
    %1158 = vmatpush1.msra.mxu0 %v1019
    %1159 = vmatprep.subr.mxu0 %v1028
    %1160 = vmatpush1.msra.mxu0 %v1027
    %1161 = vmatprep.subr.mxu0 %v1036
    %1162 = vmatpush1.msra.mxu0 %v1035
    %1163 = vmatprep.subr.mxu0 %v1044
    %1164 = vmatpush1.msra.mxu0 %v1043
    %1165 = vmatprep.subr.mxu0 %v1052
    %1166 = vmatpush1.msra.mxu0 %v1051
    %1167 = vmatprep.subr.mxu0 %v1060
    %1168 = vmatpush1.msra.mxu0 %v1059
    %1169 = vmatprep.subr.mxu0 %v1068
    %1170 = vmatpush1.msra.mxu0 %v1067
    %1171 = vmatprep.subr.mxu0 %v1076
    %1172 = vmatpush1.msra.mxu0 %v1075
    %1173 = vmatprep.subr.mxu0 %v1084
    %1174 = vmatpush1.msra.mxu0 %v1083
    %1175 = vmatprep.subr.mxu0 %v1092
    %1176 = vmatpush1.msra.mxu0 %v1091
    %1177 = vmatprep.mubr.f32.mxu0 %v1110
    %1178 = vmatmul.mubr.f32.gmra.mrb[0].mxu0 %v1109
    %v1179 = vpop.f32.mrb[0].mxu0
    %v1180 = vadd.f32 0.0, %v1179
    %v1181 = vpop.f32.mrb[0].mxu0
    %v1182 = vadd.f32 0.0, %v1181
    %1183 = vdwg.mxu0
    %1184 = vmatprep.subr.mxu0 %v846
    %1185 = vmatpush1.msra.mxu0 %v845
    %1186 = vmatprep.subr.mxu0 %v854
    %1187 = vmatpush1.msra.mxu0 %v853
    %1188 = vmatprep.subr.mxu0 %v862
    %1189 = vmatpush1.msra.mxu0 %v861
    %1190 = vmatprep.subr.mxu0 %v870
    %1191 = vmatpush1.msra.mxu0 %v869
    %1192 = vmatprep.subr.mxu0 %v878
    %1193 = vmatpush1.msra.mxu0 %v877
    %1194 = vmatprep.subr.mxu0 %v886
    %1195 = vmatpush1.msra.mxu0 %v885
    %1196 = vmatprep.subr.mxu0 %v894
    %1197 = vmatpush1.msra.mxu0 %v893
    %1198 = vmatprep.subr.mxu0 %v902
    %1199 = vmatpush1.msra.mxu0 %v901
    %1200 = vmatprep.subr.mxu0 %v910
    %1201 = vmatpush1.msra.mxu0 %v909
    %1202 = vmatprep.subr.mxu0 %v918
    %1203 = vmatpush1.msra.mxu0 %v917
    %1204 = vmatprep.subr.mxu0 %v926
    %1205 = vmatpush1.msra.mxu0 %v925
    %1206 = vmatprep.subr.mxu0 %v934
    %1207 = vmatpush1.msra.mxu0 %v933
    %1208 = vmatprep.subr.mxu0 %v942
    %1209 = vmatpush1.msra.mxu0 %v941
    %1210 = vmatprep.subr.mxu0 %v950
    %1211 = vmatpush1.msra.mxu0 %v949
    %1212 = vmatprep.subr.mxu0 %v958
    %1213 = vmatpush1.msra.mxu0 %v957
    %1214 = vmatprep.subr.mxu0 %v966
    %1215 = vmatpush1.msra.mxu0 %v965
    %1216 = vmatprep.subr.mxu0 %v974
    %1217 = vmatpush1.msra.mxu0 %v973
    %1218 = vmatprep.subr.mxu0 %v982
    %1219 = vmatpush1.msra.mxu0 %v981
    %1220 = vmatprep.subr.mxu0 %v990
    %1221 = vmatpush1.msra.mxu0 %v989
    %1222 = vmatprep.subr.mxu0 %v998
    %1223 = vmatpush1.msra.mxu0 %v997
    %1224 = vmatprep.subr.mxu0 %v1006
    %1225 = vmatpush1.msra.mxu0 %v1005
    %1226 = vmatprep.subr.mxu0 %v1014
    %1227 = vmatpush1.msra.mxu0 %v1013
    %1228 = vmatprep.subr.mxu0 %v1022
    %1229 = vmatpush1.msra.mxu0 %v1021
    %1230 = vmatprep.subr.mxu0 %v1030
    %1231 = vmatpush1.msra.mxu0 %v1029
    %1232 = vmatprep.subr.mxu0 %v1038
    %1233 = vmatpush1.msra.mxu0 %v1037
    %1234 = vmatprep.subr.mxu0 %v1046
    %1235 = vmatpush1.msra.mxu0 %v1045
    %1236 = vmatprep.subr.mxu0 %v1054
    %1237 = vmatpush1.msra.mxu0 %v1053
    %1238 = vmatprep.subr.mxu0 %v1062
    %1239 = vmatpush1.msra.mxu0 %v1061
    %1240 = vmatprep.subr.mxu0 %v1070
    %1241 = vmatpush1.msra.mxu0 %v1069
    %1242 = vmatprep.subr.mxu0 %v1078
    %1243 = vmatpush1.msra.mxu0 %v1077
    %1244 = vmatprep.subr.mxu0 %v1086
    %1245 = vmatpush1.msra.mxu0 %v1085
    %1246 = vmatprep.subr.mxu0 %v1094
    %1247 = vmatpush1.msra.mxu0 %v1093
    %1248 = vmatprep.mubr.f32.mxu0 %v1110
    %1249 = vmatmul.mubr.f32.gmra.mrb[0].mxu0 %v1109
    %v1250 = vpop.f32.mrb[0].mxu0
    %v1251 = vadd.f32 0.0, %v1250
    %v1252 = vpop.f32.mrb[0].mxu0
    %v1253 = vadd.f32 0.0, %v1252
    %1254 = vdwg.mxu0
    %1255 = vmatprep.subr.mxu0 %v848
    %1256 = vmatpush1.msra.mxu0 %v847
    %1257 = vmatprep.subr.mxu0 %v856
    %1258 = vmatpush1.msra.mxu0 %v855
    %1259 = vmatprep.subr.mxu0 %v864
    %1260 = vmatpush1.msra.mxu0 %v863
    %1261 = vmatprep.subr.mxu0 %v872
    %1262 = vmatpush1.msra.mxu0 %v871
    %1263 = vmatprep.subr.mxu0 %v880
    %1264 = vmatpush1.msra.mxu0 %v879
    %1265 = vmatprep.subr.mxu0 %v888
    %1266 = vmatpush1.msra.mxu0 %v887
    %1267 = vmatprep.subr.mxu0 %v896
    %1268 = vmatpush1.msra.mxu0 %v895
    %1269 = vmatprep.subr.mxu0 %v904
    %1270 = vmatpush1.msra.mxu0 %v903
    %1271 = vmatprep.subr.mxu0 %v912
    %1272 = vmatpush1.msra.mxu0 %v911
    %1273 = vmatprep.subr.mxu0 %v920
    %1274 = vmatpush1.msra.mxu0 %v919
    %1275 = vmatprep.subr.mxu0 %v928
    %1276 = vmatpush1.msra.mxu0 %v927
    %1277 = vmatprep.subr.mxu0 %v936
    %1278 = vmatpush1.msra.mxu0 %v935
    %1279 = vmatprep.subr.mxu0 %v944
    %1280 = vmatpush1.msra.mxu0 %v943
    %1281 = vmatprep.subr.mxu0 %v952
    %1282 = vmatpush1.msra.mxu0 %v951
    %1283 = vmatprep.subr.mxu0 %v960
    %1284 = vmatpush1.msra.mxu0 %v959
    %1285 = vmatprep.subr.mxu0 %v968
    %1286 = vmatpush1.msra.mxu0 %v967
    %1287 = vmatprep.subr.mxu0 %v976
    %1288 = vmatpush1.msra.mxu0 %v975
    %1289 = vmatprep.subr.mxu0 %v984
    %1290 = vmatpush1.msra.mxu0 %v983
    %1291 = vmatprep.subr.mxu0 %v992
    %1292 = vmatpush1.msra.mxu0 %v991
    %1293 = vmatprep.subr.mxu0 %v1000
    %1294 = vmatpush1.msra.mxu0 %v999
    %1295 = vmatprep.subr.mxu0 %v1008
    %1296 = vmatpush1.msra.mxu0 %v1007
    %1297 = vmatprep.subr.mxu0 %v1016
    %1298 = vmatpush1.msra.mxu0 %v1015
    %1299 = vmatprep.subr.mxu0 %v1024
    %1300 = vmatpush1.msra.mxu0 %v1023
    %1301 = vmatprep.subr.mxu0 %v1032
    %1302 = vmatpush1.msra.mxu0 %v1031
    %1303 = vmatprep.subr.mxu0 %v1040
    %1304 = vmatpush1.msra.mxu0 %v1039
    %1305 = vmatprep.subr.mxu0 %v1048
    %1306 = vmatpush1.msra.mxu0 %v1047
    %1307 = vmatprep.subr.mxu0 %v1056
    %1308 = vmatpush1.msra.mxu0 %v1055
    %1309 = vmatprep.subr.mxu0 %v1064
    %1310 = vmatpush1.msra.mxu0 %v1063
    %1311 = vmatprep.subr.mxu0 %v1072
    %1312 = vmatpush1.msra.mxu0 %v1071
    %1313 = vmatprep.subr.mxu0 %v1080
    %1314 = vmatpush1.msra.mxu0 %v1079
    %1315 = vmatprep.subr.mxu0 %v1088
    %1316 = vmatpush1.msra.mxu0 %v1087
    %1317 = vmatprep.subr.mxu0 %v1096
    %1318 = vmatpush1.msra.mxu0 %v1095
    %1319 = vmatprep.mubr.f32.mxu0 %v1110
    %1320 = vmatmul.mubr.f32.gmra.mrb[0].mxu0 %v1109
    %v1321 = vpop.f32.mrb[0].mxu0
    %v1322 = vadd.f32 0.0, %v1321
    %v1323 = vpop.f32.mrb[0].mxu0
    %v1324 = vadd.f32 0.0, %v1323
    %1325 = vdwg.mxu0
    %1326 = vmatprep.subr.mxu0 %v850
    %1327 = vmatpush1.msra.mxu0 %v849
    %1328 = vmatprep.subr.mxu0 %v858
    %1329 = vmatpush1.msra.mxu0 %v857
    %1330 = vmatprep.subr.mxu0 %v866
    %1331 = vmatpush1.msra.mxu0 %v865
    %1332 = vmatprep.subr.mxu0 %v874
    %1333 = vmatpush1.msra.mxu0 %v873
    %1334 = vmatprep.subr.mxu0 %v882
    %1335 = vmatpush1.msra.mxu0 %v881
    %1336 = vmatprep.subr.mxu0 %v890
    %1337 = vmatpush1.msra.mxu0 %v889
    %1338 = vmatprep.subr.mxu0 %v898
    %1339 = vmatpush1.msra.mxu0 %v897
    %1340 = vmatprep.subr.mxu0 %v906
    %1341 = vmatpush1.msra.mxu0 %v905
    %1342 = vmatprep.subr.mxu0 %v914
    %1343 = vmatpush1.msra.mxu0 %v913
    %1344 = vmatprep.subr.mxu0 %v922
    %1345 = vmatpush1.msra.mxu0 %v921
    %1346 = vmatprep.subr.mxu0 %v930
    %1347 = vmatpush1.msra.mxu0 %v929
    %1348 = vmatprep.subr.mxu0 %v938
    %1349 = vmatpush1.msra.mxu0 %v937
    %1350 = vmatprep.subr.mxu0 %v946
    %1351 = vmatpush1.msra.mxu0 %v945
    %1352 = vmatprep.subr.mxu0 %v954
    %1353 = vmatpush1.msra.mxu0 %v953
    %1354 = vmatprep.subr.mxu0 %v962
    %1355 = vmatpush1.msra.mxu0 %v961
    %1356 = vmatprep.subr.mxu0 %v970
    %1357 = vmatpush1.msra.mxu0 %v969
    %1358 = vmatprep.subr.mxu0 %v978
    %1359 = vmatpush1.msra.mxu0 %v977
    %1360 = vmatprep.subr.mxu0 %v986
    %1361 = vmatpush1.msra.mxu0 %v985
    %1362 = vmatprep.subr.mxu0 %v994
    %1363 = vmatpush1.msra.mxu0 %v993
    %1364 = vmatprep.subr.mxu0 %v1002
    %1365 = vmatpush1.msra.mxu0 %v1001
    %1366 = vmatprep.subr.mxu0 %v1010
    %1367 = vmatpush1.msra.mxu0 %v1009
    %1368 = vmatprep.subr.mxu0 %v1018
    %1369 = vmatpush1.msra.mxu0 %v1017
    %1370 = vmatprep.subr.mxu0 %v1026
    %1371 = vmatpush1.msra.mxu0 %v1025
    %1372 = vmatprep.subr.mxu0 %v1034
    %1373 = vmatpush1.msra.mxu0 %v1033
    %1374 = vmatprep.subr.mxu0 %v1042
    %1375 = vmatpush1.msra.mxu0 %v1041
    %1376 = vmatprep.subr.mxu0 %v1050
    %1377 = vmatpush1.msra.mxu0 %v1049
    %1378 = vmatprep.subr.mxu0 %v1058
    %1379 = vmatpush1.msra.mxu0 %v1057
    %1380 = vmatprep.subr.mxu0 %v1066
    %1381 = vmatpush1.msra.mxu0 %v1065
    %1382 = vmatprep.subr.mxu0 %v1074
    %1383 = vmatpush1.msra.mxu0 %v1073
    %1384 = vmatprep.subr.mxu0 %v1082
    %1385 = vmatpush1.msra.mxu0 %v1081
    %1386 = vmatprep.subr.mxu0 %v1090
    %1387 = vmatpush1.msra.mxu0 %v1089
    %1388 = vmatprep.subr.mxu0 %v1098
    %1389 = vmatpush1.msra.mxu0 %v1097
    %1390 = vmatprep.mubr.f32.mxu0 %v1110
    %1391 = vmatmul.mubr.f32.gmra.mrb[0].mxu0 %v1109
    %v1392 = vpop.f32.mrb[0].mxu0
    %v1393 = vadd.f32 0.0, %v1392
    %v1394 = vpop.f32.mrb[0].mxu0
    %v1395 = vadd.f32 0.0, %v1394
    %1396 = vdwg.mxu0
    %v1397 = vadd.f32 %v602, %v1180
    %v1398 = vadd.f32 %v604, %v1182
    %v1399 = vadd.f32 %v679, %v1251
    %v1400 = vadd.f32 %v681, %v1253
    %v1401 = vadd.f32 %v756, %v1322
    %v1402 = vadd.f32 %v758, %v1324
    %v1403 = vadd.f32 %v833, %v1393
    %v1404 = vadd.f32 %v835, %v1395
    %v1405 = vxor.u32 %v1397, 2147483648
    %v1406 = vxor.u32 %v1398, 2147483648
    %v1407 = vmul.f32 %v1405, 1.442695
    %v1408 = vpow.pop %v1407
    %v1409 = vmul.f32 %v1406, 1.442695
    %v1410 = vpow.pop %v1409
    %v1411 = vadd.f32 %v1408, 1.0
    %v1412 = vadd.f32 %v1410, 1.0
    %v1413 = vrcp.pop %v1411
    %v1414 = vmul.f32 1.0, %v1413
    %v1415 = vrcp.pop %v1412
    %v1416 = vmul.f32 1.0, %v1415
    %v1417 = vxor.u32 %v1399, 2147483648
    %v1418 = vxor.u32 %v1400, 2147483648
    %v1419 = vmul.f32 %v1417, 1.442695
    %v1420 = vpow.pop %v1419
    %v1421 = vmul.f32 %v1418, 1.442695
    %v1422 = vpow.pop %v1421
    %v1423 = vadd.f32 %v1420, 1.0
    %v1424 = vadd.f32 %v1422, 1.0
    %v1425 = vrcp.pop %v1423
    %v1426 = vmul.f32 1.0, %v1425
    %v1427 = vrcp.pop %v1424
    %v1428 = vmul.f32 1.0, %v1427
    %v1429 = vtanh.pop %v1401
    %v1430 = vtanh.pop %v1402
    %v1431 = vxor.u32 %v1403, 2147483648
    %v1432 = vxor.u32 %v1404, 2147483648
    %v1433 = vmul.f32 %v1431, 1.442695
    %v1434 = vpow.pop %v1433
    %v1435 = vmul.f32 %v1432, 1.442695
    %v1436 = vpow.pop %v1435
    %v1437 = vadd.f32 %v1434, 1.0
    %v1438 = vadd.f32 %v1436, 1.0
    %v1439 = vrcp.pop %v1437
    %v1440 = vmul.f32 1.0, %v1439
    %v1441 = vrcp.pop %v1438
    %v1442 = vmul.f32 1.0, %v1441
    %v1445 = vunpack.c.l.s4 1983009808
    %v1446 = vunpack.c.0.s8 %v1445
    %v1447 = vlaneseq
    %v1448 = vshrl.u32 %v1447, 7
    %v1449 = vsub.s32 %v1446, %v1448
    %v1450 = vrot.slane %v1101, %v1449
    %v1451 = vcombine.high %v1450, %v1450
    %v1454 = vmul.f32 %v1426, %v1450
    %v1455 = vmul.f32 %v1428, %v1451
    %v1456 = vmul.f32 %v1414, %v1429
    %v1457 = vmul.f32 %v1416, %v1430
    %v1458 = vadd.f32 %v1454, %v1456
    %v1459 = vadd.f32 %v1455, %v1457
    %v1460 = vtanh.pop %v1458
    %v1461 = vtanh.pop %v1459
    %v1462 = vmul.f32 %v1440, %v1460
    %v1463 = vmul.f32 %v1442, %v1461
    %s1464 = smul.u32 0, 8
    %v1465 = vstv %s1464
    %vm1466 = vcmp.gt.s32.totalorder %v1099, %v1465
    %v1467 = vsel %vm1466, 1, 0
    %1468 = vset.pattern.permute.xlu0 0
    %1469 = vperm.xlu0 %1468, %v1467
    %v1470 = vpop.permute.xlu0 %1469
    %vm1471 = vcmp.eq.s32.totalorder %v1470, 1
    %v1472 = vsel %vm1471, %v1462, %v1109
    %v1473 = vsel %vm1471, %v1463, %v1110
    %v1476 = vcombine.low %v1472, %v1473
    %v1478 = vunpack.c.l.s4 1983009808
    %v1479 = vunpack.c.0.s8 %v1478
    %v1480 = vlaneseq
    %v1481 = vshrl.u32 %v1480, 7
    %v1482 = vsub.s32 %v1479, %v1481
    %v1483 = vrot.slane %v1476, %v1482
    %1485 = vst [vmem:[#allocation2] sm:$0xf] %v1483
    %v1486 = vsel %vm1471, %v1458, %v1450
    %v1487 = vsel %vm1471, %v1459, %v1451
    %v1490 = vcombine.low %v1486, %v1487
    %v1492 = vunpack.c.l.s4 1983009808
    %v1493 = vunpack.c.0.s8 %v1492
    %v1494 = vlaneseq
    %v1495 = vshrl.u32 %v1494, 7
    %v1496 = vsub.s32 %v1493, %v1495
    %v1497 = vrot.slane %v1490, %v1496
    %1499 = vst [vmem:[#allocation3] sm:$0xf] %v1497
    %v1500 = vsel %vm1471, %v1462, 0.0
    %v1501 = vsel %vm1471, %v1463, 0.0
    %1502 = vst [vmem:[#allocation4] sm:$0x3] %v1500
    %1503 = vst [vmem:[#allocation4 + $0x8] sm:$0x3] %v1501
    %v1504 = vld [vmem:[#allocation2] sm:$0xf]
    %v1505 = vld [vmem:[#allocation3] sm:$0xf]
    %v1508 = vunpack.c.l.s4 1983009808
    %v1509 = vunpack.c.0.s8 %v1508
    %v1510 = vlaneseq
    %v1511 = vshrl.u32 %v1510, 7
    %v1512 = vsub.s32 %v1509, %v1511
    %v1513 = vrot.slane %v1504, %v1512
    %v1514 = vcombine.high %v1513, %v1513
    %1517 = vmatprep.subr.mxu0 %v844
    %1518 = vmatpush1.msra.mxu0 %v843
    %1519 = vmatprep.subr.mxu0 %v852
    %1520 = vmatpush1.msra.mxu0 %v851
    %1521 = vmatprep.subr.mxu0 %v860
    %1522 = vmatpush1.msra.mxu0 %v859
    %1523 = vmatprep.subr.mxu0 %v868
    %1524 = vmatpush1.msra.mxu0 %v867
    %1525 = vmatprep.subr.mxu0 %v876
    %1526 = vmatpush1.msra.mxu0 %v875
    %1527 = vmatprep.subr.mxu0 %v884
    %1528 = vmatpush1.msra.mxu0 %v883
    %1529 = vmatprep.subr.mxu0 %v892
    %1530 = vmatpush1.msra.mxu0 %v891
    %1531 = vmatprep.subr.mxu0 %v900
    %1532 = vmatpush1.msra.mxu0 %v899
    %1533 = vmatprep.subr.mxu0 %v908
    %1534 = vmatpush1.msra.mxu0 %v907
    %1535 = vmatprep.subr.mxu0 %v916
    %1536 = vmatpush1.msra.mxu0 %v915
    %1537 = vmatprep.subr.mxu0 %v924
    %1538 = vmatpush1.msra.mxu0 %v923
    %1539 = vmatprep.subr.mxu0 %v932
    %1540 = vmatpush1.msra.mxu0 %v931
    %1541 = vmatprep.subr.mxu0 %v940
    %1542 = vmatpush1.msra.mxu0 %v939
    %1543 = vmatprep.subr.mxu0 %v948
    %1544 = vmatpush1.msra.mxu0 %v947
    %1545 = vmatprep.subr.mxu0 %v956
    %1546 = vmatpush1.msra.mxu0 %v955
    %1547 = vmatprep.subr.mxu0 %v964
    %1548 = vmatpush1.msra.mxu0 %v963
    %1549 = vmatprep.subr.mxu0 %v972
    %1550 = vmatpush1.msra.mxu0 %v971
    %1551 = vmatprep.subr.mxu0 %v980
    %1552 = vmatpush1.msra.mxu0 %v979
    %1553 = vmatprep.subr.mxu0 %v988
    %1554 = vmatpush1.msra.mxu0 %v987
    %1555 = vmatprep.subr.mxu0 %v996
    %1556 = vmatpush1.msra.mxu0 %v995
    %1557 = vmatprep.subr.mxu0 %v1004
    %1558 = vmatpush1.msra.mxu0 %v1003
    %1559 = vmatprep.subr.mxu0 %v1012
    %1560 = vmatpush1.msra.mxu0 %v1011
    %1561 = vmatprep.subr.mxu0 %v1020
    %1562 = vmatpush1.msra.mxu0 %v1019
    %1563 = vmatprep.subr.mxu0 %v1028
    %1564 = vmatpush1.msra.mxu0 %v1027
    %1565 = vmatprep.subr.mxu0 %v1036
    %1566 = vmatpush1.msra.mxu0 %v1035
    %1567 = vmatprep.subr.mxu0 %v1044
    %1568 = vmatpush1.msra.mxu0 %v1043
    %1569 = vmatprep.subr.mxu0 %v1052
    %1570 = vmatpush1.msra.mxu0 %v1051
    %1571 = vmatprep.subr.mxu0 %v1060
    %1572 = vmatpush1.msra.mxu0 %v1059
    %1573 = vmatprep.subr.mxu0 %v1068
    %1574 = vmatpush1.msra.mxu0 %v1067
    %1575 = vmatprep.subr.mxu0 %v1076
    %1576 = vmatpush1.msra.mxu0 %v1075
    %1577 = vmatprep.subr.mxu0 %v1084
    %1578 = vmatpush1.msra.mxu0 %v1083
    %1579 = vmatprep.subr.mxu0 %v1092
    %1580 = vmatpush1.msra.mxu0 %v1091
    %1581 = vmatprep.mubr.f32.mxu0 %v1514
    %1582 = vmatmul.mubr.f32.gmra.mrb[0].mxu0 %v1513
    %v1583 = vpop.f32.mrb[0].mxu0
    %v1584 = vadd.f32 0.0, %v1583
    %v1585 = vpop.f32.mrb[0].mxu0
    %v1586 = vadd.f32 0.0, %v1585
    %1587 = vdwg.mxu0
    %1588 = vmatprep.subr.mxu0 %v846
    %1589 = vmatpush1.msra.mxu0 %v845
    %1590 = vmatprep.subr.mxu0 %v854
    %1591 = vmatpush1.msra.mxu0 %v853
    %1592 = vmatprep.subr.mxu0 %v862
    %1593 = vmatpush1.msra.mxu0 %v861
    %1594 = vmatprep.subr.mxu0 %v870
    %1595 = vmatpush1.msra.mxu0 %v869
    %1596 = vmatprep.subr.mxu0 %v878
    %1597 = vmatpush1.msra.mxu0 %v877
    %1598 = vmatprep.subr.mxu0 %v886
    %1599 = vmatpush1.msra.mxu0 %v885
    %1600 = vmatprep.subr.mxu0 %v894
    %1601 = vmatpush1.msra.mxu0 %v893
    %1602 = vmatprep.subr.mxu0 %v902
    %1603 = vmatpush1.msra.mxu0 %v901
    %1604 = vmatprep.subr.mxu0 %v910
    %1605 = vmatpush1.msra.mxu0 %v909
    %1606 = vmatprep.subr.mxu0 %v918
    %1607 = vmatpush1.msra.mxu0 %v917
    %1608 = vmatprep.subr.mxu0 %v926
    %1609 = vmatpush1.msra.mxu0 %v925
    %1610 = vmatprep.subr.mxu0 %v934
    %1611 = vmatpush1.msra.mxu0 %v933
    %1612 = vmatprep.subr.mxu0 %v942
    %1613 = vmatpush1.msra.mxu0 %v941
    %1614 = vmatprep.subr.mxu0 %v950
    %1615 = vmatpush1.msra.mxu0 %v949
    %1616 = vmatprep.subr.mxu0 %v958
    %1617 = vmatpush1.msra.mxu0 %v957
    %1618 = vmatprep.subr.mxu0 %v966
    %1619 = vmatpush1.msra.mxu0 %v965
    %1620 = vmatprep.subr.mxu0 %v974
    %1621 = vmatpush1.msra.mxu0 %v973
    %1622 = vmatprep.subr.mxu0 %v982
    %1623 = vmatpush1.msra.mxu0 %v981
    %1624 = vmatprep.subr.mxu0 %v990
    %1625 = vmatpush1.msra.mxu0 %v989
    %1626 = vmatprep.subr.mxu0 %v998
    %1627 = vmatpush1.msra.mxu0 %v997
    %1628 = vmatprep.subr.mxu0 %v1006
    %1629 = vmatpush1.msra.mxu0 %v1005
    %1630 = vmatprep.subr.mxu0 %v1014
    %1631 = vmatpush1.msra.mxu0 %v1013
    %1632 = vmatprep.subr.mxu0 %v1022
    %1633 = vmatpush1.msra.mxu0 %v1021
    %1634 = vmatprep.subr.mxu0 %v1030
    %1635 = vmatpush1.msra.mxu0 %v1029
    %1636 = vmatprep.subr.mxu0 %v1038
    %1637 = vmatpush1.msra.mxu0 %v1037
    %1638 = vmatprep.subr.mxu0 %v1046
    %1639 = vmatpush1.msra.mxu0 %v1045
    %1640 = vmatprep.subr.mxu0 %v1054
    %1641 = vmatpush1.msra.mxu0 %v1053
    %1642 = vmatprep.subr.mxu0 %v1062
    %1643 = vmatpush1.msra.mxu0 %v1061
    %1644 = vmatprep.subr.mxu0 %v1070
    %1645 = vmatpush1.msra.mxu0 %v1069
    %1646 = vmatprep.subr.mxu0 %v1078
    %1647 = vmatpush1.msra.mxu0 %v1077
    %1648 = vmatprep.subr.mxu0 %v1086
    %1649 = vmatpush1.msra.mxu0 %v1085
    %1650 = vmatprep.subr.mxu0 %v1094
    %1651 = vmatpush1.msra.mxu0 %v1093
    %1652 = vmatprep.mubr.f32.mxu0 %v1514
    %1653 = vmatmul.mubr.f32.gmra.mrb[0].mxu0 %v1513
    %v1654 = vpop.f32.mrb[0].mxu0
    %v1655 = vadd.f32 0.0, %v1654
    %v1656 = vpop.f32.mrb[0].mxu0
    %v1657 = vadd.f32 0.0, %v1656
    %1658 = vdwg.mxu0
    %1659 = vmatprep.subr.mxu0 %v848
    %1660 = vmatpush1.msra.mxu0 %v847
    %1661 = vmatprep.subr.mxu0 %v856
    %1662 = vmatpush1.msra.mxu0 %v855
    %1663 = vmatprep.subr.mxu0 %v864
    %1664 = vmatpush1.msra.mxu0 %v863
    %1665 = vmatprep.subr.mxu0 %v872
    %1666 = vmatpush1.msra.mxu0 %v871
    %1667 = vmatprep.subr.mxu0 %v880
    %1668 = vmatpush1.msra.mxu0 %v879
    %1669 = vmatprep.subr.mxu0 %v888
    %1670 = vmatpush1.msra.mxu0 %v887
    %1671 = vmatprep.subr.mxu0 %v896
    %1672 = vmatpush1.msra.mxu0 %v895
    %1673 = vmatprep.subr.mxu0 %v904
    %1674 = vmatpush1.msra.mxu0 %v903
    %1675 = vmatprep.subr.mxu0 %v912
    %1676 = vmatpush1.msra.mxu0 %v911
    %1677 = vmatprep.subr.mxu0 %v920
    %1678 = vmatpush1.msra.mxu0 %v919
    %1679 = vmatprep.subr.mxu0 %v928
    %1680 = vmatpush1.msra.mxu0 %v927
    %1681 = vmatprep.subr.mxu0 %v936
    %1682 = vmatpush1.msra.mxu0 %v935
    %1683 = vmatprep.subr.mxu0 %v944
    %1684 = vmatpush1.msra.mxu0 %v943
    %1685 = vmatprep.subr.mxu0 %v952
    %1686 = vmatpush1.msra.mxu0 %v951
    %1687 = vmatprep.subr.mxu0 %v960
    %1688 = vmatpush1.msra.mxu0 %v959
    %1689 = vmatprep.subr.mxu0 %v968
    %1690 = vmatpush1.msra.mxu0 %v967
    %1691 = vmatprep.subr.mxu0 %v976
    %1692 = vmatpush1.msra.mxu0 %v975
    %1693 = vmatprep.subr.mxu0 %v984
    %1694 = vmatpush1.msra.mxu0 %v983
    %1695 = vmatprep.subr.mxu0 %v992
    %1696 = vmatpush1.msra.mxu0 %v991
    %1697 = vmatprep.subr.mxu0 %v1000
    %1698 = vmatpush1.msra.mxu0 %v999
    %1699 = vmatprep.subr.mxu0 %v1008
    %1700 = vmatpush1.msra.mxu0 %v1007
    %1701 = vmatprep.subr.mxu0 %v1016
    %1702 = vmatpush1.msra.mxu0 %v1015
    %1703 = vmatprep.subr.mxu0 %v1024
    %1704 = vmatpush1.msra.mxu0 %v1023
    %1705 = vmatprep.subr.mxu0 %v1032
    %1706 = vmatpush1.msra.mxu0 %v1031
    %1707 = vmatprep.subr.mxu0 %v1040
    %1708 = vmatpush1.msra.mxu0 %v1039
    %1709 = vmatprep.subr.mxu0 %v1048
    %1710 = vmatpush1.msra.mxu0 %v1047
    %1711 = vmatprep.subr.mxu0 %v1056
    %1712 = vmatpush1.msra.mxu0 %v1055
    %1713 = vmatprep.subr.mxu0 %v1064
    %1714 = vmatpush1.msra.mxu0 %v1063
    %1715 = vmatprep.subr.mxu0 %v1072
    %1716 = vmatpush1.msra.mxu0 %v1071
    %1717 = vmatprep.subr.mxu0 %v1080
    %1718 = vmatpush1.msra.mxu0 %v1079
    %1719 = vmatprep.subr.mxu0 %v1088
    %1720 = vmatpush1.msra.mxu0 %v1087
    %1721 = vmatprep.subr.mxu0 %v1096
    %1722 = vmatpush1.msra.mxu0 %v1095
    %1723 = vmatprep.mubr.f32.mxu0 %v1514
    %1724 = vmatmul.mubr.f32.gmra.mrb[0].mxu0 %v1513
    %v1725 = vpop.f32.mrb[0].mxu0
    %v1726 = vadd.f32 0.0, %v1725
    %v1727 = vpop.f32.mrb[0].mxu0
    %v1728 = vadd.f32 0.0, %v1727
    %1729 = vdwg.mxu0
    %1730 = vmatprep.subr.mxu0 %v850
    %1731 = vmatpush1.msra.mxu0 %v849
    %1732 = vmatprep.subr.mxu0 %v858
    %1733 = vmatpush1.msra.mxu0 %v857
    %1734 = vmatprep.subr.mxu0 %v866
    %1735 = vmatpush1.msra.mxu0 %v865
    %1736 = vmatprep.subr.mxu0 %v874
    %1737 = vmatpush1.msra.mxu0 %v873
    %1738 = vmatprep.subr.mxu0 %v882
    %1739 = vmatpush1.msra.mxu0 %v881
    %1740 = vmatprep.subr.mxu0 %v890
    %1741 = vmatpush1.msra.mxu0 %v889
    %1742 = vmatprep.subr.mxu0 %v898
    %1743 = vmatpush1.msra.mxu0 %v897
    %1744 = vmatprep.subr.mxu0 %v906
    %1745 = vmatpush1.msra.mxu0 %v905
    %1746 = vmatprep.subr.mxu0 %v914
    %1747 = vmatpush1.msra.mxu0 %v913
    %1748 = vmatprep.subr.mxu0 %v922
    %1749 = vmatpush1.msra.mxu0 %v921
    %1750 = vmatprep.subr.mxu0 %v930
    %1751 = vmatpush1.msra.mxu0 %v929
    %1752 = vmatprep.subr.mxu0 %v938
    %1753 = vmatpush1.msra.mxu0 %v937
    %1754 = vmatprep.subr.mxu0 %v946
    %1755 = vmatpush1.msra.mxu0 %v945
    %1756 = vmatprep.subr.mxu0 %v954
    %1757 = vmatpush1.msra.mxu0 %v953
    %1758 = vmatprep.subr.mxu0 %v962
    %1759 = vmatpush1.msra.mxu0 %v961
    %1760 = vmatprep.subr.mxu0 %v970
    %1761 = vmatpush1.msra.mxu0 %v969
    %1762 = vmatprep.subr.mxu0 %v978
    %1763 = vmatpush1.msra.mxu0 %v977
    %1764 = vmatprep.subr.mxu0 %v986
    %1765 = vmatpush1.msra.mxu0 %v985
    %1766 = vmatprep.subr.mxu0 %v994
    %1767 = vmatpush1.msra.mxu0 %v993
    %1768 = vmatprep.subr.mxu0 %v1002
    %1769 = vmatpush1.msra.mxu0 %v1001
    %1770 = vmatprep.subr.mxu0 %v1010
    %1771 = vmatpush1.msra.mxu0 %v1009
    %1772 = vmatprep.subr.mxu0 %v1018
    %1773 = vmatpush1.msra.mxu0 %v1017
    %1774 = vmatprep.subr.mxu0 %v1026
    %1775 = vmatpush1.msra.mxu0 %v1025
    %1776 = vmatprep.subr.mxu0 %v1034
    %1777 = vmatpush1.msra.mxu0 %v1033
    %1778 = vmatprep.subr.mxu0 %v1042
    %1779 = vmatpush1.msra.mxu0 %v1041
    %1780 = vmatprep.subr.mxu0 %v1050
    %1781 = vmatpush1.msra.mxu0 %v1049
    %1782 = vmatprep.subr.mxu0 %v1058
    %1783 = vmatpush1.msra.mxu0 %v1057
    %1784 = vmatprep.subr.mxu0 %v1066
    %1785 = vmatpush1.msra.mxu0 %v1065
    %1786 = vmatprep.subr.mxu0 %v1074
    %1787 = vmatpush1.msra.mxu0 %v1073
    %1788 = vmatprep.subr.mxu0 %v1082
    %1789 = vmatpush1.msra.mxu0 %v1081
    %1790 = vmatprep.subr.mxu0 %v1090
    %1791 = vmatpush1.msra.mxu0 %v1089
    %1792 = vmatprep.subr.mxu0 %v1098
    %1793 = vmatpush1.msra.mxu0 %v1097
    %1794 = vmatprep.mubr.f32.mxu0 %v1514
    %1795 = vmatmul.mubr.f32.gmra.mrb[0].mxu0 %v1513
    %v1796 = vpop.f32.mrb[0].mxu0
    %v1797 = vadd.f32 0.0, %v1796
    %v1798 = vpop.f32.mrb[0].mxu0
    %v1799 = vadd.f32 0.0, %v1798
    %1800 = vdwg.mxu0
    %v1809 = vrot.slane %v1584, 6
    %v1810 = vrot.slane %v1586, 6
    %v1811 = vrot.slane %v1655, 6
    %v1812 = vrot.slane %v1657, 6
    %v1813 = vrot.slane %v1726, 6
    %v1814 = vrot.slane %v1728, 6
    %v1815 = vrot.slane %v1797, 6
    %v1816 = vrot.slane %v1799, 6
    %v1825 = vadd.f32 %v602, %v1809
    %v1826 = vadd.f32 %v604, %v1810
    %v1827 = vadd.f32 %v679, %v1811
    %v1828 = vadd.f32 %v681, %v1812
    %v1829 = vadd.f32 %v756, %v1813
    %v1830 = vadd.f32 %v758, %v1814
    %v1831 = vadd.f32 %v833, %v1815
    %v1832 = vadd.f32 %v835, %v1816
    %v1833 = vxor.u32 %v1825, 2147483648
    %v1834 = vxor.u32 %v1826, 2147483648
    %v1835 = vmul.f32 %v1833, 1.442695
    %v1836 = vpow.pop %v1835
    %v1837 = vmul.f32 %v1834, 1.442695
    %v1838 = vpow.pop %v1837
    %v1839 = vadd.f32 %v1836, 1.0
    %v1840 = vadd.f32 %v1838, 1.0
    %v1841 = vrcp.pop %v1839
    %v1842 = vmul.f32 1.0, %v1841
    %v1843 = vrcp.pop %v1840
    %v1844 = vmul.f32 1.0, %v1843
    %v1845 = vxor.u32 %v1827, 2147483648
    %v1846 = vxor.u32 %v1828, 2147483648
    %v1847 = vmul.f32 %v1845, 1.442695
    %v1848 = vpow.pop %v1847
    %v1849 = vmul.f32 %v1846, 1.442695
    %v1850 = vpow.pop %v1849
    %v1851 = vadd.f32 %v1848, 1.0
    %v1852 = vadd.f32 %v1850, 1.0
    %v1853 = vrcp.pop %v1851
    %v1854 = vmul.f32 1.0, %v1853
    %v1855 = vrcp.pop %v1852
    %v1856 = vmul.f32 1.0, %v1855
    %v1857 = vtanh.pop %v1829
    %v1858 = vtanh.pop %v1830
    %v1859 = vxor.u32 %v1831, 2147483648
    %v1860 = vxor.u32 %v1832, 2147483648
    %v1861 = vmul.f32 %v1859, 1.442695
    %v1862 = vpow.pop %v1861
    %v1863 = vmul.f32 %v1860, 1.442695
    %v1864 = vpow.pop %v1863
    %v1865 = vadd.f32 %v1862, 1.0
    %v1866 = vadd.f32 %v1864, 1.0
    %v1867 = vrcp.pop %v1865
    %v1868 = vmul.f32 1.0, %v1867
    %v1869 = vrcp.pop %v1866
    %v1870 = vmul.f32 1.0, %v1869
    %v1872 = vcombine.low %v1505, %v1505
    %v1874 = vunpack.c.l.s4 1983009808
    %v1875 = vunpack.c.0.s8 %v1874
    %v1876 = vlaneseq
    %v1877 = vshrl.u32 %v1876, 7
    %v1878 = vsub.s32 %v1875, %v1877
    %v1879 = vrot.slane %v1872, %v1878
    %v1881 = vunpack.c.l.s4 1983009808
    %v1882 = vunpack.c.0.s8 %v1881
    %v1883 = vlaneseq
    %v1884 = vshrl.u32 %v1883, 7
    %v1885 = vsub.s32 %v1882, %v1884
    %v1886 = vrot.slane %v1505, %v1885
    %v1887 = vcombine.high %v1879, %v1879
    %v1890 = vmul.f32 %v1854, %v1879
    %v1891 = vmul.f32 %v1856, %v1887
    %v1892 = vmul.f32 %v1842, %v1857
    %v1893 = vmul.f32 %v1844, %v1858
    %v1894 = vadd.f32 %v1890, %v1892
    %v1895 = vadd.f32 %v1891, %v1893
    %v1896 = vtanh.pop %v1894
    %v1897 = vtanh.pop %v1895
    %v1898 = vmul.f32 %v1868, %v1896
    %v1899 = vmul.f32 %v1870, %v1897
    %s1900 = sadd.s32 %s1464, 1
    %v1901 = vstv %s1900
    %vm1902 = vcmp.gt.s32.totalorder %v1099, %v1901
    %v1903 = vsel %vm1902, 1, 0
    %1904 = vset.pattern.permute.xlu0 0
    %1905 = vperm.xlu0 %1904, %v1903
    %v1906 = vpop.permute.xlu0 %1905
    %vm1907 = vcmp.eq.s32.totalorder %v1906, 1
    %v1910 = vrot.slane %v1898, 2
    %v1911 = vrot.slane %v1899, 2
    %v1914 = vsel %vm1907, %v1910, %v1513
    %v1915 = vsel %vm1907, %v1911, %v1514
    %v1918 = vcombine.low %v1914, %v1915
    %v1920 = vunpack.c.l.s4 1983009808
    %v1921 = vunpack.c.0.s8 %v1920
    %v1922 = vlaneseq
    %v1923 = vshrl.u32 %v1922, 7
    %v1924 = vsub.s32 %v1921, %v1923
    %v1925 = vrot.slane %v1918, %v1924
    %1927 = vst [vmem:[#allocation2] sm:$0xf] %v1925
    %v1930 = vrot.slane %v1894, 2
    %v1931 = vrot.slane %v1895, 2
    %v1934 = vcombine.high %v1886, %v1886
    %v1937 = vsel %vm1907, %v1930, %v1886
    %v1938 = vsel %vm1907, %v1931, %v1934
    %v1941 = vcombine.low %v1937, %v1938
    %v1943 = vunpack.c.l.s4 1983009808
    %v1944 = vunpack.c.0.s8 %v1943
    %v1945 = vlaneseq
    %v1946 = vshrl.u32 %v1945, 7
    %v1947 = vsub.s32 %v1944, %v1946
    %v1948 = vrot.slane %v1941, %v1947
    %1950 = vst [vmem:[#allocation3] sm:$0xf] %v1948
    %v1951 = vsel %vm1907, %v1910, 0.0
    %v1952 = vsel %vm1907, %v1911, 0.0
    %v1955 = vrot.slane %v1951, 6
    %v1956 = vrot.slane %v1952, 6
    %1959 = vst [vmem:[#allocation4] sm:$0xc] %v1955
    %1960 = vst [vmem:[#allocation4 + $0x8] sm:$0xc] %v1956
    %v1961 = vld [vmem:[#allocation2] sm:$0xf]
    %v1962 = vld [vmem:[#allocation3] sm:$0xf]
    %v1965 = vunpack.c.l.s4 1983009808
    %v1966 = vunpack.c.0.s8 %v1965
    %v1967 = vlaneseq
    %v1968 = vshrl.u32 %v1967, 7
    %v1969 = vsub.s32 %v1966, %v1968
    %v1970 = vrot.slane %v1961, %v1969
    %v1971 = vcombine.high %v1970, %v1970
    %1974 = vmatprep.subr.mxu0 %v844
    %1975 = vmatpush1.msra.mxu0 %v843
    %1976 = vmatprep.subr.mxu0 %v852
    %1977 = vmatpush1.msra.mxu0 %v851
    %1978 = vmatprep.subr.mxu0 %v860
    %1979 = vmatpush1.msra.mxu0 %v859
    %1980 = vmatprep.subr.mxu0 %v868
    %1981 = vmatpush1.msra.mxu0 %v867
    %1982 = vmatprep.subr.mxu0 %v876
    %1983 = vmatpush1.msra.mxu0 %v875
    %1984 = vmatprep.subr.mxu0 %v884
    %1985 = vmatpush1.msra.mxu0 %v883
    %1986 = vmatprep.subr.mxu0 %v892
    %1987 = vmatpush1.msra.mxu0 %v891
    %1988 = vmatprep.subr.mxu0 %v900
    %1989 = vmatpush1.msra.mxu0 %v899
    %1990 = vmatprep.subr.mxu0 %v908
    %1991 = vmatpush1.msra.mxu0 %v907
    %1992 = vmatprep.subr.mxu0 %v916
    %1993 = vmatpush1.msra.mxu0 %v915
    %1994 = vmatprep.subr.mxu0 %v924
    %1995 = vmatpush1.msra.mxu0 %v923
    %1996 = vmatprep.subr.mxu0 %v932
    %1997 = vmatpush1.msra.mxu0 %v931
    %1998 = vmatprep.subr.mxu0 %v940
    %1999 = vmatpush1.msra.mxu0 %v939
    %2000 = vmatprep.subr.mxu0 %v948
    %2001 = vmatpush1.msra.mxu0 %v947
    %2002 = vmatprep.subr.mxu0 %v956
    %2003 = vmatpush1.msra.mxu0 %v955
    %2004 = vmatprep.subr.mxu0 %v964
    %2005 = vmatpush1.msra.mxu0 %v963
    %2006 = vmatprep.subr.mxu0 %v972
    %2007 = vmatpush1.msra.mxu0 %v971
    %2008 = vmatprep.subr.mxu0 %v980
    %2009 = vmatpush1.msra.mxu0 %v979
    %2010 = vmatprep.subr.mxu0 %v988
    %2011 = vmatpush1.msra.mxu0 %v987
    %2012 = vmatprep.subr.mxu0 %v996
    %2013 = vmatpush1.msra.mxu0 %v995
    %2014 = vmatprep.subr.mxu0 %v1004
    %2015 = vmatpush1.msra.mxu0 %v1003
    %2016 = vmatprep.subr.mxu0 %v1012
    %2017 = vmatpush1.msra.mxu0 %v1011
    %2018 = vmatprep.subr.mxu0 %v1020
    %2019 = vmatpush1.msra.mxu0 %v1019
    %2020 = vmatprep.subr.mxu0 %v1028
    %2021 = vmatpush1.msra.mxu0 %v1027
    %2022 = vmatprep.subr.mxu0 %v1036
    %2023 = vmatpush1.msra.mxu0 %v1035
    %2024 = vmatprep.subr.mxu0 %v1044
    %2025 = vmatpush1.msra.mxu0 %v1043
    %2026 = vmatprep.subr.mxu0 %v1052
    %2027 = vmatpush1.msra.mxu0 %v1051
    %2028 = vmatprep.subr.mxu0 %v1060
    %2029 = vmatpush1.msra.mxu0 %v1059
    %2030 = vmatprep.subr.mxu0 %v1068
    %2031 = vmatpush1.msra.mxu0 %v1067
    %2032 = vmatprep.subr.mxu0 %v1076
    %2033 = vmatpush1.msra.mxu0 %v1075
    %2034 = vmatprep.subr.mxu0 %v1084
    %2035 = vmatpush1.msra.mxu0 %v1083
    %2036 = vmatprep.subr.mxu0 %v1092
    %2037 = vmatpush1.msra.mxu0 %v1091
    %2038 = vmatprep.mubr.f32.mxu0 %v1971
    %2039 = vmatmul.mubr.f32.gmra.mrb[0].mxu0 %v1970
    %v2040 = vpop.f32.mrb[0].mxu0
    %v2041 = vadd.f32 0.0, %v2040
    %v2042 = vpop.f32.mrb[0].mxu0
    %v2043 = vadd.f32 0.0, %v2042
    %2044 = vdwg.mxu0
    %2045 = vmatprep.subr.mxu0 %v846
    %2046 = vmatpush1.msra.mxu0 %v845
    %2047 = vmatprep.subr.mxu0 %v854
    %2048 = vmatpush1.msra.mxu0 %v853
    %2049 = vmatprep.subr.mxu0 %v862
    %2050 = vmatpush1.msra.mxu0 %v861
    %2051 = vmatprep.subr.mxu0 %v870
    %2052 = vmatpush1.msra.mxu0 %v869
    %2053 = vmatprep.subr.mxu0 %v878
    %2054 = vmatpush1.msra.mxu0 %v877
    %2055 = vmatprep.subr.mxu0 %v886
    %2056 = vmatpush1.msra.mxu0 %v885
    %2057 = vmatprep.subr.mxu0 %v894
    %2058 = vmatpush1.msra.mxu0 %v893
    %2059 = vmatprep.subr.mxu0 %v902
    %2060 = vmatpush1.msra.mxu0 %v901
    %2061 = vmatprep.subr.mxu0 %v910
    %2062 = vmatpush1.msra.mxu0 %v909
    %2063 = vmatprep.subr.mxu0 %v918
    %2064 = vmatpush1.msra.mxu0 %v917
    %2065 = vmatprep.subr.mxu0 %v926
    %2066 = vmatpush1.msra.mxu0 %v925
    %2067 = vmatprep.subr.mxu0 %v934
    %2068 = vmatpush1.msra.mxu0 %v933
    %2069 = vmatprep.subr.mxu0 %v942
    %2070 = vmatpush1.msra.mxu0 %v941
    %2071 = vmatprep.subr.mxu0 %v950
    %2072 = vmatpush1.msra.mxu0 %v949
    %2073 = vmatprep.subr.mxu0 %v958
    %2074 = vmatpush1.msra.mxu0 %v957
    %2075 = vmatprep.subr.mxu0 %v966
    %2076 = vmatpush1.msra.mxu0 %v965
    %2077 = vmatprep.subr.mxu0 %v974
    %2078 = vmatpush1.msra.mxu0 %v973
    %2079 = vmatprep.subr.mxu0 %v982
    %2080 = vmatpush1.msra.mxu0 %v981
    %2081 = vmatprep.subr.mxu0 %v990
    %2082 = vmatpush1.msra.mxu0 %v989
    %2083 = vmatprep.subr.mxu0 %v998
    %2084 = vmatpush1.msra.mxu0 %v997
    %2085 = vmatprep.subr.mxu0 %v1006
    %2086 = vmatpush1.msra.mxu0 %v1005
    %2087 = vmatprep.subr.mxu0 %v1014
    %2088 = vmatpush1.msra.mxu0 %v1013
    %2089 = vmatprep.subr.mxu0 %v1022
    %2090 = vmatpush1.msra.mxu0 %v1021
    %2091 = vmatprep.subr.mxu0 %v1030
    %2092 = vmatpush1.msra.mxu0 %v1029
    %2093 = vmatprep.subr.mxu0 %v1038
    %2094 = vmatpush1.msra.mxu0 %v1037
    %2095 = vmatprep.subr.mxu0 %v1046
    %2096 = vmatpush1.msra.mxu0 %v1045
    %2097 = vmatprep.subr.mxu0 %v1054
    %2098 = vmatpush1.msra.mxu0 %v1053
    %2099 = vmatprep.subr.mxu0 %v1062
    %2100 = vmatpush1.msra.mxu0 %v1061
    %2101 = vmatprep.subr.mxu0 %v1070
    %2102 = vmatpush1.msra.mxu0 %v1069
    %2103 = vmatprep.subr.mxu0 %v1078
    %2104 = vmatpush1.msra.mxu0 %v1077
    %2105 = vmatprep.subr.mxu0 %v1086
    %2106 = vmatpush1.msra.mxu0 %v1085
    %2107 = vmatprep.subr.mxu0 %v1094
    %2108 = vmatpush1.msra.mxu0 %v1093
    %2109 = vmatprep.mubr.f32.mxu0 %v1971
    %2110 = vmatmul.mubr.f32.gmra.mrb[0].mxu0 %v1970
    %v2111 = vpop.f32.mrb[0].mxu0
    %v2112 = vadd.f32 0.0, %v2111
    %v2113 = vpop.f32.mrb[0].mxu0
    %v2114 = vadd.f32 0.0, %v2113
    %2115 = vdwg.mxu0
    %2116 = vmatprep.subr.mxu0 %v848
    %2117 = vmatpush1.msra.mxu0 %v847
    %2118 = vmatprep.subr.mxu0 %v856
    %2119 = vmatpush1.msra.mxu0 %v855
    %2120 = vmatprep.subr.mxu0 %v864
    %2121 = vmatpush1.msra.mxu0 %v863
    %2122 = vmatprep.subr.mxu0 %v872
    %2123 = vmatpush1.msra.mxu0 %v871
    %2124 = vmatprep.subr.mxu0 %v880
    %2125 = vmatpush1.msra.mxu0 %v879
    %2126 = vmatprep.subr.mxu0 %v888
    %2127 = vmatpush1.msra.mxu0 %v887
    %2128 = vmatprep.subr.mxu0 %v896
    %2129 = vmatpush1.msra.mxu0 %v895
    %2130 = vmatprep.subr.mxu0 %v904
    %2131 = vmatpush1.msra.mxu0 %v903
    %2132 = vmatprep.subr.mxu0 %v912
    %2133 = vmatpush1.msra.mxu0 %v911
    %2134 = vmatprep.subr.mxu0 %v920
    %2135 = vmatpush1.msra.mxu0 %v919
    %2136 = vmatprep.subr.mxu0 %v928
    %2137 = vmatpush1.msra.mxu0 %v927
    %2138 = vmatprep.subr.mxu0 %v936
    %2139 = vmatpush1.msra.mxu0 %v935
    %2140 = vmatprep.subr.mxu0 %v944
    %2141 = vmatpush1.msra.mxu0 %v943
    %2142 = vmatprep.subr.mxu0 %v952
    %2143 = vmatpush1.msra.mxu0 %v951
    %2144 = vmatprep.subr.mxu0 %v960
    %2145 = vmatpush1.msra.mxu0 %v959
    %2146 = vmatprep.subr.mxu0 %v968
    %2147 = vmatpush1.msra.mxu0 %v967
    %2148 = vmatprep.subr.mxu0 %v976
    %2149 = vmatpush1.msra.mxu0 %v975
    %2150 = vmatprep.subr.mxu0 %v984
    %2151 = vmatpush1.msra.mxu0 %v983
    %2152 = vmatprep.subr.mxu0 %v992
    %2153 = vmatpush1.msra.mxu0 %v991
    %2154 = vmatprep.subr.mxu0 %v1000
    %2155 = vmatpush1.msra.mxu0 %v999
    %2156 = vmatprep.subr.mxu0 %v1008
    %2157 = vmatpush1.msra.mxu0 %v1007
    %2158 = vmatprep.subr.mxu0 %v1016
    %2159 = vmatpush1.msra.mxu0 %v1015
    %2160 = vmatprep.subr.mxu0 %v1024
    %2161 = vmatpush1.msra.mxu0 %v1023
    %2162 = vmatprep.subr.mxu0 %v1032
    %2163 = vmatpush1.msra.mxu0 %v1031
    %2164 = vmatprep.subr.mxu0 %v1040
    %2165 = vmatpush1.msra.mxu0 %v1039
    %2166 = vmatprep.subr.mxu0 %v1048
    %2167 = vmatpush1.msra.mxu0 %v1047
    %2168 = vmatprep.subr.mxu0 %v1056
    %2169 = vmatpush1.msra.mxu0 %v1055
    %2170 = vmatprep.subr.mxu0 %v1064
    %2171 = vmatpush1.msra.mxu0 %v1063
    %2172 = vmatprep.subr.mxu0 %v1072
    %2173 = vmatpush1.msra.mxu0 %v1071
    %2174 = vmatprep.subr.mxu0 %v1080
    %2175 = vmatpush1.msra.mxu0 %v1079
    %2176 = vmatprep.subr.mxu0 %v1088
    %2177 = vmatpush1.msra.mxu0 %v1087
    %2178 = vmatprep.subr.mxu0 %v1096
    %2179 = vmatpush1.msra.mxu0 %v1095
    %2180 = vmatprep.mubr.f32.mxu0 %v1971
    %2181 = vmatmul.mubr.f32.gmra.mrb[0].mxu0 %v1970
    %v2182 = vpop.f32.mrb[0].mxu0
    %v2183 = vadd.f32 0.0, %v2182
    %v2184 = vpop.f32.mrb[0].mxu0
    %v2185 = vadd.f32 0.0, %v2184
    %2186 = vdwg.mxu0
    %2187 = vmatprep.subr.mxu0 %v850
    %2188 = vmatpush1.msra.mxu0 %v849
    %2189 = vmatprep.subr.mxu0 %v858
    %2190 = vmatpush1.msra.mxu0 %v857
    %2191 = vmatprep.subr.mxu0 %v866
    %2192 = vmatpush1.msra.mxu0 %v865
    %2193 = vmatprep.subr.mxu0 %v874
    %2194 = vmatpush1.msra.mxu0 %v873
    %2195 = vmatprep.subr.mxu0 %v882
    %2196 = vmatpush1.msra.mxu0 %v881
    %2197 = vmatprep.subr.mxu0 %v890
    %2198 = vmatpush1.msra.mxu0 %v889
    %2199 = vmatprep.subr.mxu0 %v898
    %2200 = vmatpush1.msra.mxu0 %v897
    %2201 = vmatprep.subr.mxu0 %v906
    %2202 = vmatpush1.msra.mxu0 %v905
    %2203 = vmatprep.subr.mxu0 %v914
    %2204 = vmatpush1.msra.mxu0 %v913
    %2205 = vmatprep.subr.mxu0 %v922
    %2206 = vmatpush1.msra.mxu0 %v921
    %2207 = vmatprep.subr.mxu0 %v930
    %2208 = vmatpush1.msra.mxu0 %v929
    %2209 = vmatprep.subr.mxu0 %v938
    %2210 = vmatpush1.msra.mxu0 %v937
    %2211 = vmatprep.subr.mxu0 %v946
    %2212 = vmatpush1.msra.mxu0 %v945
    %2213 = vmatprep.subr.mxu0 %v954
    %2214 = vmatpush1.msra.mxu0 %v953
    %2215 = vmatprep.subr.mxu0 %v962
    %2216 = vmatpush1.msra.mxu0 %v961
    %2217 = vmatprep.subr.mxu0 %v970
    %2218 = vmatpush1.msra.mxu0 %v969
    %2219 = vmatprep.subr.mxu0 %v978
    %2220 = vmatpush1.msra.mxu0 %v977
    %2221 = vmatprep.subr.mxu0 %v986
    %2222 = vmatpush1.msra.mxu0 %v985
    %2223 = vmatprep.subr.mxu0 %v994
    %2224 = vmatpush1.msra.mxu0 %v993
    %2225 = vmatprep.subr.mxu0 %v1002
    %2226 = vmatpush1.msra.mxu0 %v1001
    %2227 = vmatprep.subr.mxu0 %v1010
    %2228 = vmatpush1.msra.mxu0 %v1009
    %2229 = vmatprep.subr.mxu0 %v1018
    %2230 = vmatpush1.msra.mxu0 %v1017
    %2231 = vmatprep.subr.mxu0 %v1026
    %2232 = vmatpush1.msra.mxu0 %v1025
    %2233 = vmatprep.subr.mxu0 %v1034
    %2234 = vmatpush1.msra.mxu0 %v1033
    %2235 = vmatprep.subr.mxu0 %v1042
    %2236 = vmatpush1.msra.mxu0 %v1041
    %2237 = vmatprep.subr.mxu0 %v1050
    %2238 = vmatpush1.msra.mxu0 %v1049
    %2239 = vmatprep.subr.mxu0 %v1058
    %2240 = vmatpush1.msra.mxu0 %v1057
    %2241 = vmatprep.subr.mxu0 %v1066
    %2242 = vmatpush1.msra.mxu0 %v1065
    %2243 = vmatprep.subr.mxu0 %v1074
    %2244 = vmatpush1.msra.mxu0 %v1073
    %2245 = vmatprep.subr.mxu0 %v1082
    %2246 = vmatpush1.msra.mxu0 %v1081
    %2247 = vmatprep.subr.mxu0 %v1090
    %2248 = vmatpush1.msra.mxu0 %v1089
    %2249 = vmatprep.subr.mxu0 %v1098
    %2250 = vmatpush1.msra.mxu0 %v1097
    %2251 = vmatprep.mubr.f32.mxu0 %v1971
    %2252 = vmatmul.mubr.f32.gmra.mrb[0].mxu0 %v1970
    %v2253 = vpop.f32.mrb[0].mxu0
    %v2254 = vadd.f32 0.0, %v2253
    %v2255 = vpop.f32.mrb[0].mxu0
    %v2256 = vadd.f32 0.0, %v2255
    %2257 = vdwg.mxu0
    %v2266 = vrot.slane %v2041, 4
    %v2267 = vrot.slane %v2043, 4
    %v2268 = vrot.slane %v2112, 4
    %v2269 = vrot.slane %v2114, 4
    %v2270 = vrot.slane %v2183, 4
    %v2271 = vrot.slane %v2185, 4
    %v2272 = vrot.slane %v2254, 4
    %v2273 = vrot.slane %v2256, 4
    %v2282 = vadd.f32 %v602, %v2266
    %v2283 = vadd.f32 %v604, %v2267
    %v2284 = vadd.f32 %v679, %v2268
    %v2285 = vadd.f32 %v681, %v2269
    %v2286 = vadd.f32 %v756, %v2270
    %v2287 = vadd.f32 %v758, %v2271
    %v2288 = vadd.f32 %v833, %v2272
    %v2289 = vadd.f32 %v835, %v2273
    %v2290 = vxor.u32 %v2282, 2147483648
    %v2291 = vxor.u32 %v2283, 2147483648
    %v2292 = vmul.f32 %v2290, 1.442695
    %v2293 = vpow.pop %v2292
    %v2294 = vmul.f32 %v2291, 1.442695
    %v2295 = vpow.pop %v2294
    %v2296 = vadd.f32 %v2293, 1.0
    %v2297 = vadd.f32 %v2295, 1.0
    %v2298 = vrcp.pop %v2296
    %v2299 = vmul.f32 1.0, %v2298
    %v2300 = vrcp.pop %v2297
    %v2301 = vmul.f32 1.0, %v2300
    %v2302 = vxor.u32 %v2284, 2147483648
    %v2303 = vxor.u32 %v2285, 2147483648
    %v2304 = vmul.f32 %v2302, 1.442695
    %v2305 = vpow.pop %v2304
    %v2306 = vmul.f32 %v2303, 1.442695
    %v2307 = vpow.pop %v2306
    %v2308 = vadd.f32 %v2305, 1.0
    %v2309 = vadd.f32 %v2307, 1.0
    %v2310 = vrcp.pop %v2308
    %v2311 = vmul.f32 1.0, %v2310
    %v2312 = vrcp.pop %v2309
    %v2313 = vmul.f32 1.0, %v2312
    %v2314 = vtanh.pop %v2286
    %v2315 = vtanh.pop %v2287
    %v2316 = vxor.u32 %v2288, 2147483648
    %v2317 = vxor.u32 %v2289, 2147483648
    %v2318 = vmul.f32 %v2316, 1.442695
    %v2319 = vpow.pop %v2318
    %v2320 = vmul.f32 %v2317, 1.442695
    %v2321 = vpow.pop %v2320
    %v2322 = vadd.f32 %v2319, 1.0
    %v2323 = vadd.f32 %v2321, 1.0
    %v2324 = vrcp.pop %v2322
    %v2325 = vmul.f32 1.0, %v2324
    %v2326 = vrcp.pop %v2323
    %v2327 = vmul.f32 1.0, %v2326
    %v2330 = vunpack.c.l.s4 1983009808
    %v2331 = vunpack.c.0.s8 %v2330
    %v2332 = vlaneseq
    %v2333 = vshrl.u32 %v2332, 7
    %v2334 = vsub.s32 %v2331, %v2333
    %v2335 = vrot.slane %v1962, %v2334
    %v2336 = vcombine.low %v2335, %v2335
    %v2339 = vmul.f32 %v2311, %v2336
    %v2340 = vmul.f32 %v2313, %v2335
    %v2341 = vmul.f32 %v2299, %v2314
    %v2342 = vmul.f32 %v2301, %v2315
    %v2343 = vadd.f32 %v2339, %v2341
    %v2344 = vadd.f32 %v2340, %v2342
    %v2345 = vtanh.pop %v2343
    %v2346 = vtanh.pop %v2344
    %v2347 = vmul.f32 %v2325, %v2345
    %v2348 = vmul.f32 %v2327, %v2346
    %s2349 = sadd.s32 %s1464, 2
    %v2350 = vstv %s2349
    %vm2351 = vcmp.gt.s32.totalorder %v1099, %v2350
    %v2352 = vsel %vm2351, 1, 0
    %2353 = vset.pattern.permute.xlu0 0
    %2354 = vperm.xlu0 %2353, %v2352
    %v2355 = vpop.permute.xlu0 %2354
    %vm2356 = vcmp.eq.s32.totalorder %v2355, 1
    %v2359 = vrot.slane %v2347, 4
    %v2360 = vrot.slane %v2348, 4
    %v2363 = vsel %vm2356, %v2359, %v1970
    %v2364 = vsel %vm2356, %v2360, %v1971
    %v2367 = vcombine.low %v2363, %v2364
    %v2369 = vunpack.c.l.s4 1983009808
    %v2370 = vunpack.c.0.s8 %v2369
    %v2371 = vlaneseq
    %v2372 = vshrl.u32 %v2371, 7
    %v2373 = vsub.s32 %v2370, %v2372
    %v2374 = vrot.slane %v2367, %v2373
    %2376 = vst [vmem:[#allocation2] sm:$0xf] %v2374
    %v2379 = vrot.slane %v2343, 4
    %v2380 = vrot.slane %v2344, 4
    %v2383 = vcombine.high %v2335, %v2335
    %v2385 = vsel %vm2356, %v2379, %v2335
    %v2386 = vsel %vm2356, %v2380, %v2383
    %v2389 = vcombine.low %v2385, %v2386
    %v2391 = vunpack.c.l.s4 1983009808
    %v2392 = vunpack.c.0.s8 %v2391
    %v2393 = vlaneseq
    %v2394 = vshrl.u32 %v2393, 7
    %v2395 = vsub.s32 %v2392, %v2394
    %v2396 = vrot.slane %v2389, %v2395
    %2398 = vst [vmem:[#allocation3] sm:$0xf] %v2396
    %v2399 = vsel %vm2356, %v2359, 0.0
    %v2400 = vsel %vm2356, %v2360, 0.0
    %v2403 = vrot.slane %v2399, 4
    %v2404 = vrot.slane %v2400, 4
    %2407 = vst [vmem:[#allocation4] sm:$0x30] %v2403
    %2408 = vst [vmem:[#allocation4 + $0x8] sm:$0x30] %v2404
    %v2409 = vld [vmem:[#allocation2] sm:$0xf]
    %v2410 = vld [vmem:[#allocation3] sm:$0xf]
    %v2413 = vunpack.c.l.s4 1983009808
    %v2414 = vunpack.c.0.s8 %v2413
    %v2415 = vlaneseq
    %v2416 = vshrl.u32 %v2415, 7
    %v2417 = vsub.s32 %v2414, %v2416
    %v2418 = vrot.slane %v2409, %v2417
    %v2419 = vcombine.high %v2418, %v2418
    %2422 = vmatprep.subr.mxu0 %v844
    %2423 = vmatpush1.msra.mxu0 %v843
    %2424 = vmatprep.subr.mxu0 %v852
    %2425 = vmatpush1.msra.mxu0 %v851
    %2426 = vmatprep.subr.mxu0 %v860
    %2427 = vmatpush1.msra.mxu0 %v859
    %2428 = vmatprep.subr.mxu0 %v868
    %2429 = vmatpush1.msra.mxu0 %v867
    %2430 = vmatprep.subr.mxu0 %v876
    %2431 = vmatpush1.msra.mxu0 %v875
    %2432 = vmatprep.subr.mxu0 %v884
    %2433 = vmatpush1.msra.mxu0 %v883
    %2434 = vmatprep.subr.mxu0 %v892
    %2435 = vmatpush1.msra.mxu0 %v891
    %2436 = vmatprep.subr.mxu0 %v900
    %2437 = vmatpush1.msra.mxu0 %v899
    %2438 = vmatprep.subr.mxu0 %v908
    %2439 = vmatpush1.msra.mxu0 %v907
    %2440 = vmatprep.subr.mxu0 %v916
    %2441 = vmatpush1.msra.mxu0 %v915
    %2442 = vmatprep.subr.mxu0 %v924
    %2443 = vmatpush1.msra.mxu0 %v923
    %2444 = vmatprep.subr.mxu0 %v932
    %2445 = vmatpush1.msra.mxu0 %v931
    %2446 = vmatprep.subr.mxu0 %v940
    %2447 = vmatpush1.msra.mxu0 %v939
    %2448 = vmatprep.subr.mxu0 %v948
    %2449 = vmatpush1.msra.mxu0 %v947
    %2450 = vmatprep.subr.mxu0 %v956
    %2451 = vmatpush1.msra.mxu0 %v955
    %2452 = vmatprep.subr.mxu0 %v964
    %2453 = vmatpush1.msra.mxu0 %v963
    %2454 = vmatprep.subr.mxu0 %v972
    %2455 = vmatpush1.msra.mxu0 %v971
    %2456 = vmatprep.subr.mxu0 %v980
    %2457 = vmatpush1.msra.mxu0 %v979
    %2458 = vmatprep.subr.mxu0 %v988
    %2459 = vmatpush1.msra.mxu0 %v987
    %2460 = vmatprep.subr.mxu0 %v996
    %2461 = vmatpush1.msra.mxu0 %v995
    %2462 = vmatprep.subr.mxu0 %v1004
    %2463 = vmatpush1.msra.mxu0 %v1003
    %2464 = vmatprep.subr.mxu0 %v1012
    %2465 = vmatpush1.msra.mxu0 %v1011
    %2466 = vmatprep.subr.mxu0 %v1020
    %2467 = vmatpush1.msra.mxu0 %v1019
    %2468 = vmatprep.subr.mxu0 %v1028
    %2469 = vmatpush1.msra.mxu0 %v1027
    %2470 = vmatprep.subr.mxu0 %v1036
    %2471 = vmatpush1.msra.mxu0 %v1035
    %2472 = vmatprep.subr.mxu0 %v1044
    %2473 = vmatpush1.msra.mxu0 %v1043
    %2474 = vmatprep.subr.mxu0 %v1052
    %2475 = vmatpush1.msra.mxu0 %v1051
    %2476 = vmatprep.subr.mxu0 %v1060
    %2477 = vmatpush1.msra.mxu0 %v1059
    %2478 = vmatprep.subr.mxu0 %v1068
    %2479 = vmatpush1.msra.mxu0 %v1067
    %2480 = vmatprep.subr.mxu0 %v1076
    %2481 = vmatpush1.msra.mxu0 %v1075
    %2482 = vmatprep.subr.mxu0 %v1084
    %2483 = vmatpush1.msra.mxu0 %v1083
    %2484 = vmatprep.subr.mxu0 %v1092
    %2485 = vmatpush1.msra.mxu0 %v1091
    %2486 = vmatprep.mubr.f32.mxu0 %v2419
    %2487 = vmatmul.mubr.f32.gmra.mrb[0].mxu0 %v2418
    %v2488 = vpop.f32.mrb[0].mxu0
    %v2489 = vadd.f32 0.0, %v2488
    %v2490 = vpop.f32.mrb[0].mxu0
    %v2491 = vadd.f32 0.0, %v2490
    %2492 = vdwg.mxu0
    %2493 = vmatprep.subr.mxu0 %v846
    %2494 = vmatpush1.msra.mxu0 %v845
    %2495 = vmatprep.subr.mxu0 %v854
    %2496 = vmatpush1.msra.mxu0 %v853
    %2497 = vmatprep.subr.mxu0 %v862
    %2498 = vmatpush1.msra.mxu0 %v861
    %2499 = vmatprep.subr.mxu0 %v870
    %2500 = vmatpush1.msra.mxu0 %v869
    %2501 = vmatprep.subr.mxu0 %v878
    %2502 = vmatpush1.msra.mxu0 %v877
    %2503 = vmatprep.subr.mxu0 %v886
    %2504 = vmatpush1.msra.mxu0 %v885
    %2505 = vmatprep.subr.mxu0 %v894
    %2506 = vmatpush1.msra.mxu0 %v893
    %2507 = vmatprep.subr.mxu0 %v902
    %2508 = vmatpush1.msra.mxu0 %v901
    %2509 = vmatprep.subr.mxu0 %v910
    %2510 = vmatpush1.msra.mxu0 %v909
    %2511 = vmatprep.subr.mxu0 %v918
    %2512 = vmatpush1.msra.mxu0 %v917
    %2513 = vmatprep.subr.mxu0 %v926
    %2514 = vmatpush1.msra.mxu0 %v925
    %2515 = vmatprep.subr.mxu0 %v934
    %2516 = vmatpush1.msra.mxu0 %v933
    %2517 = vmatprep.subr.mxu0 %v942
    %2518 = vmatpush1.msra.mxu0 %v941
    %2519 = vmatprep.subr.mxu0 %v950
    %2520 = vmatpush1.msra.mxu0 %v949
    %2521 = vmatprep.subr.mxu0 %v958
    %2522 = vmatpush1.msra.mxu0 %v957
    %2523 = vmatprep.subr.mxu0 %v966
    %2524 = vmatpush1.msra.mxu0 %v965
    %2525 = vmatprep.subr.mxu0 %v974
    %2526 = vmatpush1.msra.mxu0 %v973
    %2527 = vmatprep.subr.mxu0 %v982
    %2528 = vmatpush1.msra.mxu0 %v981
    %2529 = vmatprep.subr.mxu0 %v990
    %2530 = vmatpush1.msra.mxu0 %v989
    %2531 = vmatprep.subr.mxu0 %v998
    %2532 = vmatpush1.msra.mxu0 %v997
    %2533 = vmatprep.subr.mxu0 %v1006
    %2534 = vmatpush1.msra.mxu0 %v1005
    %2535 = vmatprep.subr.mxu0 %v1014
    %2536 = vmatpush1.msra.mxu0 %v1013
    %2537 = vmatprep.subr.mxu0 %v1022
    %2538 = vmatpush1.msra.mxu0 %v1021
    %2539 = vmatprep.subr.mxu0 %v1030
    %2540 = vmatpush1.msra.mxu0 %v1029
    %2541 = vmatprep.subr.mxu0 %v1038
    %2542 = vmatpush1.msra.mxu0 %v1037
    %2543 = vmatprep.subr.mxu0 %v1046
    %2544 = vmatpush1.msra.mxu0 %v1045
    %2545 = vmatprep.subr.mxu0 %v1054
    %2546 = vmatpush1.msra.mxu0 %v1053
    %2547 = vmatprep.subr.mxu0 %v1062
    %2548 = vmatpush1.msra.mxu0 %v1061
    %2549 = vmatprep.subr.mxu0 %v1070
    %2550 = vmatpush1.msra.mxu0 %v1069
    %2551 = vmatprep.subr.mxu0 %v1078
    %2552 = vmatpush1.msra.mxu0 %v1077
    %2553 = vmatprep.subr.mxu0 %v1086
    %2554 = vmatpush1.msra.mxu0 %v1085
    %2555 = vmatprep.subr.mxu0 %v1094
    %2556 = vmatpush1.msra.mxu0 %v1093
    %2557 = vmatprep.mubr.f32.mxu0 %v2419
    %2558 = vmatmul.mubr.f32.gmra.mrb[0].mxu0 %v2418
    %v2559 = vpop.f32.mrb[0].mxu0
    %v2560 = vadd.f32 0.0, %v2559
    %v2561 = vpop.f32.mrb[0].mxu0
    %v2562 = vadd.f32 0.0, %v2561
    %2563 = vdwg.mxu0
    %2564 = vmatprep.subr.mxu0 %v848
    %2565 = vmatpush1.msra.mxu0 %v847
    %2566 = vmatprep.subr.mxu0 %v856
    %2567 = vmatpush1.msra.mxu0 %v855
    %2568 = vmatprep.subr.mxu0 %v864
    %2569 = vmatpush1.msra.mxu0 %v863
    %2570 = vmatprep.subr.mxu0 %v872
    %2571 = vmatpush1.msra.mxu0 %v871
    %2572 = vmatprep.subr.mxu0 %v880
    %2573 = vmatpush1.msra.mxu0 %v879
    %2574 = vmatprep.subr.mxu0 %v888
    %2575 = vmatpush1.msra.mxu0 %v887
    %2576 = vmatprep.subr.mxu0 %v896
    %2577 = vmatpush1.msra.mxu0 %v895
    %2578 = vmatprep.subr.mxu0 %v904
    %2579 = vmatpush1.msra.mxu0 %v903
    %2580 = vmatprep.subr.mxu0 %v912
    %2581 = vmatpush1.msra.mxu0 %v911
    %2582 = vmatprep.subr.mxu0 %v920
    %2583 = vmatpush1.msra.mxu0 %v919
    %2584 = vmatprep.subr.mxu0 %v928
    %2585 = vmatpush1.msra.mxu0 %v927
    %2586 = vmatprep.subr.mxu0 %v936
    %2587 = vmatpush1.msra.mxu0 %v935
    %2588 = vmatprep.subr.mxu0 %v944
    %2589 = vmatpush1.msra.mxu0 %v943
    %2590 = vmatprep.subr.mxu0 %v952
    %2591 = vmatpush1.msra.mxu0 %v951
    %2592 = vmatprep.subr.mxu0 %v960
    %2593 = vmatpush1.msra.mxu0 %v959
    %2594 = vmatprep.subr.mxu0 %v968
    %2595 = vmatpush1.msra.mxu0 %v967
    %2596 = vmatprep.subr.mxu0 %v976
    %2597 = vmatpush1.msra.mxu0 %v975
    %2598 = vmatprep.subr.mxu0 %v984
    %2599 = vmatpush1.msra.mxu0 %v983
    %2600 = vmatprep.subr.mxu0 %v992
    %2601 = vmatpush1.msra.mxu0 %v991
    %2602 = vmatprep.subr.mxu0 %v1000
    %2603 = vmatpush1.msra.mxu0 %v999
    %2604 = vmatprep.subr.mxu0 %v1008
    %2605 = vmatpush1.msra.mxu0 %v1007
    %2606 = vmatprep.subr.mxu0 %v1016
    %2607 = vmatpush1.msra.mxu0 %v1015
    %2608 = vmatprep.subr.mxu0 %v1024
    %2609 = vmatpush1.msra.mxu0 %v1023
    %2610 = vmatprep.subr.mxu0 %v1032
    %2611 = vmatpush1.msra.mxu0 %v1031
    %2612 = vmatprep.subr.mxu0 %v1040
    %2613 = vmatpush1.msra.mxu0 %v1039
    %2614 = vmatprep.subr.mxu0 %v1048
    %2615 = vmatpush1.msra.mxu0 %v1047
    %2616 = vmatprep.subr.mxu0 %v1056
    %2617 = vmatpush1.msra.mxu0 %v1055
    %2618 = vmatprep.subr.mxu0 %v1064
    %2619 = vmatpush1.msra.mxu0 %v1063
    %2620 = vmatprep.subr.mxu0 %v1072
    %2621 = vmatpush1.msra.mxu0 %v1071
    %2622 = vmatprep.subr.mxu0 %v1080
    %2623 = vmatpush1.msra.mxu0 %v1079
    %2624 = vmatprep.subr.mxu0 %v1088
    %2625 = vmatpush1.msra.mxu0 %v1087
    %2626 = vmatprep.subr.mxu0 %v1096
    %2627 = vmatpush1.msra.mxu0 %v1095
    %2628 = vmatprep.mubr.f32.mxu0 %v2419
    %2629 = vmatmul.mubr.f32.gmra.mrb[0].mxu0 %v2418
    %v2630 = vpop.f32.mrb[0].mxu0
    %v2631 = vadd.f32 0.0, %v2630
    %v2632 = vpop.f32.mrb[0].mxu0
    %v2633 = vadd.f32 0.0, %v2632
    %2634 = vdwg.mxu0
    %2635 = vmatprep.subr.mxu0 %v850
    %2636 = vmatpush1.msra.mxu0 %v849
    %2637 = vmatprep.subr.mxu0 %v858
    %2638 = vmatpush1.msra.mxu0 %v857
    %2639 = vmatprep.subr.mxu0 %v866
    %2640 = vmatpush1.msra.mxu0 %v865
    %2641 = vmatprep.subr.mxu0 %v874
    %2642 = vmatpush1.msra.mxu0 %v873
    %2643 = vmatprep.subr.mxu0 %v882
    %2644 = vmatpush1.msra.mxu0 %v881
    %2645 = vmatprep.subr.mxu0 %v890
    %2646 = vmatpush1.msra.mxu0 %v889
    %2647 = vmatprep.subr.mxu0 %v898
    %2648 = vmatpush1.msra.mxu0 %v897
    %2649 = vmatprep.subr.mxu0 %v906
    %2650 = vmatpush1.msra.mxu0 %v905
    %2651 = vmatprep.subr.mxu0 %v914
    %2652 = vmatpush1.msra.mxu0 %v913
    %2653 = vmatprep.subr.mxu0 %v922
    %2654 = vmatpush1.msra.mxu0 %v921
    %2655 = vmatprep.subr.mxu0 %v930
    %2656 = vmatpush1.msra.mxu0 %v929
    %2657 = vmatprep.subr.mxu0 %v938
    %2658 = vmatpush1.msra.mxu0 %v937
    %2659 = vmatprep.subr.mxu0 %v946
    %2660 = vmatpush1.msra.mxu0 %v945
    %2661 = vmatprep.subr.mxu0 %v954
    %2662 = vmatpush1.msra.mxu0 %v953
    %2663 = vmatprep.subr.mxu0 %v962
    %2664 = vmatpush1.msra.mxu0 %v961
    %2665 = vmatprep.subr.mxu0 %v970
    %2666 = vmatpush1.msra.mxu0 %v969
    %2667 = vmatprep.subr.mxu0 %v978
    %2668 = vmatpush1.msra.mxu0 %v977
    %2669 = vmatprep.subr.mxu0 %v986
    %2670 = vmatpush1.msra.mxu0 %v985
    %2671 = vmatprep.subr.mxu0 %v994
    %2672 = vmatpush1.msra.mxu0 %v993
    %2673 = vmatprep.subr.mxu0 %v1002
    %2674 = vmatpush1.msra.mxu0 %v1001
    %2675 = vmatprep.subr.mxu0 %v1010
    %2676 = vmatpush1.msra.mxu0 %v1009
    %2677 = vmatprep.subr.mxu0 %v1018
    %2678 = vmatpush1.msra.mxu0 %v1017
    %2679 = vmatprep.subr.mxu0 %v1026
    %2680 = vmatpush1.msra.mxu0 %v1025
    %2681 = vmatprep.subr.mxu0 %v1034
    %2682 = vmatpush1.msra.mxu0 %v1033
    %2683 = vmatprep.subr.mxu0 %v1042
    %2684 = vmatpush1.msra.mxu0 %v1041
    %2685 = vmatprep.subr.mxu0 %v1050
    %2686 = vmatpush1.msra.mxu0 %v1049
    %2687 = vmatprep.subr.mxu0 %v1058
    %2688 = vmatpush1.msra.mxu0 %v1057
    %2689 = vmatprep.subr.mxu0 %v1066
    %2690 = vmatpush1.msra.mxu0 %v1065
    %2691 = vmatprep.subr.mxu0 %v1074
    %2692 = vmatpush1.msra.mxu0 %v1073
    %2693 = vmatprep.subr.mxu0 %v1082
    %2694 = vmatpush1.msra.mxu0 %v1081
    %2695 = vmatprep.subr.mxu0 %v1090
    %2696 = vmatpush1.msra.mxu0 %v1089
    %2697 = vmatprep.subr.mxu0 %v1098
    %2698 = vmatpush1.msra.mxu0 %v1097
    %2699 = vmatprep.mubr.f32.mxu0 %v2419
    %2700 = vmatmul.mubr.f32.gmra.mrb[0].mxu0 %v2418
    %v2701 = vpop.f32.mrb[0].mxu0
    %v2702 = vadd.f32 0.0, %v2701
    %v2703 = vpop.f32.mrb[0].mxu0
    %v2704 = vadd.f32 0.0, %v2703
    %2705 = vdwg.mxu0
    %v2714 = vrot.slane %v2489, 2
    %v2715 = vrot.slane %v2491, 2
    %v2716 = vrot.slane %v2560, 2
    %v2717 = vrot.slane %v2562, 2
    %v2718 = vrot.slane %v2631, 2
    %v2719 = vrot.slane %v2633, 2
    %v2720 = vrot.slane %v2702, 2
    %v2721 = vrot.slane %v2704, 2
    %v2730 = vadd.f32 %v602, %v2714
    %v2731 = vadd.f32 %v604, %v2715
    %v2732 = vadd.f32 %v679, %v2716
    %v2733 = vadd.f32 %v681, %v2717
    %v2734 = vadd.f32 %v756, %v2718
    %v2735 = vadd.f32 %v758, %v2719
    %v2736 = vadd.f32 %v833, %v2720
    %v2737 = vadd.f32 %v835, %v2721
    %v2738 = vxor.u32 %v2730, 2147483648
    %v2739 = vxor.u32 %v2731, 2147483648
    %v2740 = vmul.f32 %v2738, 1.442695
    %v2741 = vpow.pop %v2740
    %v2742 = vmul.f32 %v2739, 1.442695
    %v2743 = vpow.pop %v2742
    %v2744 = vadd.f32 %v2741, 1.0
    %v2745 = vadd.f32 %v2743, 1.0
    %v2746 = vrcp.pop %v2744
    %v2747 = vmul.f32 1.0, %v2746
    %v2748 = vrcp.pop %v2745
    %v2749 = vmul.f32 1.0, %v2748
    %v2750 = vxor.u32 %v2732, 2147483648
    %v2751 = vxor.u32 %v2733, 2147483648
    %v2752 = vmul.f32 %v2750, 1.442695
    %v2753 = vpow.pop %v2752
    %v2754 = vmul.f32 %v2751, 1.442695
    %v2755 = vpow.pop %v2754
    %v2756 = vadd.f32 %v2753, 1.0
    %v2757 = vadd.f32 %v2755, 1.0
    %v2758 = vrcp.pop %v2756
    %v2759 = vmul.f32 1.0, %v2758
    %v2760 = vrcp.pop %v2757
    %v2761 = vmul.f32 1.0, %v2760
    %v2762 = vtanh.pop %v2734
    %v2763 = vtanh.pop %v2735
    %v2764 = vxor.u32 %v2736, 2147483648
    %v2765 = vxor.u32 %v2737, 2147483648
    %v2766 = vmul.f32 %v2764, 1.442695
    %v2767 = vpow.pop %v2766
    %v2768 = vmul.f32 %v2765, 1.442695
    %v2769 = vpow.pop %v2768
    %v2770 = vadd.f32 %v2767, 1.0
    %v2771 = vadd.f32 %v2769, 1.0
    %v2772 = vrcp.pop %v2770
    %v2773 = vmul.f32 1.0, %v2772
    %v2774 = vrcp.pop %v2771
    %v2775 = vmul.f32 1.0, %v2774
    %v2777 = vcombine.low %v2410, %v2410
    %v2779 = vunpack.c.l.s4 1983009808
    %v2780 = vunpack.c.0.s8 %v2779
    %v2781 = vlaneseq
    %v2782 = vshrl.u32 %v2781, 7
    %v2783 = vsub.s32 %v2780, %v2782
    %v2784 = vrot.slane %v2777, %v2783
    %v2786 = vunpack.c.l.s4 1983009808
    %v2787 = vunpack.c.0.s8 %v2786
    %v2788 = vlaneseq
    %v2789 = vshrl.u32 %v2788, 7
    %v2790 = vsub.s32 %v2787, %v2789
    %v2791 = vrot.slane %v2410, %v2790
    %v2792 = vcombine.low %v2784, %v2784
    %v2795 = vmul.f32 %v2759, %v2792
    %v2796 = vmul.f32 %v2761, %v2784
    %v2797 = vmul.f32 %v2747, %v2762
    %v2798 = vmul.f32 %v2749, %v2763
    %v2799 = vadd.f32 %v2795, %v2797
    %v2800 = vadd.f32 %v2796, %v2798
    %v2801 = vtanh.pop %v2799
    %v2802 = vtanh.pop %v2800
    %v2803 = vmul.f32 %v2773, %v2801
    %v2804 = vmul.f32 %v2775, %v2802
    %s2805 = sadd.s32 %s1464, 3
    %v2806 = vstv %s2805
    %vm2807 = vcmp.gt.s32.totalorder %v1099, %v2806
    %v2808 = vsel %vm2807, 1, 0
    %2809 = vset.pattern.permute.xlu0 0
    %2810 = vperm.xlu0 %2809, %v2808
    %v2811 = vpop.permute.xlu0 %2810
    %vm2812 = vcmp.eq.s32.totalorder %v2811, 1
    %v2815 = vrot.slane %v2803, 6
    %v2816 = vrot.slane %v2804, 6
    %v2819 = vsel %vm2812, %v2815, %v2418
    %v2820 = vsel %vm2812, %v2816, %v2419
    %v2823 = vcombine.low %v2819, %v2820
    %v2825 = vunpack.c.l.s4 1983009808
    %v2826 = vunpack.c.0.s8 %v2825
    %v2827 = vlaneseq
    %v2828 = vshrl.u32 %v2827, 7
    %v2829 = vsub.s32 %v2826, %v2828
    %v2830 = vrot.slane %v2823, %v2829
    %2832 = vst [vmem:[#allocation2] sm:$0xf] %v2830
    %v2835 = vrot.slane %v2799, 6
    %v2836 = vrot.slane %v2800, 6
    %v2839 = vcombine.high %v2791, %v2791
    %v2842 = vsel %vm2812, %v2835, %v2791
    %v2843 = vsel %vm2812, %v2836, %v2839
    %v2846 = vcombine.low %v2842, %v2843
    %v2848 = vunpack.c.l.s4 1983009808
    %v2849 = vunpack.c.0.s8 %v2848
    %v2850 = vlaneseq
    %v2851 = vshrl.u32 %v2850, 7
    %v2852 = vsub.s32 %v2849, %v2851
    %v2853 = vrot.slane %v2846, %v2852
    %2855 = vst [vmem:[#allocation3] sm:$0xf] %v2853
    %v2856 = vsel %vm2812, %v2815, 0.0
    %v2857 = vsel %vm2812, %v2816, 0.0
    %v2860 = vrot.slane %v2856, 2
    %v2861 = vrot.slane %v2857, 2
    %2864 = vst [vmem:[#allocation4] sm:$0xc0] %v2860
    %2865 = vst [vmem:[#allocation4 + $0x8] sm:$0xc0] %v2861
    %v2866 = vld [vmem:[#allocation2] sm:$0xf]
    %v2867 = vld [vmem:[#allocation3] sm:$0xf]
    %v2870 = vunpack.c.l.s4 1983009808
    %v2871 = vunpack.c.0.s8 %v2870
    %v2872 = vlaneseq
    %v2873 = vshrl.u32 %v2872, 7
    %v2874 = vsub.s32 %v2871, %v2873
    %v2875 = vrot.slane %v2866, %v2874
    %v2876 = vcombine.high %v2875, %v2875
    %2879 = vmatprep.subr.mxu0 %v844
    %2880 = vmatpush1.msra.mxu0 %v843
    %2881 = vmatprep.subr.mxu0 %v852
    %2882 = vmatpush1.msra.mxu0 %v851
    %2883 = vmatprep.subr.mxu0 %v860
    %2884 = vmatpush1.msra.mxu0 %v859
    %2885 = vmatprep.subr.mxu0 %v868
    %2886 = vmatpush1.msra.mxu0 %v867
    %2887 = vmatprep.subr.mxu0 %v876
    %2888 = vmatpush1.msra.mxu0 %v875
    %2889 = vmatprep.subr.mxu0 %v884
    %2890 = vmatpush1.msra.mxu0 %v883
    %2891 = vmatprep.subr.mxu0 %v892
    %2892 = vmatpush1.msra.mxu0 %v891
    %2893 = vmatprep.subr.mxu0 %v900
    %2894 = vmatpush1.msra.mxu0 %v899
    %2895 = vmatprep.subr.mxu0 %v908
    %2896 = vmatpush1.msra.mxu0 %v907
    %2897 = vmatprep.subr.mxu0 %v916
    %2898 = vmatpush1.msra.mxu0 %v915
    %2899 = vmatprep.subr.mxu0 %v924
    %2900 = vmatpush1.msra.mxu0 %v923
    %2901 = vmatprep.subr.mxu0 %v932
    %2902 = vmatpush1.msra.mxu0 %v931
    %2903 = vmatprep.subr.mxu0 %v940
    %2904 = vmatpush1.msra.mxu0 %v939
    %2905 = vmatprep.subr.mxu0 %v948
    %2906 = vmatpush1.msra.mxu0 %v947
    %2907 = vmatprep.subr.mxu0 %v956
    %2908 = vmatpush1.msra.mxu0 %v955
    %2909 = vmatprep.subr.mxu0 %v964
    %2910 = vmatpush1.msra.mxu0 %v963
    %2911 = vmatprep.subr.mxu0 %v972
    %2912 = vmatpush1.msra.mxu0 %v971
    %2913 = vmatprep.subr.mxu0 %v980
    %2914 = vmatpush1.msra.mxu0 %v979
    %2915 = vmatprep.subr.mxu0 %v988
    %2916 = vmatpush1.msra.mxu0 %v987
    %2917 = vmatprep.subr.mxu0 %v996
    %2918 = vmatpush1.msra.mxu0 %v995
    %2919 = vmatprep.subr.mxu0 %v1004
    %2920 = vmatpush1.msra.mxu0 %v1003
    %2921 = vmatprep.subr.mxu0 %v1012
    %2922 = vmatpush1.msra.mxu0 %v1011
    %2923 = vmatprep.subr.mxu0 %v1020
    %2924 = vmatpush1.msra.mxu0 %v1019
    %2925 = vmatprep.subr.mxu0 %v1028
    %2926 = vmatpush1.msra.mxu0 %v1027
    %2927 = vmatprep.subr.mxu0 %v1036
    %2928 = vmatpush1.msra.mxu0 %v1035
    %2929 = vmatprep.subr.mxu0 %v1044
    %2930 = vmatpush1.msra.mxu0 %v1043
    %2931 = vmatprep.subr.mxu0 %v1052
    %2932 = vmatpush1.msra.mxu0 %v1051
    %2933 = vmatprep.subr.mxu0 %v1060
    %2934 = vmatpush1.msra.mxu0 %v1059
    %2935 = vmatprep.subr.mxu0 %v1068
    %2936 = vmatpush1.msra.mxu0 %v1067
    %2937 = vmatprep.subr.mxu0 %v1076
    %2938 = vmatpush1.msra.mxu0 %v1075
    %2939 = vmatprep.subr.mxu0 %v1084
    %2940 = vmatpush1.msra.mxu0 %v1083
    %2941 = vmatprep.subr.mxu0 %v1092
    %2942 = vmatpush1.msra.mxu0 %v1091
    %2943 = vmatprep.mubr.f32.mxu0 %v2876
    %2944 = vmatmul.mubr.f32.gmra.mrb[0].mxu0 %v2875
    %v2945 = vpop.f32.mrb[0].mxu0
    %v2946 = vadd.f32 0.0, %v2945
    %v2947 = vpop.f32.mrb[0].mxu0
    %v2948 = vadd.f32 0.0, %v2947
    %2949 = vdwg.mxu0
    %2950 = vmatprep.subr.mxu0 %v846
    %2951 = vmatpush1.msra.mxu0 %v845
    %2952 = vmatprep.subr.mxu0 %v854
    %2953 = vmatpush1.msra.mxu0 %v853
    %2954 = vmatprep.subr.mxu0 %v862
    %2955 = vmatpush1.msra.mxu0 %v861
    %2956 = vmatprep.subr.mxu0 %v870
    %2957 = vmatpush1.msra.mxu0 %v869
    %2958 = vmatprep.subr.mxu0 %v878
    %2959 = vmatpush1.msra.mxu0 %v877
    %2960 = vmatprep.subr.mxu0 %v886
    %2961 = vmatpush1.msra.mxu0 %v885
    %2962 = vmatprep.subr.mxu0 %v894
    %2963 = vmatpush1.msra.mxu0 %v893
    %2964 = vmatprep.subr.mxu0 %v902
    %2965 = vmatpush1.msra.mxu0 %v901
    %2966 = vmatprep.subr.mxu0 %v910
    %2967 = vmatpush1.msra.mxu0 %v909
    %2968 = vmatprep.subr.mxu0 %v918
    %2969 = vmatpush1.msra.mxu0 %v917
    %2970 = vmatprep.subr.mxu0 %v926
    %2971 = vmatpush1.msra.mxu0 %v925
    %2972 = vmatprep.subr.mxu0 %v934
    %2973 = vmatpush1.msra.mxu0 %v933
    %2974 = vmatprep.subr.mxu0 %v942
    %2975 = vmatpush1.msra.mxu0 %v941
    %2976 = vmatprep.subr.mxu0 %v950
    %2977 = vmatpush1.msra.mxu0 %v949
    %2978 = vmatprep.subr.mxu0 %v958
    %2979 = vmatpush1.msra.mxu0 %v957
    %2980 = vmatprep.subr.mxu0 %v966
    %2981 = vmatpush1.msra.mxu0 %v965
    %2982 = vmatprep.subr.mxu0 %v974
    %2983 = vmatpush1.msra.mxu0 %v973
    %2984 = vmatprep.subr.mxu0 %v982
    %2985 = vmatpush1.msra.mxu0 %v981
    %2986 = vmatprep.subr.mxu0 %v990
    %2987 = vmatpush1.msra.mxu0 %v989
    %2988 = vmatprep.subr.mxu0 %v998
    %2989 = vmatpush1.msra.mxu0 %v997
    %2990 = vmatprep.subr.mxu0 %v1006
    %2991 = vmatpush1.msra.mxu0 %v1005
    %2992 = vmatprep.subr.mxu0 %v1014
    %2993 = vmatpush1.msra.mxu0 %v1013
    %2994 = vmatprep.subr.mxu0 %v1022
    %2995 = vmatpush1.msra.mxu0 %v1021
    %2996 = vmatprep.subr.mxu0 %v1030
    %2997 = vmatpush1.msra.mxu0 %v1029
    %2998 = vmatprep.subr.mxu0 %v1038
    %2999 = vmatpush1.msra.mxu0 %v1037
    %3000 = vmatprep.subr.mxu0 %v1046
    %3001 = vmatpush1.msra.mxu0 %v1045
    %3002 = vmatprep.subr.mxu0 %v1054
    %3003 = vmatpush1.msra.mxu0 %v1053
    %3004 = vmatprep.subr.mxu0 %v1062
    %3005 = vmatpush1.msra.mxu0 %v1061
    %3006 = vmatprep.subr.mxu0 %v1070
    %3007 = vmatpush1.msra.mxu0 %v1069
    %3008 = vmatprep.subr.mxu0 %v1078
    %3009 = vmatpush1.msra.mxu0 %v1077
    %3010 = vmatprep.subr.mxu0 %v1086
    %3011 = vmatpush1.msra.mxu0 %v1085
    %3012 = vmatprep.subr.mxu0 %v1094
    %3013 = vmatpush1.msra.mxu0 %v1093
    %3014 = vmatprep.mubr.f32.mxu0 %v2876
    %3015 = vmatmul.mubr.f32.gmra.mrb[0].mxu0 %v2875
    %v3016 = vpop.f32.mrb[0].mxu0
    %v3017 = vadd.f32 0.0, %v3016
    %v3018 = vpop.f32.mrb[0].mxu0
    %v3019 = vadd.f32 0.0, %v3018
    %3020 = vdwg.mxu0
    %3021 = vmatprep.subr.mxu0 %v848
    %3022 = vmatpush1.msra.mxu0 %v847
    %3023 = vmatprep.subr.mxu0 %v856
    %3024 = vmatpush1.msra.mxu0 %v855
    %3025 = vmatprep.subr.mxu0 %v864
    %3026 = vmatpush1.msra.mxu0 %v863
    %3027 = vmatprep.subr.mxu0 %v872
    %3028 = vmatpush1.msra.mxu0 %v871
    %3029 = vmatprep.subr.mxu0 %v880
    %3030 = vmatpush1.msra.mxu0 %v879
    %3031 = vmatprep.subr.mxu0 %v888
    %3032 = vmatpush1.msra.mxu0 %v887
    %3033 = vmatprep.subr.mxu0 %v896
    %3034 = vmatpush1.msra.mxu0 %v895
    %3035 = vmatprep.subr.mxu0 %v904
    %3036 = vmatpush1.msra.mxu0 %v903
    %3037 = vmatprep.subr.mxu0 %v912
    %3038 = vmatpush1.msra.mxu0 %v911
    %3039 = vmatprep.subr.mxu0 %v920
    %3040 = vmatpush1.msra.mxu0 %v919
    %3041 = vmatprep.subr.mxu0 %v928
    %3042 = vmatpush1.msra.mxu0 %v927
    %3043 = vmatprep.subr.mxu0 %v936
    %3044 = vmatpush1.msra.mxu0 %v935
    %3045 = vmatprep.subr.mxu0 %v944
    %3046 = vmatpush1.msra.mxu0 %v943
    %3047 = vmatprep.subr.mxu0 %v952
    %3048 = vmatpush1.msra.mxu0 %v951
    %3049 = vmatprep.subr.mxu0 %v960
    %3050 = vmatpush1.msra.mxu0 %v959
    %3051 = vmatprep.subr.mxu0 %v968
    %3052 = vmatpush1.msra.mxu0 %v967
    %3053 = vmatprep.subr.mxu0 %v976
    %3054 = vmatpush1.msra.mxu0 %v975
    %3055 = vmatprep.subr.mxu0 %v984
    %3056 = vmatpush1.msra.mxu0 %v983
    %3057 = vmatprep.subr.mxu0 %v992
    %3058 = vmatpush1.msra.mxu0 %v991
    %3059 = vmatprep.subr.mxu0 %v1000
    %3060 = vmatpush1.msra.mxu0 %v999
    %3061 = vmatprep.subr.mxu0 %v1008
    %3062 = vmatpush1.msra.mxu0 %v1007
    %3063 = vmatprep.subr.mxu0 %v1016
    %3064 = vmatpush1.msra.mxu0 %v1015
    %3065 = vmatprep.subr.mxu0 %v1024
    %3066 = vmatpush1.msra.mxu0 %v1023
    %3067 = vmatprep.subr.mxu0 %v1032
    %3068 = vmatpush1.msra.mxu0 %v1031
    %3069 = vmatprep.subr.mxu0 %v1040
    %3070 = vmatpush1.msra.mxu0 %v1039
    %3071 = vmatprep.subr.mxu0 %v1048
    %3072 = vmatpush1.msra.mxu0 %v1047
    %3073 = vmatprep.subr.mxu0 %v1056
    %3074 = vmatpush1.msra.mxu0 %v1055
    %3075 = vmatprep.subr.mxu0 %v1064
    %3076 = vmatpush1.msra.mxu0 %v1063
    %3077 = vmatprep.subr.mxu0 %v1072
    %3078 = vmatpush1.msra.mxu0 %v1071
    %3079 = vmatprep.subr.mxu0 %v1080
    %3080 = vmatpush1.msra.mxu0 %v1079
    %3081 = vmatprep.subr.mxu0 %v1088
    %3082 = vmatpush1.msra.mxu0 %v1087
    %3083 = vmatprep.subr.mxu0 %v1096
    %3084 = vmatpush1.msra.mxu0 %v1095
    %3085 = vmatprep.mubr.f32.mxu0 %v2876
    %3086 = vmatmul.mubr.f32.gmra.mrb[0].mxu0 %v2875
    %v3087 = vpop.f32.mrb[0].mxu0
    %v3088 = vadd.f32 0.0, %v3087
    %v3089 = vpop.f32.mrb[0].mxu0
    %v3090 = vadd.f32 0.0, %v3089
    %3091 = vdwg.mxu0
    %3092 = vmatprep.subr.mxu0 %v850
    %3093 = vmatpush1.msra.mxu0 %v849
    %3094 = vmatprep.subr.mxu0 %v858
    %3095 = vmatpush1.msra.mxu0 %v857
    %3096 = vmatprep.subr.mxu0 %v866
    %3097 = vmatpush1.msra.mxu0 %v865
    %3098 = vmatprep.subr.mxu0 %v874
    %3099 = vmatpush1.msra.mxu0 %v873
    %3100 = vmatprep.subr.mxu0 %v882
    %3101 = vmatpush1.msra.mxu0 %v881
    %3102 = vmatprep.subr.mxu0 %v890
    %3103 = vmatpush1.msra.mxu0 %v889
    %3104 = vmatprep.subr.mxu0 %v898
    %3105 = vmatpush1.msra.mxu0 %v897
    %3106 = vmatprep.subr.mxu0 %v906
    %3107 = vmatpush1.msra.mxu0 %v905
    %3108 = vmatprep.subr.mxu0 %v914
    %3109 = vmatpush1.msra.mxu0 %v913
    %3110 = vmatprep.subr.mxu0 %v922
    %3111 = vmatpush1.msra.mxu0 %v921
    %3112 = vmatprep.subr.mxu0 %v930
    %3113 = vmatpush1.msra.mxu0 %v929
    %3114 = vmatprep.subr.mxu0 %v938
    %3115 = vmatpush1.msra.mxu0 %v937
    %3116 = vmatprep.subr.mxu0 %v946
    %3117 = vmatpush1.msra.mxu0 %v945
    %3118 = vmatprep.subr.mxu0 %v954
    %3119 = vmatpush1.msra.mxu0 %v953
    %3120 = vmatprep.subr.mxu0 %v962
    %3121 = vmatpush1.msra.mxu0 %v961
    %3122 = vmatprep.subr.mxu0 %v970
    %3123 = vmatpush1.msra.mxu0 %v969
    %3124 = vmatprep.subr.mxu0 %v978
    %3125 = vmatpush1.msra.mxu0 %v977
    %3126 = vmatprep.subr.mxu0 %v986
    %3127 = vmatpush1.msra.mxu0 %v985
    %3128 = vmatprep.subr.mxu0 %v994
    %3129 = vmatpush1.msra.mxu0 %v993
    %3130 = vmatprep.subr.mxu0 %v1002
    %3131 = vmatpush1.msra.mxu0 %v1001
    %3132 = vmatprep.subr.mxu0 %v1010
    %3133 = vmatpush1.msra.mxu0 %v1009
    %3134 = vmatprep.subr.mxu0 %v1018
    %3135 = vmatpush1.msra.mxu0 %v1017
    %3136 = vmatprep.subr.mxu0 %v1026
    %3137 = vmatpush1.msra.mxu0 %v1025
    %3138 = vmatprep.subr.mxu0 %v1034
    %3139 = vmatpush1.msra.mxu0 %v1033
    %3140 = vmatprep.subr.mxu0 %v1042
    %3141 = vmatpush1.msra.mxu0 %v1041
    %3142 = vmatprep.subr.mxu0 %v1050
    %3143 = vmatpush1.msra.mxu0 %v1049
    %3144 = vmatprep.subr.mxu0 %v1058
    %3145 = vmatpush1.msra.mxu0 %v1057
    %3146 = vmatprep.subr.mxu0 %v1066
    %3147 = vmatpush1.msra.mxu0 %v1065
    %3148 = vmatprep.subr.mxu0 %v1074
    %3149 = vmatpush1.msra.mxu0 %v1073
    %3150 = vmatprep.subr.mxu0 %v1082
    %3151 = vmatpush1.msra.mxu0 %v1081
    %3152 = vmatprep.subr.mxu0 %v1090
    %3153 = vmatpush1.msra.mxu0 %v1089
    %3154 = vmatprep.subr.mxu0 %v1098
    %3155 = vmatpush1.msra.mxu0 %v1097
    %3156 = vmatprep.mubr.f32.mxu0 %v2876
    %3157 = vmatmul.mubr.f32.gmra.mrb[0].mxu0 %v2875
    %v3158 = vpop.f32.mrb[0].mxu0
    %v3159 = vadd.f32 0.0, %v3158
    %v3160 = vpop.f32.mrb[0].mxu0
    %v3161 = vadd.f32 0.0, %v3160
    %3162 = vdwg.mxu0
    %v3163 = vadd.f32 %v608, %v2946
    %v3164 = vadd.f32 %v610, %v2948
    %v3165 = vadd.f32 %v685, %v3017
    %v3166 = vadd.f32 %v687, %v3019
    %v3167 = vadd.f32 %v762, %v3088
    %v3168 = vadd.f32 %v764, %v3090
    %v3169 = vadd.f32 %v839, %v3159
    %v3170 = vadd.f32 %v841, %v3161
    %v3171 = vxor.u32 %v3163, 2147483648
    %v3172 = vxor.u32 %v3164, 2147483648
    %v3173 = vmul.f32 %v3171, 1.442695
    %v3174 = vpow.pop %v3173
    %v3175 = vmul.f32 %v3172, 1.442695
    %v3176 = vpow.pop %v3175
    %v3177 = vadd.f32 %v3174, 1.0
    %v3178 = vadd.f32 %v3176, 1.0
    %v3179 = vrcp.pop %v3177
    %v3180 = vmul.f32 1.0, %v3179
    %v3181 = vrcp.pop %v3178
    %v3182 = vmul.f32 1.0, %v3181
    %v3183 = vxor.u32 %v3165, 2147483648
    %v3184 = vxor.u32 %v3166, 2147483648
    %v3185 = vmul.f32 %v3183, 1.442695
    %v3186 = vpow.pop %v3185
    %v3187 = vmul.f32 %v3184, 1.442695
    %v3188 = vpow.pop %v3187
    %v3189 = vadd.f32 %v3186, 1.0
    %v3190 = vadd.f32 %v3188, 1.0
    %v3191 = vrcp.pop %v3189
    %v3192 = vmul.f32 1.0, %v3191
    %v3193 = vrcp.pop %v3190
    %v3194 = vmul.f32 1.0, %v3193
    %v3195 = vtanh.pop %v3167
    %v3196 = vtanh.pop %v3168
    %v3197 = vxor.u32 %v3169, 2147483648
    %v3198 = vxor.u32 %v3170, 2147483648
    %v3199 = vmul.f32 %v3197, 1.442695
    %v3200 = vpow.pop %v3199
    %v3201 = vmul.f32 %v3198, 1.442695
    %v3202 = vpow.pop %v3201
    %v3203 = vadd.f32 %v3200, 1.0
    %v3204 = vadd.f32 %v3202, 1.0
    %v3205 = vrcp.pop %v3203
    %v3206 = vmul.f32 1.0, %v3205
    %v3207 = vrcp.pop %v3204
    %v3208 = vmul.f32 1.0, %v3207
    %v3211 = vunpack.c.l.s4 1983009808
    %v3212 = vunpack.c.0.s8 %v3211
    %v3213 = vlaneseq
    %v3214 = vshrl.u32 %v3213, 7
    %v3215 = vsub.s32 %v3212, %v3214
    %v3216 = vrot.slane %v2867, %v3215
    %v3217 = vcombine.high %v3216, %v3216
    %v3220 = vmul.f32 %v3192, %v3216
    %v3221 = vmul.f32 %v3194, %v3217
    %v3222 = vmul.f32 %v3180, %v3195
    %v3223 = vmul.f32 %v3182, %v3196
    %v3224 = vadd.f32 %v3220, %v3222
    %v3225 = vadd.f32 %v3221, %v3223
    %v3226 = vtanh.pop %v3224
    %v3227 = vtanh.pop %v3225
    %v3228 = vmul.f32 %v3206, %v3226
    %v3229 = vmul.f32 %v3208, %v3227
    %s3230 = sadd.s32 %s1464, 4
    %v3231 = vstv %s3230
    %vm3232 = vcmp.gt.s32.totalorder %v1099, %v3231
    %v3233 = vsel %vm3232, 1, 0
    %3234 = vset.pattern.permute.xlu0 0
    %3235 = vperm.xlu0 %3234, %v3233
    %v3236 = vpop.permute.xlu0 %3235
    %vm3237 = vcmp.eq.s32.totalorder %v3236, 1
    %v3238 = vsel %vm3237, %v3228, %v2875
    %v3239 = vsel %vm3237, %v3229, %v2876
    %v3242 = vcombine.low %v3238, %v3239
    %v3244 = vunpack.c.l.s4 1983009808
    %v3245 = vunpack.c.0.s8 %v3244
    %v3246 = vlaneseq
    %v3247 = vshrl.u32 %v3246, 7
    %v3248 = vsub.s32 %v3245, %v3247
    %v3249 = vrot.slane %v3242, %v3248
    %3251 = vst [vmem:[#allocation2] sm:$0xf] %v3249
    %v3252 = vsel %vm3237, %v3224, %v3216
    %v3253 = vsel %vm3237, %v3225, %v3217
    %v3256 = vcombine.low %v3252, %v3253
    %v3258 = vunpack.c.l.s4 1983009808
    %v3259 = vunpack.c.0.s8 %v3258
    %v3260 = vlaneseq
    %v3261 = vshrl.u32 %v3260, 7
    %v3262 = vsub.s32 %v3259, %v3261
    %v3263 = vrot.slane %v3256, %v3262
    %3265 = vst [vmem:[#allocation3] sm:$0xf] %v3263
    %v3266 = vsel %vm3237, %v3228, 0.0
    %v3267 = vsel %vm3237, %v3229, 0.0
    %3268 = vst [vmem:[#allocation4 + $0x10] sm:$0x3] %v3266
    %3269 = vst [vmem:[#allocation4 + $0x18] sm:$0x3] %v3267
    %v3270 = vld [vmem:[#allocation2] sm:$0xf]
    %v3271 = vld [vmem:[#allocation3] sm:$0xf]
    %v3274 = vunpack.c.l.s4 1983009808
    %v3275 = vunpack.c.0.s8 %v3274
    %v3276 = vlaneseq
    %v3277 = vshrl.u32 %v3276, 7
    %v3278 = vsub.s32 %v3275, %v3277
    %v3279 = vrot.slane %v3270, %v3278
    %v3280 = vcombine.high %v3279, %v3279
    %3283 = vmatprep.subr.mxu0 %v844
    %3284 = vmatpush1.msra.mxu0 %v843
    %3285 = vmatprep.subr.mxu0 %v852
    %3286 = vmatpush1.msra.mxu0 %v851
    %3287 = vmatprep.subr.mxu0 %v860
    %3288 = vmatpush1.msra.mxu0 %v859
    %3289 = vmatprep.subr.mxu0 %v868
    %3290 = vmatpush1.msra.mxu0 %v867
    %3291 = vmatprep.subr.mxu0 %v876
    %3292 = vmatpush1.msra.mxu0 %v875
    %3293 = vmatprep.subr.mxu0 %v884
    %3294 = vmatpush1.msra.mxu0 %v883
    %3295 = vmatprep.subr.mxu0 %v892
    %3296 = vmatpush1.msra.mxu0 %v891
    %3297 = vmatprep.subr.mxu0 %v900
    %3298 = vmatpush1.msra.mxu0 %v899
    %3299 = vmatprep.subr.mxu0 %v908
    %3300 = vmatpush1.msra.mxu0 %v907
    %3301 = vmatprep.subr.mxu0 %v916
    %3302 = vmatpush1.msra.mxu0 %v915
    %3303 = vmatprep.subr.mxu0 %v924
    %3304 = vmatpush1.msra.mxu0 %v923
    %3305 = vmatprep.subr.mxu0 %v932
    %3306 = vmatpush1.msra.mxu0 %v931
    %3307 = vmatprep.subr.mxu0 %v940
    %3308 = vmatpush1.msra.mxu0 %v939
    %3309 = vmatprep.subr.mxu0 %v948
    %3310 = vmatpush1.msra.mxu0 %v947
    %3311 = vmatprep.subr.mxu0 %v956
    %3312 = vmatpush1.msra.mxu0 %v955
    %3313 = vmatprep.subr.mxu0 %v964
    %3314 = vmatpush1.msra.mxu0 %v963
    %3315 = vmatprep.subr.mxu0 %v972
    %3316 = vmatpush1.msra.mxu0 %v971
    %3317 = vmatprep.subr.mxu0 %v980
    %3318 = vmatpush1.msra.mxu0 %v979
    %3319 = vmatprep.subr.mxu0 %v988
    %3320 = vmatpush1.msra.mxu0 %v987
    %3321 = vmatprep.subr.mxu0 %v996
    %3322 = vmatpush1.msra.mxu0 %v995
    %3323 = vmatprep.subr.mxu0 %v1004
    %3324 = vmatpush1.msra.mxu0 %v1003
    %3325 = vmatprep.subr.mxu0 %v1012
    %3326 = vmatpush1.msra.mxu0 %v1011
    %3327 = vmatprep.subr.mxu0 %v1020
    %3328 = vmatpush1.msra.mxu0 %v1019
    %3329 = vmatprep.subr.mxu0 %v1028
    %3330 = vmatpush1.msra.mxu0 %v1027
    %3331 = vmatprep.subr.mxu0 %v1036
    %3332 = vmatpush1.msra.mxu0 %v1035
    %3333 = vmatprep.subr.mxu0 %v1044
    %3334 = vmatpush1.msra.mxu0 %v1043
    %3335 = vmatprep.subr.mxu0 %v1052
    %3336 = vmatpush1.msra.mxu0 %v1051
    %3337 = vmatprep.subr.mxu0 %v1060
    %3338 = vmatpush1.msra.mxu0 %v1059
    %3339 = vmatprep.subr.mxu0 %v1068
    %3340 = vmatpush1.msra.mxu0 %v1067
    %3341 = vmatprep.subr.mxu0 %v1076
    %3342 = vmatpush1.msra.mxu0 %v1075
    %3343 = vmatprep.subr.mxu0 %v1084
    %3344 = vmatpush1.msra.mxu0 %v1083
    %3345 = vmatprep.subr.mxu0 %v1092
    %3346 = vmatpush1.msra.mxu0 %v1091
    %3347 = vmatprep.mubr.f32.mxu0 %v3280
    %3348 = vmatmul.mubr.f32.gmra.mrb[0].mxu0 %v3279
    %v3349 = vpop.f32.mrb[0].mxu0
    %v3350 = vadd.f32 0.0, %v3349
    %v3351 = vpop.f32.mrb[0].mxu0
    %v3352 = vadd.f32 0.0, %v3351
    %3353 = vdwg.mxu0
    %3354 = vmatprep.subr.mxu0 %v846
    %3355 = vmatpush1.msra.mxu0 %v845
    %3356 = vmatprep.subr.mxu0 %v854
    %3357 = vmatpush1.msra.mxu0 %v853
    %3358 = vmatprep.subr.mxu0 %v862
    %3359 = vmatpush1.msra.mxu0 %v861
    %3360 = vmatprep.subr.mxu0 %v870
    %3361 = vmatpush1.msra.mxu0 %v869
    %3362 = vmatprep.subr.mxu0 %v878
    %3363 = vmatpush1.msra.mxu0 %v877
    %3364 = vmatprep.subr.mxu0 %v886
    %3365 = vmatpush1.msra.mxu0 %v885
    %3366 = vmatprep.subr.mxu0 %v894
    %3367 = vmatpush1.msra.mxu0 %v893
    %3368 = vmatprep.subr.mxu0 %v902
    %3369 = vmatpush1.msra.mxu0 %v901
    %3370 = vmatprep.subr.mxu0 %v910
    %3371 = vmatpush1.msra.mxu0 %v909
    %3372 = vmatprep.subr.mxu0 %v918
    %3373 = vmatpush1.msra.mxu0 %v917
    %3374 = vmatprep.subr.mxu0 %v926
    %3375 = vmatpush1.msra.mxu0 %v925
    %3376 = vmatprep.subr.mxu0 %v934
    %3377 = vmatpush1.msra.mxu0 %v933
    %3378 = vmatprep.subr.mxu0 %v942
    %3379 = vmatpush1.msra.mxu0 %v941
    %3380 = vmatprep.subr.mxu0 %v950
    %3381 = vmatpush1.msra.mxu0 %v949
    %3382 = vmatprep.subr.mxu0 %v958
    %3383 = vmatpush1.msra.mxu0 %v957
    %3384 = vmatprep.subr.mxu0 %v966
    %3385 = vmatpush1.msra.mxu0 %v965
    %3386 = vmatprep.subr.mxu0 %v974
    %3387 = vmatpush1.msra.mxu0 %v973
    %3388 = vmatprep.subr.mxu0 %v982
    %3389 = vmatpush1.msra.mxu0 %v981
    %3390 = vmatprep.subr.mxu0 %v990
    %3391 = vmatpush1.msra.mxu0 %v989
    %3392 = vmatprep.subr.mxu0 %v998
    %3393 = vmatpush1.msra.mxu0 %v997
    %3394 = vmatprep.subr.mxu0 %v1006
    %3395 = vmatpush1.msra.mxu0 %v1005
    %3396 = vmatprep.subr.mxu0 %v1014
    %3397 = vmatpush1.msra.mxu0 %v1013
    %3398 = vmatprep.subr.mxu0 %v1022
    %3399 = vmatpush1.msra.mxu0 %v1021
    %3400 = vmatprep.subr.mxu0 %v1030
    %3401 = vmatpush1.msra.mxu0 %v1029
    %3402 = vmatprep.subr.mxu0 %v1038
    %3403 = vmatpush1.msra.mxu0 %v1037
    %3404 = vmatprep.subr.mxu0 %v1046
    %3405 = vmatpush1.msra.mxu0 %v1045
    %3406 = vmatprep.subr.mxu0 %v1054
    %3407 = vmatpush1.msra.mxu0 %v1053
    %3408 = vmatprep.subr.mxu0 %v1062
    %3409 = vmatpush1.msra.mxu0 %v1061
    %3410 = vmatprep.subr.mxu0 %v1070
    %3411 = vmatpush1.msra.mxu0 %v1069
    %3412 = vmatprep.subr.mxu0 %v1078
    %3413 = vmatpush1.msra.mxu0 %v1077
    %3414 = vmatprep.subr.mxu0 %v1086
    %3415 = vmatpush1.msra.mxu0 %v1085
    %3416 = vmatprep.subr.mxu0 %v1094
    %3417 = vmatpush1.msra.mxu0 %v1093
    %3418 = vmatprep.mubr.f32.mxu0 %v3280
    %3419 = vmatmul.mubr.f32.gmra.mrb[0].mxu0 %v3279
    %v3420 = vpop.f32.mrb[0].mxu0
    %v3421 = vadd.f32 0.0, %v3420
    %v3422 = vpop.f32.mrb[0].mxu0
    %v3423 = vadd.f32 0.0, %v3422
    %3424 = vdwg.mxu0
    %3425 = vmatprep.subr.mxu0 %v848
    %3426 = vmatpush1.msra.mxu0 %v847
    %3427 = vmatprep.subr.mxu0 %v856
    %3428 = vmatpush1.msra.mxu0 %v855
    %3429 = vmatprep.subr.mxu0 %v864
    %3430 = vmatpush1.msra.mxu0 %v863
    %3431 = vmatprep.subr.mxu0 %v872
    %3432 = vmatpush1.msra.mxu0 %v871
    %3433 = vmatprep.subr.mxu0 %v880
    %3434 = vmatpush1.msra.mxu0 %v879
    %3435 = vmatprep.subr.mxu0 %v888
    %3436 = vmatpush1.msra.mxu0 %v887
    %3437 = vmatprep.subr.mxu0 %v896
    %3438 = vmatpush1.msra.mxu0 %v895
    %3439 = vmatprep.subr.mxu0 %v904
    %3440 = vmatpush1.msra.mxu0 %v903
    %3441 = vmatprep.subr.mxu0 %v912
    %3442 = vmatpush1.msra.mxu0 %v911
    %3443 = vmatprep.subr.mxu0 %v920
    %3444 = vmatpush1.msra.mxu0 %v919
    %3445 = vmatprep.subr.mxu0 %v928
    %3446 = vmatpush1.msra.mxu0 %v927
    %3447 = vmatprep.subr.mxu0 %v936
    %3448 = vmatpush1.msra.mxu0 %v935
    %3449 = vmatprep.subr.mxu0 %v944
    %3450 = vmatpush1.msra.mxu0 %v943
    %3451 = vmatprep.subr.mxu0 %v952
    %3452 = vmatpush1.msra.mxu0 %v951
    %3453 = vmatprep.subr.mxu0 %v960
    %3454 = vmatpush1.msra.mxu0 %v959
    %3455 = vmatprep.subr.mxu0 %v968
    %3456 = vmatpush1.msra.mxu0 %v967
    %3457 = vmatprep.subr.mxu0 %v976
    %3458 = vmatpush1.msra.mxu0 %v975
    %3459 = vmatprep.subr.mxu0 %v984
    %3460 = vmatpush1.msra.mxu0 %v983
    %3461 = vmatprep.subr.mxu0 %v992
    %3462 = vmatpush1.msra.mxu0 %v991
    %3463 = vmatprep.subr.mxu0 %v1000
    %3464 = vmatpush1.msra.mxu0 %v999
    %3465 = vmatprep.subr.mxu0 %v1008
    %3466 = vmatpush1.msra.mxu0 %v1007
    %3467 = vmatprep.subr.mxu0 %v1016
    %3468 = vmatpush1.msra.mxu0 %v1015
    %3469 = vmatprep.subr.mxu0 %v1024
    %3470 = vmatpush1.msra.mxu0 %v1023
    %3471 = vmatprep.subr.mxu0 %v1032
    %3472 = vmatpush1.msra.mxu0 %v1031
    %3473 = vmatprep.subr.mxu0 %v1040
    %3474 = vmatpush1.msra.mxu0 %v1039
    %3475 = vmatprep.subr.mxu0 %v1048
    %3476 = vmatpush1.msra.mxu0 %v1047
    %3477 = vmatprep.subr.mxu0 %v1056
    %3478 = vmatpush1.msra.mxu0 %v1055
    %3479 = vmatprep.subr.mxu0 %v1064
    %3480 = vmatpush1.msra.mxu0 %v1063
    %3481 = vmatprep.subr.mxu0 %v1072
    %3482 = vmatpush1.msra.mxu0 %v1071
    %3483 = vmatprep.subr.mxu0 %v1080
    %3484 = vmatpush1.msra.mxu0 %v1079
    %3485 = vmatprep.subr.mxu0 %v1088
    %3486 = vmatpush1.msra.mxu0 %v1087
    %3487 = vmatprep.subr.mxu0 %v1096
    %3488 = vmatpush1.msra.mxu0 %v1095
    %3489 = vmatprep.mubr.f32.mxu0 %v3280
    %3490 = vmatmul.mubr.f32.gmra.mrb[0].mxu0 %v3279
    %v3491 = vpop.f32.mrb[0].mxu0
    %v3492 = vadd.f32 0.0, %v3491
    %v3493 = vpop.f32.mrb[0].mxu0
    %v3494 = vadd.f32 0.0, %v3493
    %3495 = vdwg.mxu0
    %3496 = vmatprep.subr.mxu0 %v850
    %3497 = vmatpush1.msra.mxu0 %v849
    %3498 = vmatprep.subr.mxu0 %v858
    %3499 = vmatpush1.msra.mxu0 %v857
    %3500 = vmatprep.subr.mxu0 %v866
    %3501 = vmatpush1.msra.mxu0 %v865
    %3502 = vmatprep.subr.mxu0 %v874
    %3503 = vmatpush1.msra.mxu0 %v873
    %3504 = vmatprep.subr.mxu0 %v882
    %3505 = vmatpush1.msra.mxu0 %v881
    %3506 = vmatprep.subr.mxu0 %v890
    %3507 = vmatpush1.msra.mxu0 %v889
    %3508 = vmatprep.subr.mxu0 %v898
    %3509 = vmatpush1.msra.mxu0 %v897
    %3510 = vmatprep.subr.mxu0 %v906
    %3511 = vmatpush1.msra.mxu0 %v905
    %3512 = vmatprep.subr.mxu0 %v914
    %3513 = vmatpush1.msra.mxu0 %v913
    %3514 = vmatprep.subr.mxu0 %v922
    %3515 = vmatpush1.msra.mxu0 %v921
    %3516 = vmatprep.subr.mxu0 %v930
    %3517 = vmatpush1.msra.mxu0 %v929
    %3518 = vmatprep.subr.mxu0 %v938
    %3519 = vmatpush1.msra.mxu0 %v937
    %3520 = vmatprep.subr.mxu0 %v946
    %3521 = vmatpush1.msra.mxu0 %v945
    %3522 = vmatprep.subr.mxu0 %v954
    %3523 = vmatpush1.msra.mxu0 %v953
    %3524 = vmatprep.subr.mxu0 %v962
    %3525 = vmatpush1.msra.mxu0 %v961
    %3526 = vmatprep.subr.mxu0 %v970
    %3527 = vmatpush1.msra.mxu0 %v969
    %3528 = vmatprep.subr.mxu0 %v978
    %3529 = vmatpush1.msra.mxu0 %v977
    %3530 = vmatprep.subr.mxu0 %v986
    %3531 = vmatpush1.msra.mxu0 %v985
    %3532 = vmatprep.subr.mxu0 %v994
    %3533 = vmatpush1.msra.mxu0 %v993
    %3534 = vmatprep.subr.mxu0 %v1002
    %3535 = vmatpush1.msra.mxu0 %v1001
    %3536 = vmatprep.subr.mxu0 %v1010
    %3537 = vmatpush1.msra.mxu0 %v1009
    %3538 = vmatprep.subr.mxu0 %v1018
    %3539 = vmatpush1.msra.mxu0 %v1017
    %3540 = vmatprep.subr.mxu0 %v1026
    %3541 = vmatpush1.msra.mxu0 %v1025
    %3542 = vmatprep.subr.mxu0 %v1034
    %3543 = vmatpush1.msra.mxu0 %v1033
    %3544 = vmatprep.subr.mxu0 %v1042
    %3545 = vmatpush1.msra.mxu0 %v1041
    %3546 = vmatprep.subr.mxu0 %v1050
    %3547 = vmatpush1.msra.mxu0 %v1049
    %3548 = vmatprep.subr.mxu0 %v1058
    %3549 = vmatpush1.msra.mxu0 %v1057
    %3550 = vmatprep.subr.mxu0 %v1066
    %3551 = vmatpush1.msra.mxu0 %v1065
    %3552 = vmatprep.subr.mxu0 %v1074
    %3553 = vmatpush1.msra.mxu0 %v1073
    %3554 = vmatprep.subr.mxu0 %v1082
    %3555 = vmatpush1.msra.mxu0 %v1081
    %3556 = vmatprep.subr.mxu0 %v1090
    %3557 = vmatpush1.msra.mxu0 %v1089
    %3558 = vmatprep.subr.mxu0 %v1098
    %3559 = vmatpush1.msra.mxu0 %v1097
    %3560 = vmatprep.mubr.f32.mxu0 %v3280
    %3561 = vmatmul.mubr.f32.gmra.mrb[0].mxu0 %v3279
    %v3562 = vpop.f32.mrb[0].mxu0
    %v3563 = vadd.f32 0.0, %v3562
    %v3564 = vpop.f32.mrb[0].mxu0
    %v3565 = vadd.f32 0.0, %v3564
    %3566 = vdwg.mxu0
    %v3575 = vrot.slane %v3350, 6
    %v3576 = vrot.slane %v3352, 6
    %v3577 = vrot.slane %v3421, 6
    %v3578 = vrot.slane %v3423, 6
    %v3579 = vrot.slane %v3492, 6
    %v3580 = vrot.slane %v3494, 6
    %v3581 = vrot.slane %v3563, 6
    %v3582 = vrot.slane %v3565, 6
    %v3591 = vadd.f32 %v608, %v3575
    %v3592 = vadd.f32 %v610, %v3576
    %v3593 = vadd.f32 %v685, %v3577
    %v3594 = vadd.f32 %v687, %v3578
    %v3595 = vadd.f32 %v762, %v3579
    %v3596 = vadd.f32 %v764, %v3580
    %v3597 = vadd.f32 %v839, %v3581
    %v3598 = vadd.f32 %v841, %v3582
    %v3599 = vxor.u32 %v3591, 2147483648
    %v3600 = vxor.u32 %v3592, 2147483648
    %v3601 = vmul.f32 %v3599, 1.442695
    %v3602 = vpow.pop %v3601
    %v3603 = vmul.f32 %v3600, 1.442695
    %v3604 = vpow.pop %v3603
    %v3605 = vadd.f32 %v3602, 1.0
    %v3606 = vadd.f32 %v3604, 1.0
    %v3607 = vrcp.pop %v3605
    %v3608 = vmul.f32 1.0, %v3607
    %v3609 = vrcp.pop %v3606
    %v3610 = vmul.f32 1.0, %v3609
    %v3611 = vxor.u32 %v3593, 2147483648
    %v3612 = vxor.u32 %v3594, 2147483648
    %v3613 = vmul.f32 %v3611, 1.442695
    %v3614 = vpow.pop %v3613
    %v3615 = vmul.f32 %v3612, 1.442695
    %v3616 = vpow.pop %v3615
    %v3617 = vadd.f32 %v3614, 1.0
    %v3618 = vadd.f32 %v3616, 1.0
    %v3619 = vrcp.pop %v3617
    %v3620 = vmul.f32 1.0, %v3619
    %v3621 = vrcp.pop %v3618
    %v3622 = vmul.f32 1.0, %v3621
    %v3623 = vtanh.pop %v3595
    %v3624 = vtanh.pop %v3596
    %v3625 = vxor.u32 %v3597, 2147483648
    %v3626 = vxor.u32 %v3598, 2147483648
    %v3627 = vmul.f32 %v3625, 1.442695
    %v3628 = vpow.pop %v3627
    %v3629 = vmul.f32 %v3626, 1.442695
    %v3630 = vpow.pop %v3629
    %v3631 = vadd.f32 %v3628, 1.0
    %v3632 = vadd.f32 %v3630, 1.0
    %v3633 = vrcp.pop %v3631
    %v3634 = vmul.f32 1.0, %v3633
    %v3635 = vrcp.pop %v3632
    %v3636 = vmul.f32 1.0, %v3635
    %v3638 = vcombine.low %v3271, %v3271
    %v3640 = vunpack.c.l.s4 1983009808
    %v3641 = vunpack.c.0.s8 %v3640
    %v3642 = vlaneseq
    %v3643 = vshrl.u32 %v3642, 7
    %v3644 = vsub.s32 %v3641, %v3643
    %v3645 = vrot.slane %v3638, %v3644
    %v3647 = vunpack.c.l.s4 1983009808
    %v3648 = vunpack.c.0.s8 %v3647
    %v3649 = vlaneseq
    %v3650 = vshrl.u32 %v3649, 7
    %v3651 = vsub.s32 %v3648, %v3650
    %v3652 = vrot.slane %v3271, %v3651
    %v3653 = vcombine.high %v3645, %v3645
    %v3656 = vmul.f32 %v3620, %v3645
    %v3657 = vmul.f32 %v3622, %v3653
    %v3658 = vmul.f32 %v3608, %v3623
    %v3659 = vmul.f32 %v3610, %v3624
    %v3660 = vadd.f32 %v3656, %v3658
    %v3661 = vadd.f32 %v3657, %v3659
    %v3662 = vtanh.pop %v3660
    %v3663 = vtanh.pop %v3661
    %v3664 = vmul.f32 %v3634, %v3662
    %v3665 = vmul.f32 %v3636, %v3663
    %s3666 = sadd.s32 %s1464, 5
    %v3667 = vstv %s3666
    %vm3668 = vcmp.gt.s32.totalorder %v1099, %v3667
    %v3669 = vsel %vm3668, 1, 0
    %3670 = vset.pattern.permute.xlu0 0
    %3671 = vperm.xlu0 %3670, %v3669
    %v3672 = vpop.permute.xlu0 %3671
    %vm3673 = vcmp.eq.s32.totalorder %v3672, 1
    %v3676 = vrot.slane %v3664, 2
    %v3677 = vrot.slane %v3665, 2
    %v3680 = vsel %vm3673, %v3676, %v3279
    %v3681 = vsel %vm3673, %v3677, %v3280
    %v3684 = vcombine.low %v3680, %v3681
    %v3686 = vunpack.c.l.s4 1983009808
    %v3687 = vunpack.c.0.s8 %v3686
    %v3688 = vlaneseq
    %v3689 = vshrl.u32 %v3688, 7
    %v3690 = vsub.s32 %v3687, %v3689
    %v3691 = vrot.slane %v3684, %v3690
    %3693 = vst [vmem:[#allocation2] sm:$0xf] %v3691
    %v3696 = vrot.slane %v3660, 2
    %v3697 = vrot.slane %v3661, 2
    %v3700 = vcombine.high %v3652, %v3652
    %v3703 = vsel %vm3673, %v3696, %v3652
    %v3704 = vsel %vm3673, %v3697, %v3700
    %v3707 = vcombine.low %v3703, %v3704
    %v3709 = vunpack.c.l.s4 1983009808
    %v3710 = vunpack.c.0.s8 %v3709
    %v3711 = vlaneseq
    %v3712 = vshrl.u32 %v3711, 7
    %v3713 = vsub.s32 %v3710, %v3712
    %v3714 = vrot.slane %v3707, %v3713
    %3716 = vst [vmem:[#allocation3] sm:$0xf] %v3714
    %v3717 = vsel %vm3673, %v3676, 0.0
    %v3718 = vsel %vm3673, %v3677, 0.0
    %v3721 = vrot.slane %v3717, 6
    %v3722 = vrot.slane %v3718, 6
    %3725 = vst [vmem:[#allocation4 + $0x10] sm:$0xc] %v3721
    %3726 = vst [vmem:[#allocation4 + $0x18] sm:$0xc] %v3722
    %v3727 = vld [vmem:[#allocation2] sm:$0xf]
    %v3728 = vld [vmem:[#allocation3] sm:$0xf]
    %v3731 = vunpack.c.l.s4 1983009808
    %v3732 = vunpack.c.0.s8 %v3731
    %v3733 = vlaneseq
    %v3734 = vshrl.u32 %v3733, 7
    %v3735 = vsub.s32 %v3732, %v3734
    %v3736 = vrot.slane %v3727, %v3735
    %v3737 = vcombine.high %v3736, %v3736
    %3740 = vmatprep.subr.mxu0 %v844
    %3741 = vmatpush1.msra.mxu0 %v843
    %3742 = vmatprep.subr.mxu0 %v852
    %3743 = vmatpush1.msra.mxu0 %v851
    %3744 = vmatprep.subr.mxu0 %v860
    %3745 = vmatpush1.msra.mxu0 %v859
    %3746 = vmatprep.subr.mxu0 %v868
    %3747 = vmatpush1.msra.mxu0 %v867
    %3748 = vmatprep.subr.mxu0 %v876
    %3749 = vmatpush1.msra.mxu0 %v875
    %3750 = vmatprep.subr.mxu0 %v884
    %3751 = vmatpush1.msra.mxu0 %v883
    %3752 = vmatprep.subr.mxu0 %v892
    %3753 = vmatpush1.msra.mxu0 %v891
    %3754 = vmatprep.subr.mxu0 %v900
    %3755 = vmatpush1.msra.mxu0 %v899
    %3756 = vmatprep.subr.mxu0 %v908
    %3757 = vmatpush1.msra.mxu0 %v907
    %3758 = vmatprep.subr.mxu0 %v916
    %3759 = vmatpush1.msra.mxu0 %v915
    %3760 = vmatprep.subr.mxu0 %v924
    %3761 = vmatpush1.msra.mxu0 %v923
    %3762 = vmatprep.subr.mxu0 %v932
    %3763 = vmatpush1.msra.mxu0 %v931
    %3764 = vmatprep.subr.mxu0 %v940
    %3765 = vmatpush1.msra.mxu0 %v939
    %3766 = vmatprep.subr.mxu0 %v948
    %3767 = vmatpush1.msra.mxu0 %v947
    %3768 = vmatprep.subr.mxu0 %v956
    %3769 = vmatpush1.msra.mxu0 %v955
    %3770 = vmatprep.subr.mxu0 %v964
    %3771 = vmatpush1.msra.mxu0 %v963
    %3772 = vmatprep.subr.mxu0 %v972
    %3773 = vmatpush1.msra.mxu0 %v971
    %3774 = vmatprep.subr.mxu0 %v980
    %3775 = vmatpush1.msra.mxu0 %v979
    %3776 = vmatprep.subr.mxu0 %v988
    %3777 = vmatpush1.msra.mxu0 %v987
    %3778 = vmatprep.subr.mxu0 %v996
    %3779 = vmatpush1.msra.mxu0 %v995
    %3780 = vmatprep.subr.mxu0 %v1004
    %3781 = vmatpush1.msra.mxu0 %v1003
    %3782 = vmatprep.subr.mxu0 %v1012
    %3783 = vmatpush1.msra.mxu0 %v1011
    %3784 = vmatprep.subr.mxu0 %v1020
    %3785 = vmatpush1.msra.mxu0 %v1019
    %3786 = vmatprep.subr.mxu0 %v1028
    %3787 = vmatpush1.msra.mxu0 %v1027
    %3788 = vmatprep.subr.mxu0 %v1036
    %3789 = vmatpush1.msra.mxu0 %v1035
    %3790 = vmatprep.subr.mxu0 %v1044
    %3791 = vmatpush1.msra.mxu0 %v1043
    %3792 = vmatprep.subr.mxu0 %v1052
    %3793 = vmatpush1.msra.mxu0 %v1051
    %3794 = vmatprep.subr.mxu0 %v1060
    %3795 = vmatpush1.msra.mxu0 %v1059
    %3796 = vmatprep.subr.mxu0 %v1068
    %3797 = vmatpush1.msra.mxu0 %v1067
    %3798 = vmatprep.subr.mxu0 %v1076
    %3799 = vmatpush1.msra.mxu0 %v1075
    %3800 = vmatprep.subr.mxu0 %v1084
    %3801 = vmatpush1.msra.mxu0 %v1083
    %3802 = vmatprep.subr.mxu0 %v1092
    %3803 = vmatpush1.msra.mxu0 %v1091
    %3804 = vmatprep.mubr.f32.mxu0 %v3737
    %3805 = vmatmul.mubr.f32.gmra.mrb[0].mxu0 %v3736
    %v3806 = vpop.f32.mrb[0].mxu0
    %v3807 = vadd.f32 0.0, %v3806
    %v3808 = vpop.f32.mrb[0].mxu0
    %v3809 = vadd.f32 0.0, %v3808
    %3810 = vdwg.mxu0
    %3811 = vmatprep.subr.mxu0 %v846
    %3812 = vmatpush1.msra.mxu0 %v845
    %3813 = vmatprep.subr.mxu0 %v854
    %3814 = vmatpush1.msra.mxu0 %v853
    %3815 = vmatprep.subr.mxu0 %v862
    %3816 = vmatpush1.msra.mxu0 %v861
    %3817 = vmatprep.subr.mxu0 %v870
    %3818 = vmatpush1.msra.mxu0 %v869
    %3819 = vmatprep.subr.mxu0 %v878
    %3820 = vmatpush1.msra.mxu0 %v877
    %3821 = vmatprep.subr.mxu0 %v886
    %3822 = vmatpush1.msra.mxu0 %v885
    %3823 = vmatprep.subr.mxu0 %v894
    %3824 = vmatpush1.msra.mxu0 %v893
    %3825 = vmatprep.subr.mxu0 %v902
    %3826 = vmatpush1.msra.mxu0 %v901
    %3827 = vmatprep.subr.mxu0 %v910
    %3828 = vmatpush1.msra.mxu0 %v909
    %3829 = vmatprep.subr.mxu0 %v918
    %3830 = vmatpush1.msra.mxu0 %v917
    %3831 = vmatprep.subr.mxu0 %v926
    %3832 = vmatpush1.msra.mxu0 %v925
    %3833 = vmatprep.subr.mxu0 %v934
    %3834 = vmatpush1.msra.mxu0 %v933
    %3835 = vmatprep.subr.mxu0 %v942
    %3836 = vmatpush1.msra.mxu0 %v941
    %3837 = vmatprep.subr.mxu0 %v950
    %3838 = vmatpush1.msra.mxu0 %v949
    %3839 = vmatprep.subr.mxu0 %v958
    %3840 = vmatpush1.msra.mxu0 %v957
    %3841 = vmatprep.subr.mxu0 %v966
    %3842 = vmatpush1.msra.mxu0 %v965
    %3843 = vmatprep.subr.mxu0 %v974
    %3844 = vmatpush1.msra.mxu0 %v973
    %3845 = vmatprep.subr.mxu0 %v982
    %3846 = vmatpush1.msra.mxu0 %v981
    %3847 = vmatprep.subr.mxu0 %v990
    %3848 = vmatpush1.msra.mxu0 %v989
    %3849 = vmatprep.subr.mxu0 %v998
    %3850 = vmatpush1.msra.mxu0 %v997
    %3851 = vmatprep.subr.mxu0 %v1006
    %3852 = vmatpush1.msra.mxu0 %v1005
    %3853 = vmatprep.subr.mxu0 %v1014
    %3854 = vmatpush1.msra.mxu0 %v1013
    %3855 = vmatprep.subr.mxu0 %v1022
    %3856 = vmatpush1.msra.mxu0 %v1021
    %3857 = vmatprep.subr.mxu0 %v1030
    %3858 = vmatpush1.msra.mxu0 %v1029
    %3859 = vmatprep.subr.mxu0 %v1038
    %3860 = vmatpush1.msra.mxu0 %v1037
    %3861 = vmatprep.subr.mxu0 %v1046
    %3862 = vmatpush1.msra.mxu0 %v1045
    %3863 = vmatprep.subr.mxu0 %v1054
    %3864 = vmatpush1.msra.mxu0 %v1053
    %3865 = vmatprep.subr.mxu0 %v1062
    %3866 = vmatpush1.msra.mxu0 %v1061
    %3867 = vmatprep.subr.mxu0 %v1070
    %3868 = vmatpush1.msra.mxu0 %v1069
    %3869 = vmatprep.subr.mxu0 %v1078
    %3870 = vmatpush1.msra.mxu0 %v1077
    %3871 = vmatprep.subr.mxu0 %v1086
    %3872 = vmatpush1.msra.mxu0 %v1085
    %3873 = vmatprep.subr.mxu0 %v1094
    %3874 = vmatpush1.msra.mxu0 %v1093
    %3875 = vmatprep.mubr.f32.mxu0 %v3737
    %3876 = vmatmul.mubr.f32.gmra.mrb[0].mxu0 %v3736
    %v3877 = vpop.f32.mrb[0].mxu0
    %v3878 = vadd.f32 0.0, %v3877
    %v3879 = vpop.f32.mrb[0].mxu0
    %v3880 = vadd.f32 0.0, %v3879
    %3881 = vdwg.mxu0
    %3882 = vmatprep.subr.mxu0 %v848
    %3883 = vmatpush1.msra.mxu0 %v847
    %3884 = vmatprep.subr.mxu0 %v856
    %3885 = vmatpush1.msra.mxu0 %v855
    %3886 = vmatprep.subr.mxu0 %v864
    %3887 = vmatpush1.msra.mxu0 %v863
    %3888 = vmatprep.subr.mxu0 %v872
    %3889 = vmatpush1.msra.mxu0 %v871
    %3890 = vmatprep.subr.mxu0 %v880
    %3891 = vmatpush1.msra.mxu0 %v879
    %3892 = vmatprep.subr.mxu0 %v888
    %3893 = vmatpush1.msra.mxu0 %v887
    %3894 = vmatprep.subr.mxu0 %v896
    %3895 = vmatpush1.msra.mxu0 %v895
    %3896 = vmatprep.subr.mxu0 %v904
    %3897 = vmatpush1.msra.mxu0 %v903
    %3898 = vmatprep.subr.mxu0 %v912
    %3899 = vmatpush1.msra.mxu0 %v911
    %3900 = vmatprep.subr.mxu0 %v920
    %3901 = vmatpush1.msra.mxu0 %v919
    %3902 = vmatprep.subr.mxu0 %v928
    %3903 = vmatpush1.msra.mxu0 %v927
    %3904 = vmatprep.subr.mxu0 %v936
    %3905 = vmatpush1.msra.mxu0 %v935
    %3906 = vmatprep.subr.mxu0 %v944
    %3907 = vmatpush1.msra.mxu0 %v943
    %3908 = vmatprep.subr.mxu0 %v952
    %3909 = vmatpush1.msra.mxu0 %v951
    %3910 = vmatprep.subr.mxu0 %v960
    %3911 = vmatpush1.msra.mxu0 %v959
    %3912 = vmatprep.subr.mxu0 %v968
    %3913 = vmatpush1.msra.mxu0 %v967
    %3914 = vmatprep.subr.mxu0 %v976
    %3915 = vmatpush1.msra.mxu0 %v975
    %3916 = vmatprep.subr.mxu0 %v984
    %3917 = vmatpush1.msra.mxu0 %v983
    %3918 = vmatprep.subr.mxu0 %v992
    %3919 = vmatpush1.msra.mxu0 %v991
    %3920 = vmatprep.subr.mxu0 %v1000
    %3921 = vmatpush1.msra.mxu0 %v999
    %3922 = vmatprep.subr.mxu0 %v1008
    %3923 = vmatpush1.msra.mxu0 %v1007
    %3924 = vmatprep.subr.mxu0 %v1016
    %3925 = vmatpush1.msra.mxu0 %v1015
    %3926 = vmatprep.subr.mxu0 %v1024
    %3927 = vmatpush1.msra.mxu0 %v1023
    %3928 = vmatprep.subr.mxu0 %v1032
    %3929 = vmatpush1.msra.mxu0 %v1031
    %3930 = vmatprep.subr.mxu0 %v1040
    %3931 = vmatpush1.msra.mxu0 %v1039
    %3932 = vmatprep.subr.mxu0 %v1048
    %3933 = vmatpush1.msra.mxu0 %v1047
    %3934 = vmatprep.subr.mxu0 %v1056
    %3935 = vmatpush1.msra.mxu0 %v1055
    %3936 = vmatprep.subr.mxu0 %v1064
    %3937 = vmatpush1.msra.mxu0 %v1063
    %3938 = vmatprep.subr.mxu0 %v1072
    %3939 = vmatpush1.msra.mxu0 %v1071
    %3940 = vmatprep.subr.mxu0 %v1080
    %3941 = vmatpush1.msra.mxu0 %v1079
    %3942 = vmatprep.subr.mxu0 %v1088
    %3943 = vmatpush1.msra.mxu0 %v1087
    %3944 = vmatprep.subr.mxu0 %v1096
    %3945 = vmatpush1.msra.mxu0 %v1095
    %3946 = vmatprep.mubr.f32.mxu0 %v3737
    %3947 = vmatmul.mubr.f32.gmra.mrb[0].mxu0 %v3736
    %v3948 = vpop.f32.mrb[0].mxu0
    %v3949 = vadd.f32 0.0, %v3948
    %v3950 = vpop.f32.mrb[0].mxu0
    %v3951 = vadd.f32 0.0, %v3950
    %3952 = vdwg.mxu0
    %3953 = vmatprep.subr.mxu0 %v850
    %3954 = vmatpush1.msra.mxu0 %v849
    %3955 = vmatprep.subr.mxu0 %v858
    %3956 = vmatpush1.msra.mxu0 %v857
    %3957 = vmatprep.subr.mxu0 %v866
    %3958 = vmatpush1.msra.mxu0 %v865
    %3959 = vmatprep.subr.mxu0 %v874
    %3960 = vmatpush1.msra.mxu0 %v873
    %3961 = vmatprep.subr.mxu0 %v882
    %3962 = vmatpush1.msra.mxu0 %v881
    %3963 = vmatprep.subr.mxu0 %v890
    %3964 = vmatpush1.msra.mxu0 %v889
    %3965 = vmatprep.subr.mxu0 %v898
    %3966 = vmatpush1.msra.mxu0 %v897
    %3967 = vmatprep.subr.mxu0 %v906
    %3968 = vmatpush1.msra.mxu0 %v905
    %3969 = vmatprep.subr.mxu0 %v914
    %3970 = vmatpush1.msra.mxu0 %v913
    %3971 = vmatprep.subr.mxu0 %v922
    %3972 = vmatpush1.msra.mxu0 %v921
    %3973 = vmatprep.subr.mxu0 %v930
    %3974 = vmatpush1.msra.mxu0 %v929
    %3975 = vmatprep.subr.mxu0 %v938
    %3976 = vmatpush1.msra.mxu0 %v937
    %3977 = vmatprep.subr.mxu0 %v946
    %3978 = vmatpush1.msra.mxu0 %v945
    %3979 = vmatprep.subr.mxu0 %v954
    %3980 = vmatpush1.msra.mxu0 %v953
    %3981 = vmatprep.subr.mxu0 %v962
    %3982 = vmatpush1.msra.mxu0 %v961
    %3983 = vmatprep.subr.mxu0 %v970
    %3984 = vmatpush1.msra.mxu0 %v969
    %3985 = vmatprep.subr.mxu0 %v978
    %3986 = vmatpush1.msra.mxu0 %v977
    %3987 = vmatprep.subr.mxu0 %v986
    %3988 = vmatpush1.msra.mxu0 %v985
    %3989 = vmatprep.subr.mxu0 %v994
    %3990 = vmatpush1.msra.mxu0 %v993
    %3991 = vmatprep.subr.mxu0 %v1002
    %3992 = vmatpush1.msra.mxu0 %v1001
    %3993 = vmatprep.subr.mxu0 %v1010
    %3994 = vmatpush1.msra.mxu0 %v1009
    %3995 = vmatprep.subr.mxu0 %v1018
    %3996 = vmatpush1.msra.mxu0 %v1017
    %3997 = vmatprep.subr.mxu0 %v1026
    %3998 = vmatpush1.msra.mxu0 %v1025
    %3999 = vmatprep.subr.mxu0 %v1034
    %4000 = vmatpush1.msra.mxu0 %v1033
    %4001 = vmatprep.subr.mxu0 %v1042
    %4002 = vmatpush1.msra.mxu0 %v1041
    %4003 = vmatprep.subr.mxu0 %v1050
    %4004 = vmatpush1.msra.mxu0 %v1049
    %4005 = vmatprep.subr.mxu0 %v1058
    %4006 = vmatpush1.msra.mxu0 %v1057
    %4007 = vmatprep.subr.mxu0 %v1066
    %4008 = vmatpush1.msra.mxu0 %v1065
    %4009 = vmatprep.subr.mxu0 %v1074
    %4010 = vmatpush1.msra.mxu0 %v1073
    %4011 = vmatprep.subr.mxu0 %v1082
    %4012 = vmatpush1.msra.mxu0 %v1081
    %4013 = vmatprep.subr.mxu0 %v1090
    %4014 = vmatpush1.msra.mxu0 %v1089
    %4015 = vmatprep.subr.mxu0 %v1098
    %4016 = vmatpush1.msra.mxu0 %v1097
    %4017 = vmatprep.mubr.f32.mxu0 %v3737
    %4018 = vmatmul.mubr.f32.gmra.mrb[0].mxu0 %v3736
    %v4019 = vpop.f32.mrb[0].mxu0
    %v4020 = vadd.f32 0.0, %v4019
    %v4021 = vpop.f32.mrb[0].mxu0
    %v4022 = vadd.f32 0.0, %v4021
    %4023 = vdwg.mxu0
    %v4032 = vrot.slane %v3807, 4
    %v4033 = vrot.slane %v3809, 4
    %v4034 = vrot.slane %v3878, 4
    %v4035 = vrot.slane %v3880, 4
    %v4036 = vrot.slane %v3949, 4
    %v4037 = vrot.slane %v3951, 4
    %v4038 = vrot.slane %v4020, 4
    %v4039 = vrot.slane %v4022, 4
    %v4048 = vadd.f32 %v608, %v4032
    %v4049 = vadd.f32 %v610, %v4033
    %v4050 = vadd.f32 %v685, %v4034
    %v4051 = vadd.f32 %v687, %v4035
    %v4052 = vadd.f32 %v762, %v4036
    %v4053 = vadd.f32 %v764, %v4037
    %v4054 = vadd.f32 %v839, %v4038
    %v4055 = vadd.f32 %v841, %v4039
    %v4056 = vxor.u32 %v4048, 2147483648
    %v4057 = vxor.u32 %v4049, 2147483648
    %v4058 = vmul.f32 %v4056, 1.442695
    %v4059 = vpow.pop %v4058
    %v4060 = vmul.f32 %v4057, 1.442695
    %v4061 = vpow.pop %v4060
    %v4062 = vadd.f32 %v4059, 1.0
    %v4063 = vadd.f32 %v4061, 1.0
    %v4064 = vrcp.pop %v4062
    %v4065 = vmul.f32 1.0, %v4064
    %v4066 = vrcp.pop %v4063
    %v4067 = vmul.f32 1.0, %v4066
    %v4068 = vxor.u32 %v4050, 2147483648
    %v4069 = vxor.u32 %v4051, 2147483648
    %v4070 = vmul.f32 %v4068, 1.442695
    %v4071 = vpow.pop %v4070
    %v4072 = vmul.f32 %v4069, 1.442695
    %v4073 = vpow.pop %v4072
    %v4074 = vadd.f32 %v4071, 1.0
    %v4075 = vadd.f32 %v4073, 1.0
    %v4076 = vrcp.pop %v4074
    %v4077 = vmul.f32 1.0, %v4076
    %v4078 = vrcp.pop %v4075
    %v4079 = vmul.f32 1.0, %v4078
    %v4080 = vtanh.pop %v4052
    %v4081 = vtanh.pop %v4053
    %v4082 = vxor.u32 %v4054, 2147483648
    %v4083 = vxor.u32 %v4055, 2147483648
    %v4084 = vmul.f32 %v4082, 1.442695
    %v4085 = vpow.pop %v4084
    %v4086 = vmul.f32 %v4083, 1.442695
    %v4087 = vpow.pop %v4086
    %v4088 = vadd.f32 %v4085, 1.0
    %v4089 = vadd.f32 %v4087, 1.0
    %v4090 = vrcp.pop %v4088
    %v4091 = vmul.f32 1.0, %v4090
    %v4092 = vrcp.pop %v4089
    %v4093 = vmul.f32 1.0, %v4092
    %v4096 = vunpack.c.l.s4 1983009808
    %v4097 = vunpack.c.0.s8 %v4096
    %v4098 = vlaneseq
    %v4099 = vshrl.u32 %v4098, 7
    %v4100 = vsub.s32 %v4097, %v4099
    %v4101 = vrot.slane %v3728, %v4100
    %v4102 = vcombine.low %v4101, %v4101
    %v4105 = vmul.f32 %v4077, %v4102
    %v4106 = vmul.f32 %v4079, %v4101
    %v4107 = vmul.f32 %v4065, %v4080
    %v4108 = vmul.f32 %v4067, %v4081
    %v4109 = vadd.f32 %v4105, %v4107
    %v4110 = vadd.f32 %v4106, %v4108
    %v4111 = vtanh.pop %v4109
    %v4112 = vtanh.pop %v4110
    %v4113 = vmul.f32 %v4091, %v4111
    %v4114 = vmul.f32 %v4093, %v4112
    %s4115 = sadd.s32 %s1464, 6
    %v4116 = vstv %s4115
    %vm4117 = vcmp.gt.s32.totalorder %v1099, %v4116
    %v4118 = vsel %vm4117, 1, 0
    %4119 = vset.pattern.permute.xlu0 0
    %4120 = vperm.xlu0 %4119, %v4118
    %v4121 = vpop.permute.xlu0 %4120
    %vm4122 = vcmp.eq.s32.totalorder %v4121, 1
    %v4125 = vrot.slane %v4113, 4
    %v4126 = vrot.slane %v4114, 4
    %v4129 = vsel %vm4122, %v4125, %v3736
    %v4130 = vsel %vm4122, %v4126, %v3737
    %v4133 = vcombine.low %v4129, %v4130
    %v4135 = vunpack.c.l.s4 1983009808
    %v4136 = vunpack.c.0.s8 %v4135
    %v4137 = vlaneseq
    %v4138 = vshrl.u32 %v4137, 7
    %v4139 = vsub.s32 %v4136, %v4138
    %v4140 = vrot.slane %v4133, %v4139
    %4142 = vst [vmem:[#allocation2] sm:$0xf] %v4140
    %v4145 = vrot.slane %v4109, 4
    %v4146 = vrot.slane %v4110, 4
    %v4149 = vcombine.high %v4101, %v4101
    %v4151 = vsel %vm4122, %v4145, %v4101
    %v4152 = vsel %vm4122, %v4146, %v4149
    %v4155 = vcombine.low %v4151, %v4152
    %v4157 = vunpack.c.l.s4 1983009808
    %v4158 = vunpack.c.0.s8 %v4157
    %v4159 = vlaneseq
    %v4160 = vshrl.u32 %v4159, 7
    %v4161 = vsub.s32 %v4158, %v4160
    %v4162 = vrot.slane %v4155, %v4161
    %4164 = vst [vmem:[#allocation3] sm:$0xf] %v4162
    %v4165 = vsel %vm4122, %v4125, 0.0
    %v4166 = vsel %vm4122, %v4126, 0.0
    %v4169 = vrot.slane %v4165, 4
    %v4170 = vrot.slane %v4166, 4
    %4173 = vst [vmem:[#allocation4 + $0x10] sm:$0x30] %v4169
    %4174 = vst [vmem:[#allocation4 + $0x18] sm:$0x30] %v4170
    %v4175 = vld [vmem:[#allocation2] sm:$0xf]
    %v4176 = vld [vmem:[#allocation3] sm:$0xf]
    %v4179 = vunpack.c.l.s4 1983009808
    %v4180 = vunpack.c.0.s8 %v4179
    %v4181 = vlaneseq
    %v4182 = vshrl.u32 %v4181, 7
    %v4183 = vsub.s32 %v4180, %v4182
    %v4184 = vrot.slane %v4175, %v4183
    %v4185 = vcombine.high %v4184, %v4184
    %4188 = vmatprep.subr.mxu0 %v844
    %4189 = vmatpush1.msra.mxu0 %v843
    %4190 = vmatprep.subr.mxu0 %v852
    %4191 = vmatpush1.msra.mxu0 %v851
    %4192 = vmatprep.subr.mxu0 %v860
    %4193 = vmatpush1.msra.mxu0 %v859
    %4194 = vmatprep.subr.mxu0 %v868
    %4195 = vmatpush1.msra.mxu0 %v867
    %4196 = vmatprep.subr.mxu0 %v876
    %4197 = vmatpush1.msra.mxu0 %v875
    %4198 = vmatprep.subr.mxu0 %v884
    %4199 = vmatpush1.msra.mxu0 %v883
    %4200 = vmatprep.subr.mxu0 %v892
    %4201 = vmatpush1.msra.mxu0 %v891
    %4202 = vmatprep.subr.mxu0 %v900
    %4203 = vmatpush1.msra.mxu0 %v899
    %4204 = vmatprep.subr.mxu0 %v908
    %4205 = vmatpush1.msra.mxu0 %v907
    %4206 = vmatprep.subr.mxu0 %v916
    %4207 = vmatpush1.msra.mxu0 %v915
    %4208 = vmatprep.subr.mxu0 %v924
    %4209 = vmatpush1.msra.mxu0 %v923
    %4210 = vmatprep.subr.mxu0 %v932
    %4211 = vmatpush1.msra.mxu0 %v931
    %4212 = vmatprep.subr.mxu0 %v940
    %4213 = vmatpush1.msra.mxu0 %v939
    %4214 = vmatprep.subr.mxu0 %v948
    %4215 = vmatpush1.msra.mxu0 %v947
    %4216 = vmatprep.subr.mxu0 %v956
    %4217 = vmatpush1.msra.mxu0 %v955
    %4218 = vmatprep.subr.mxu0 %v964
    %4219 = vmatpush1.msra.mxu0 %v963
    %4220 = vmatprep.subr.mxu0 %v972
    %4221 = vmatpush1.msra.mxu0 %v971
    %4222 = vmatprep.subr.mxu0 %v980
    %4223 = vmatpush1.msra.mxu0 %v979
    %4224 = vmatprep.subr.mxu0 %v988
    %4225 = vmatpush1.msra.mxu0 %v987
    %4226 = vmatprep.subr.mxu0 %v996
    %4227 = vmatpush1.msra.mxu0 %v995
    %4228 = vmatprep.subr.mxu0 %v1004
    %4229 = vmatpush1.msra.mxu0 %v1003
    %4230 = vmatprep.subr.mxu0 %v1012
    %4231 = vmatpush1.msra.mxu0 %v1011
    %4232 = vmatprep.subr.mxu0 %v1020
    %4233 = vmatpush1.msra.mxu0 %v1019
    %4234 = vmatprep.subr.mxu0 %v1028
    %4235 = vmatpush1.msra.mxu0 %v1027
    %4236 = vmatprep.subr.mxu0 %v1036
    %4237 = vmatpush1.msra.mxu0 %v1035
    %4238 = vmatprep.subr.mxu0 %v1044
    %4239 = vmatpush1.msra.mxu0 %v1043
    %4240 = vmatprep.subr.mxu0 %v1052
    %4241 = vmatpush1.msra.mxu0 %v1051
    %4242 = vmatprep.subr.mxu0 %v1060
    %4243 = vmatpush1.msra.mxu0 %v1059
    %4244 = vmatprep.subr.mxu0 %v1068
    %4245 = vmatpush1.msra.mxu0 %v1067
    %4246 = vmatprep.subr.mxu0 %v1076
    %4247 = vmatpush1.msra.mxu0 %v1075
    %4248 = vmatprep.subr.mxu0 %v1084
    %4249 = vmatpush1.msra.mxu0 %v1083
    %4250 = vmatprep.subr.mxu0 %v1092
    %4251 = vmatpush1.msra.mxu0 %v1091
    %4252 = vmatprep.mubr.f32.mxu0 %v4185
    %4253 = vmatmul.mubr.f32.gmra.mrb[0].mxu0 %v4184
    %v4254 = vpop.f32.mrb[0].mxu0
    %v4255 = vadd.f32 0.0, %v4254
    %v4256 = vpop.f32.mrb[0].mxu0
    %v4257 = vadd.f32 0.0, %v4256
    %4258 = vdwg.mxu0
    %4259 = vmatprep.subr.mxu0 %v846
    %4260 = vmatpush1.msra.mxu0 %v845
    %4261 = vmatprep.subr.mxu0 %v854
    %4262 = vmatpush1.msra.mxu0 %v853
    %4263 = vmatprep.subr.mxu0 %v862
    %4264 = vmatpush1.msra.mxu0 %v861
    %4265 = vmatprep.subr.mxu0 %v870
    %4266 = vmatpush1.msra.mxu0 %v869
    %4267 = vmatprep.subr.mxu0 %v878
    %4268 = vmatpush1.msra.mxu0 %v877
    %4269 = vmatprep.subr.mxu0 %v886
    %4270 = vmatpush1.msra.mxu0 %v885
    %4271 = vmatprep.subr.mxu0 %v894
    %4272 = vmatpush1.msra.mxu0 %v893
    %4273 = vmatprep.subr.mxu0 %v902
    %4274 = vmatpush1.msra.mxu0 %v901
    %4275 = vmatprep.subr.mxu0 %v910
    %4276 = vmatpush1.msra.mxu0 %v909
    %4277 = vmatprep.subr.mxu0 %v918
    %4278 = vmatpush1.msra.mxu0 %v917
    %4279 = vmatprep.subr.mxu0 %v926
    %4280 = vmatpush1.msra.mxu0 %v925
    %4281 = vmatprep.subr.mxu0 %v934
    %4282 = vmatpush1.msra.mxu0 %v933
    %4283 = vmatprep.subr.mxu0 %v942
    %4284 = vmatpush1.msra.mxu0 %v941
    %4285 = vmatprep.subr.mxu0 %v950
    %4286 = vmatpush1.msra.mxu0 %v949
    %4287 = vmatprep.subr.mxu0 %v958
    %4288 = vmatpush1.msra.mxu0 %v957
    %4289 = vmatprep.subr.mxu0 %v966
    %4290 = vmatpush1.msra.mxu0 %v965
    %4291 = vmatprep.subr.mxu0 %v974
    %4292 = vmatpush1.msra.mxu0 %v973
    %4293 = vmatprep.subr.mxu0 %v982
    %4294 = vmatpush1.msra.mxu0 %v981
    %4295 = vmatprep.subr.mxu0 %v990
    %4296 = vmatpush1.msra.mxu0 %v989
    %4297 = vmatprep.subr.mxu0 %v998
    %4298 = vmatpush1.msra.mxu0 %v997
    %4299 = vmatprep.subr.mxu0 %v1006
    %4300 = vmatpush1.msra.mxu0 %v1005
    %4301 = vmatprep.subr.mxu0 %v1014
    %4302 = vmatpush1.msra.mxu0 %v1013
    %4303 = vmatprep.subr.mxu0 %v1022
    %4304 = vmatpush1.msra.mxu0 %v1021
    %4305 = vmatprep.subr.mxu0 %v1030
    %4306 = vmatpush1.msra.mxu0 %v1029
    %4307 = vmatprep.subr.mxu0 %v1038
    %4308 = vmatpush1.msra.mxu0 %v1037
    %4309 = vmatprep.subr.mxu0 %v1046
    %4310 = vmatpush1.msra.mxu0 %v1045
    %4311 = vmatprep.subr.mxu0 %v1054
    %4312 = vmatpush1.msra.mxu0 %v1053
    %4313 = vmatprep.subr.mxu0 %v1062
    %4314 = vmatpush1.msra.mxu0 %v1061
    %4315 = vmatprep.subr.mxu0 %v1070
    %4316 = vmatpush1.msra.mxu0 %v1069
    %4317 = vmatprep.subr.mxu0 %v1078
    %4318 = vmatpush1.msra.mxu0 %v1077
    %4319 = vmatprep.subr.mxu0 %v1086
    %4320 = vmatpush1.msra.mxu0 %v1085
    %4321 = vmatprep.subr.mxu0 %v1094
    %4322 = vmatpush1.msra.mxu0 %v1093
    %4323 = vmatprep.mubr.f32.mxu0 %v4185
    %4324 = vmatmul.mubr.f32.gmra.mrb[0].mxu0 %v4184
    %v4325 = vpop.f32.mrb[0].mxu0
    %v4326 = vadd.f32 0.0, %v4325
    %v4327 = vpop.f32.mrb[0].mxu0
    %v4328 = vadd.f32 0.0, %v4327
    %4329 = vdwg.mxu0
    %4330 = vmatprep.subr.mxu0 %v848
    %4331 = vmatpush1.msra.mxu0 %v847
    %4332 = vmatprep.subr.mxu0 %v856
    %4333 = vmatpush1.msra.mxu0 %v855
    %4334 = vmatprep.subr.mxu0 %v864
    %4335 = vmatpush1.msra.mxu0 %v863
    %4336 = vmatprep.subr.mxu0 %v872
    %4337 = vmatpush1.msra.mxu0 %v871
    %4338 = vmatprep.subr.mxu0 %v880
    %4339 = vmatpush1.msra.mxu0 %v879
    %4340 = vmatprep.subr.mxu0 %v888
    %4341 = vmatpush1.msra.mxu0 %v887
    %4342 = vmatprep.subr.mxu0 %v896
    %4343 = vmatpush1.msra.mxu0 %v895
    %4344 = vmatprep.subr.mxu0 %v904
    %4345 = vmatpush1.msra.mxu0 %v903
    %4346 = vmatprep.subr.mxu0 %v912
    %4347 = vmatpush1.msra.mxu0 %v911
    %4348 = vmatprep.subr.mxu0 %v920
    %4349 = vmatpush1.msra.mxu0 %v919
    %4350 = vmatprep.subr.mxu0 %v928
    %4351 = vmatpush1.msra.mxu0 %v927
    %4352 = vmatprep.subr.mxu0 %v936
    %4353 = vmatpush1.msra.mxu0 %v935
    %4354 = vmatprep.subr.mxu0 %v944
    %4355 = vmatpush1.msra.mxu0 %v943
    %4356 = vmatprep.subr.mxu0 %v952
    %4357 = vmatpush1.msra.mxu0 %v951
    %4358 = vmatprep.subr.mxu0 %v960
    %4359 = vmatpush1.msra.mxu0 %v959
    %4360 = vmatprep.subr.mxu0 %v968
    %4361 = vmatpush1.msra.mxu0 %v967
    %4362 = vmatprep.subr.mxu0 %v976
    %4363 = vmatpush1.msra.mxu0 %v975
    %4364 = vmatprep.subr.mxu0 %v984
    %4365 = vmatpush1.msra.mxu0 %v983
    %4366 = vmatprep.subr.mxu0 %v992
    %4367 = vmatpush1.msra.mxu0 %v991
    %4368 = vmatprep.subr.mxu0 %v1000
    %4369 = vmatpush1.msra.mxu0 %v999
    %4370 = vmatprep.subr.mxu0 %v1008
    %4371 = vmatpush1.msra.mxu0 %v1007
    %4372 = vmatprep.subr.mxu0 %v1016
    %4373 = vmatpush1.msra.mxu0 %v1015
    %4374 = vmatprep.subr.mxu0 %v1024
    %4375 = vmatpush1.msra.mxu0 %v1023
    %4376 = vmatprep.subr.mxu0 %v1032
    %4377 = vmatpush1.msra.mxu0 %v1031
    %4378 = vmatprep.subr.mxu0 %v1040
    %4379 = vmatpush1.msra.mxu0 %v1039
    %4380 = vmatprep.subr.mxu0 %v1048
    %4381 = vmatpush1.msra.mxu0 %v1047
    %4382 = vmatprep.subr.mxu0 %v1056
    %4383 = vmatpush1.msra.mxu0 %v1055
    %4384 = vmatprep.subr.mxu0 %v1064
    %4385 = vmatpush1.msra.mxu0 %v1063
    %4386 = vmatprep.subr.mxu0 %v1072
    %4387 = vmatpush1.msra.mxu0 %v1071
    %4388 = vmatprep.subr.mxu0 %v1080
    %4389 = vmatpush1.msra.mxu0 %v1079
    %4390 = vmatprep.subr.mxu0 %v1088
    %4391 = vmatpush1.msra.mxu0 %v1087
    %4392 = vmatprep.subr.mxu0 %v1096
    %4393 = vmatpush1.msra.mxu0 %v1095
    %4394 = vmatprep.mubr.f32.mxu0 %v4185
    %4395 = vmatmul.mubr.f32.gmra.mrb[0].mxu0 %v4184
    %v4396 = vpop.f32.mrb[0].mxu0
    %v4397 = vadd.f32 0.0, %v4396
    %v4398 = vpop.f32.mrb[0].mxu0
    %v4399 = vadd.f32 0.0, %v4398
    %4400 = vdwg.mxu0
    %4401 = vmatprep.subr.mxu0 %v850
    %4402 = vmatpush1.msra.mxu0 %v849
    %4403 = vmatprep.subr.mxu0 %v858
    %4404 = vmatpush1.msra.mxu0 %v857
    %4405 = vmatprep.subr.mxu0 %v866
    %4406 = vmatpush1.msra.mxu0 %v865
    %4407 = vmatprep.subr.mxu0 %v874
    %4408 = vmatpush1.msra.mxu0 %v873
    %4409 = vmatprep.subr.mxu0 %v882
    %4410 = vmatpush1.msra.mxu0 %v881
    %4411 = vmatprep.subr.mxu0 %v890
    %4412 = vmatpush1.msra.mxu0 %v889
    %4413 = vmatprep.subr.mxu0 %v898
    %4414 = vmatpush1.msra.mxu0 %v897
    %4415 = vmatprep.subr.mxu0 %v906
    %4416 = vmatpush1.msra.mxu0 %v905
    %4417 = vmatprep.subr.mxu0 %v914
    %4418 = vmatpush1.msra.mxu0 %v913
    %4419 = vmatprep.subr.mxu0 %v922
    %4420 = vmatpush1.msra.mxu0 %v921
    %4421 = vmatprep.subr.mxu0 %v930
    %4422 = vmatpush1.msra.mxu0 %v929
    %4423 = vmatprep.subr.mxu0 %v938
    %4424 = vmatpush1.msra.mxu0 %v937
    %4425 = vmatprep.subr.mxu0 %v946
    %4426 = vmatpush1.msra.mxu0 %v945
    %4427 = vmatprep.subr.mxu0 %v954
    %4428 = vmatpush1.msra.mxu0 %v953
    %4429 = vmatprep.subr.mxu0 %v962
    %4430 = vmatpush1.msra.mxu0 %v961
    %4431 = vmatprep.subr.mxu0 %v970
    %4432 = vmatpush1.msra.mxu0 %v969
    %4433 = vmatprep.subr.mxu0 %v978
    %4434 = vmatpush1.msra.mxu0 %v977
    %4435 = vmatprep.subr.mxu0 %v986
    %4436 = vmatpush1.msra.mxu0 %v985
    %4437 = vmatprep.subr.mxu0 %v994
    %4438 = vmatpush1.msra.mxu0 %v993
    %4439 = vmatprep.subr.mxu0 %v1002
    %4440 = vmatpush1.msra.mxu0 %v1001
    %4441 = vmatprep.subr.mxu0 %v1010
    %4442 = vmatpush1.msra.mxu0 %v1009
    %4443 = vmatprep.subr.mxu0 %v1018
    %4444 = vmatpush1.msra.mxu0 %v1017
    %4445 = vmatprep.subr.mxu0 %v1026
    %4446 = vmatpush1.msra.mxu0 %v1025
    %4447 = vmatprep.subr.mxu0 %v1034
    %4448 = vmatpush1.msra.mxu0 %v1033
    %4449 = vmatprep.subr.mxu0 %v1042
    %4450 = vmatpush1.msra.mxu0 %v1041
    %4451 = vmatprep.subr.mxu0 %v1050
    %4452 = vmatpush1.msra.mxu0 %v1049
    %4453 = vmatprep.subr.mxu0 %v1058
    %4454 = vmatpush1.msra.mxu0 %v1057
    %4455 = vmatprep.subr.mxu0 %v1066
    %4456 = vmatpush1.msra.mxu0 %v1065
    %4457 = vmatprep.subr.mxu0 %v1074
    %4458 = vmatpush1.msra.mxu0 %v1073
    %4459 = vmatprep.subr.mxu0 %v1082
    %4460 = vmatpush1.msra.mxu0 %v1081
    %4461 = vmatprep.subr.mxu0 %v1090
    %4462 = vmatpush1.msra.mxu0 %v1089
    %4463 = vmatprep.subr.mxu0 %v1098
    %4464 = vmatpush1.msra.mxu0 %v1097
    %4465 = vmatprep.mubr.f32.mxu0 %v4185
    %4466 = vmatmul.mubr.f32.gmra.mrb[0].mxu0 %v4184
    %v4467 = vpop.f32.mrb[0].mxu0
    %v4468 = vadd.f32 0.0, %v4467
    %v4469 = vpop.f32.mrb[0].mxu0
    %v4470 = vadd.f32 0.0, %v4469
    %4471 = vdwg.mxu0
    %v4480 = vrot.slane %v4255, 2
    %v4481 = vrot.slane %v4257, 2
    %v4482 = vrot.slane %v4326, 2
    %v4483 = vrot.slane %v4328, 2
    %v4484 = vrot.slane %v4397, 2
    %v4485 = vrot.slane %v4399, 2
    %v4486 = vrot.slane %v4468, 2
    %v4487 = vrot.slane %v4470, 2
    %v4496 = vadd.f32 %v608, %v4480
    %v4497 = vadd.f32 %v610, %v4481
    %v4498 = vadd.f32 %v685, %v4482
    %v4499 = vadd.f32 %v687, %v4483
    %v4500 = vadd.f32 %v762, %v4484
    %v4501 = vadd.f32 %v764, %v4485
    %v4502 = vadd.f32 %v839, %v4486
    %v4503 = vadd.f32 %v841, %v4487
    %v4504 = vxor.u32 %v4496, 2147483648
    %v4505 = vxor.u32 %v4497, 2147483648
    %v4506 = vmul.f32 %v4504, 1.442695
    %v4507 = vpow.pop %v4506
    %v4508 = vmul.f32 %v4505, 1.442695
    %v4509 = vpow.pop %v4508
    %v4510 = vadd.f32 %v4507, 1.0
    %v4511 = vadd.f32 %v4509, 1.0
    %v4512 = vrcp.pop %v4510
    %v4513 = vmul.f32 1.0, %v4512
    %v4514 = vrcp.pop %v4511
    %v4515 = vmul.f32 1.0, %v4514
    %v4516 = vxor.u32 %v4498, 2147483648
    %v4517 = vxor.u32 %v4499, 2147483648
    %v4518 = vmul.f32 %v4516, 1.442695
    %v4519 = vpow.pop %v4518
    %v4520 = vmul.f32 %v4517, 1.442695
    %v4521 = vpow.pop %v4520
    %v4522 = vadd.f32 %v4519, 1.0
    %v4523 = vadd.f32 %v4521, 1.0
    %v4524 = vrcp.pop %v4522
    %v4525 = vmul.f32 1.0, %v4524
    %v4526 = vrcp.pop %v4523
    %v4527 = vmul.f32 1.0, %v4526
    %v4528 = vtanh.pop %v4500
    %v4529 = vtanh.pop %v4501
    %v4530 = vxor.u32 %v4502, 2147483648
    %v4531 = vxor.u32 %v4503, 2147483648
    %v4532 = vmul.f32 %v4530, 1.442695
    %v4533 = vpow.pop %v4532
    %v4534 = vmul.f32 %v4531, 1.442695
    %v4535 = vpow.pop %v4534
    %v4536 = vadd.f32 %v4533, 1.0
    %v4537 = vadd.f32 %v4535, 1.0
    %v4538 = vrcp.pop %v4536
    %v4539 = vmul.f32 1.0, %v4538
    %v4540 = vrcp.pop %v4537
    %v4541 = vmul.f32 1.0, %v4540
    %v4543 = vcombine.low %v4176, %v4176
    %v4545 = vunpack.c.l.s4 1983009808
    %v4546 = vunpack.c.0.s8 %v4545
    %v4547 = vlaneseq
    %v4548 = vshrl.u32 %v4547, 7
    %v4549 = vsub.s32 %v4546, %v4548
    %v4550 = vrot.slane %v4543, %v4549
    %v4552 = vunpack.c.l.s4 1983009808
    %v4553 = vunpack.c.0.s8 %v4552
    %v4554 = vlaneseq
    %v4555 = vshrl.u32 %v4554, 7
    %v4556 = vsub.s32 %v4553, %v4555
    %v4557 = vrot.slane %v4176, %v4556
    %v4558 = vcombine.low %v4550, %v4550
    %v4561 = vmul.f32 %v4525, %v4558
    %v4562 = vmul.f32 %v4527, %v4550
    %v4563 = vmul.f32 %v4513, %v4528
    %v4564 = vmul.f32 %v4515, %v4529
    %v4565 = vadd.f32 %v4561, %v4563
    %v4566 = vadd.f32 %v4562, %v4564
    %v4567 = vtanh.pop %v4565
    %v4568 = vtanh.pop %v4566
    %v4569 = vmul.f32 %v4539, %v4567
    %v4570 = vmul.f32 %v4541, %v4568
    %s4571 = sadd.s32 %s1464, 7
    %v4572 = vstv %s4571
    %vm4573 = vcmp.gt.s32.totalorder %v1099, %v4572
    %v4574 = vsel %vm4573, 1, 0
    %4575 = vset.pattern.permute.xlu0 0
    %4576 = vperm.xlu0 %4575, %v4574
    %v4577 = vpop.permute.xlu0 %4576
    %vm4578 = vcmp.eq.s32.totalorder %v4577, 1
    %v4581 = vrot.slane %v4569, 6
    %v4582 = vrot.slane %v4570, 6
    %v4585 = vsel %vm4578, %v4581, %v4184
    %v4586 = vsel %vm4578, %v4582, %v4185
    %v4589 = vcombine.low %v4585, %v4586
    %v4591 = vunpack.c.l.s4 1983009808
    %v4592 = vunpack.c.0.s8 %v4591
    %v4593 = vlaneseq
    %v4594 = vshrl.u32 %v4593, 7
    %v4595 = vsub.s32 %v4592, %v4594
    %v4596 = vrot.slane %v4589, %v4595
    %4598 = vst [vmem:[#allocation2] sm:$0xf] %v4596
    %v4601 = vrot.slane %v4565, 6
    %v4602 = vrot.slane %v4566, 6
    %v4605 = vcombine.high %v4557, %v4557
    %v4608 = vsel %vm4578, %v4601, %v4557
    %v4609 = vsel %vm4578, %v4602, %v4605
    %v4612 = vcombine.low %v4608, %v4609
    %v4614 = vunpack.c.l.s4 1983009808
    %v4615 = vunpack.c.0.s8 %v4614
    %v4616 = vlaneseq
    %v4617 = vshrl.u32 %v4616, 7
    %v4618 = vsub.s32 %v4615, %v4617
    %v4619 = vrot.slane %v4612, %v4618
    %4621 = vst [vmem:[#allocation3] sm:$0xf] %v4619
    %v4622 = vsel %vm4578, %v4581, 0.0
    %v4623 = vsel %vm4578, %v4582, 0.0
    %v4626 = vrot.slane %v4622, 2
    %v4627 = vrot.slane %v4623, 2
    %4630 = vst [vmem:[#allocation4 + $0x10] sm:$0xc0] %v4626
    %4631 = vst [vmem:[#allocation4 + $0x18] sm:$0xc0] %v4627
    %v4632 = vld [vmem:[#allocation2] sm:$0xf]
    %4633 = vst [vmem:[#allocation17] sm:$0xf] %v4632
    %v4634 = vld [vmem:[#allocation3] sm:$0xf]
    %4635 = vst [vmem:[#allocation19] sm:$0xf] %v4634
    %v4636 = vld [vmem:[#allocation4] sm:$0xff]
    %v4637 = vld [vmem:[#allocation4 + $0x8] sm:$0xff]
    %v4638 = vld [vmem:[#allocation4 + $0x10] sm:$0xff]
    %v4639 = vld [vmem:[#allocation4 + $0x18] sm:$0xff]
    %v4640 = vld [vmem:[#allocation13] sm:$0xff]
    %v4641 = vld [vmem:[#allocation13 + $0x8] sm:$0xff]
    %v4642 = vld [vmem:[#allocation13 + $0x10] sm:$0xff]
    %v4643 = vld [vmem:[#allocation13 + $0x18] sm:$0xff]
    %v4644 = vld [vmem:[#allocation13 + $0x20] sm:$0xff]
    %v4645 = vld [vmem:[#allocation13 + $0x28] sm:$0xff]
    %v4646 = vld [vmem:[#allocation13 + $0x30] sm:$0xff]
    %v4647 = vld [vmem:[#allocation13 + $0x38] sm:$0xff]
    %v4648 = vld [vmem:[#allocation13 + $0x40] sm:$0xff]
    %v4649 = vld [vmem:[#allocation13 + $0x48] sm:$0xff]
    %v4650 = vld [vmem:[#allocation13 + $0x50] sm:$0xff]
    %v4651 = vld [vmem:[#allocation13 + $0x58] sm:$0xff]
    %v4652 = vld [vmem:[#allocation13 + $0x60] sm:$0xff]
    %v4653 = vld [vmem:[#allocation13 + $0x68] sm:$0xff]
    %v4654 = vld [vmem:[#allocation13 + $0x70] sm:$0xff]
    %v4655 = vld [vmem:[#allocation13 + $0x78] sm:$0xff]
    %v4656 = vld [vmem:[#allocation13 + $0x80] sm:$0xff]
    %v4657 = vld [vmem:[#allocation13 + $0x88] sm:$0xff]
    %v4658 = vld [vmem:[#allocation13 + $0x90] sm:$0xff]
    %v4659 = vld [vmem:[#allocation13 + $0x98] sm:$0xff]
    %v4660 = vld [vmem:[#allocation13 + $0xa0] sm:$0xff]
    %v4661 = vld [vmem:[#allocation13 + $0xa8] sm:$0xff]
    %v4662 = vld [vmem:[#allocation13 + $0xb0] sm:$0xff]
    %v4663 = vld [vmem:[#allocation13 + $0xb8] sm:$0xff]
    %v4664 = vld [vmem:[#allocation13 + $0xc0] sm:$0xff]
    %v4665 = vld [vmem:[#allocation13 + $0xc8] sm:$0xff]
    %v4666 = vld [vmem:[#allocation13 + $0xd0] sm:$0xff]
    %v4667 = vld [vmem:[#allocation13 + $0xd8] sm:$0xff]
    %v4668 = vld [vmem:[#allocation13 + $0xe0] sm:$0xff]
    %v4669 = vld [vmem:[#allocation13 + $0xe8] sm:$0xff]
    %v4670 = vld [vmem:[#allocation13 + $0xf0] sm:$0xff]
    %v4671 = vld [vmem:[#allocation13 + $0xf8] sm:$0xff]
    %v4672 = vld [vmem:[#allocation13 + $0x100] sm:$0xff]
    %v4673 = vld [vmem:[#allocation13 + $0x108] sm:$0xff]
    %v4674 = vld [vmem:[#allocation13 + $0x110] sm:$0xff]
    %v4675 = vld [vmem:[#allocation13 + $0x118] sm:$0xff]
    %v4676 = vld [vmem:[#allocation13 + $0x120] sm:$0xff]
    %v4677 = vld [vmem:[#allocation13 + $0x128] sm:$0xff]
    %v4678 = vld [vmem:[#allocation13 + $0x130] sm:$0xff]
    %v4679 = vld [vmem:[#allocation13 + $0x138] sm:$0xff]
    %v4680 = vld [vmem:[#allocation13 + $0x140] sm:$0xff]
    %v4681 = vld [vmem:[#allocation13 + $0x148] sm:$0xff]
    %v4682 = vld [vmem:[#allocation13 + $0x150] sm:$0xff]
    %v4683 = vld [vmem:[#allocation13 + $0x158] sm:$0xff]
    %v4684 = vld [vmem:[#allocation13 + $0x160] sm:$0xff]
    %v4685 = vld [vmem:[#allocation13 + $0x168] sm:$0xff]
    %v4686 = vld [vmem:[#allocation13 + $0x170] sm:$0xff]
    %v4687 = vld [vmem:[#allocation13 + $0x178] sm:$0xff]
    %v4688 = vld [vmem:[#allocation13 + $0x180] sm:$0xff]
    %v4689 = vld [vmem:[#allocation13 + $0x188] sm:$0xff]
    %v4690 = vld [vmem:[#allocation13 + $0x190] sm:$0xff]
    %v4691 = vld [vmem:[#allocation13 + $0x198] sm:$0xff]
    %v4692 = vld [vmem:[#allocation13 + $0x1a0] sm:$0xff]
    %v4693 = vld [vmem:[#allocation13 + $0x1a8] sm:$0xff]
    %v4694 = vld [vmem:[#allocation13 + $0x1b0] sm:$0xff]
    %v4695 = vld [vmem:[#allocation13 + $0x1b8] sm:$0xff]
    %v4696 = vld [vmem:[#allocation13 + $0x1c0] sm:$0xff]
    %v4697 = vld [vmem:[#allocation13 + $0x1c8] sm:$0xff]
    %v4698 = vld [vmem:[#allocation13 + $0x1d0] sm:$0xff]
    %v4699 = vld [vmem:[#allocation13 + $0x1d8] sm:$0xff]
    %v4700 = vld [vmem:[#allocation13 + $0x1e0] sm:$0xff]
    %v4701 = vld [vmem:[#allocation13 + $0x1e8] sm:$0xff]
    %v4702 = vld [vmem:[#allocation13 + $0x1f0] sm:$0xff]
    %v4703 = vld [vmem:[#allocation13 + $0x1f8] sm:$0xff]
    %v4704 = vld [vmem:[%s8] sm:$0x3]
    %v4706 = vlaneseq
    %v4707 = vshrl.u32 %v4706, 7
    %v4708 = vsub.s32 0, %v4707
    %v4709 = vrot.slane %v4704, %v4708
    %v4710 = vlaneseq
    %v4711 = vshrl.u32 %v4710, 7
    %v4712 = vsub.s32 1, %v4711
    %v4713 = vrot.slane %v4704, %v4712
    %4716 = vmatprep.subr.mxu0 %v4641
    %4717 = vmatpush1.msra.mxu0 %v4640
    %4718 = vmatprep.subr.mxu0 %v4643
    %4719 = vmatpush1.msra.mxu0 %v4642
    %4720 = vmatprep.subr.mxu0 %v4645
    %4721 = vmatpush1.msra.mxu0 %v4644
    %4722 = vmatprep.subr.mxu0 %v4647
    %4723 = vmatpush1.msra.mxu0 %v4646
    %4724 = vmatprep.subr.mxu0 %v4649
    %4725 = vmatpush1.msra.mxu0 %v4648
    %4726 = vmatprep.subr.mxu0 %v4651
    %4727 = vmatpush1.msra.mxu0 %v4650
    %4728 = vmatprep.subr.mxu0 %v4653
    %4729 = vmatpush1.msra.mxu0 %v4652
    %4730 = vmatprep.subr.mxu0 %v4655
    %4731 = vmatpush1.msra.mxu0 %v4654
    %4732 = vmatprep.subr.mxu0 %v4657
    %4733 = vmatpush1.msra.mxu0 %v4656
    %4734 = vmatprep.subr.mxu0 %v4659
    %4735 = vmatpush1.msra.mxu0 %v4658
    %4736 = vmatprep.subr.mxu0 %v4661
    %4737 = vmatpush1.msra.mxu0 %v4660
    %4738 = vmatprep.subr.mxu0 %v4663
    %4739 = vmatpush1.msra.mxu0 %v4662
    %4740 = vmatprep.subr.mxu0 %v4665
    %4741 = vmatpush1.msra.mxu0 %v4664
    %4742 = vmatprep.subr.mxu0 %v4667
    %4743 = vmatpush1.msra.mxu0 %v4666
    %4744 = vmatprep.subr.mxu0 %v4669
    %4745 = vmatpush1.msra.mxu0 %v4668
    %4746 = vmatprep.subr.mxu0 %v4671
    %4747 = vmatpush1.msra.mxu0 %v4670
    %4748 = vmatprep.subr.mxu0 %v4673
    %4749 = vmatpush1.msra.mxu0 %v4672
    %4750 = vmatprep.subr.mxu0 %v4675
    %4751 = vmatpush1.msra.mxu0 %v4674
    %4752 = vmatprep.subr.mxu0 %v4677
    %4753 = vmatpush1.msra.mxu0 %v4676
    %4754 = vmatprep.subr.mxu0 %v4679
    %4755 = vmatpush1.msra.mxu0 %v4678
    %4756 = vmatprep.subr.mxu0 %v4681
    %4757 = vmatpush1.msra.mxu0 %v4680
    %4758 = vmatprep.subr.mxu0 %v4683
    %4759 = vmatpush1.msra.mxu0 %v4682
    %4760 = vmatprep.subr.mxu0 %v4685
    %4761 = vmatpush1.msra.mxu0 %v4684
    %4762 = vmatprep.subr.mxu0 %v4687
    %4763 = vmatpush1.msra.mxu0 %v4686
    %4764 = vmatprep.subr.mxu0 %v4689
    %4765 = vmatpush1.msra.mxu0 %v4688
    %4766 = vmatprep.subr.mxu0 %v4691
    %4767 = vmatpush1.msra.mxu0 %v4690
    %4768 = vmatprep.subr.mxu0 %v4693
    %4769 = vmatpush1.msra.mxu0 %v4692
    %4770 = vmatprep.subr.mxu0 %v4695
    %4771 = vmatpush1.msra.mxu0 %v4694
    %4772 = vmatprep.subr.mxu0 %v4697
    %4773 = vmatpush1.msra.mxu0 %v4696
    %4774 = vmatprep.subr.mxu0 %v4699
    %4775 = vmatpush1.msra.mxu0 %v4698
    %4776 = vmatprep.subr.mxu0 %v4701
    %4777 = vmatpush1.msra.mxu0 %v4700
    %4778 = vmatprep.subr.mxu0 %v4703
    %4779 = vmatpush1.msra.mxu0 %v4702
    %4780 = vmatprep.mubr.f32.mxu0 %v4637
    %4781 = vmatmul.mubr.f32.gmra.mrb[0].mxu0 %v4636
    %v4782 = vpop.f32.mrb[0].mxu0
    %v4783 = vadd.f32 %v4709, %v4782
    %v4784 = vpop.f32.mrb[0].mxu0
    %v4785 = vadd.f32 %v4713, %v4784
    %4786 = vmatprep.mubr.f32.mxu0 %v4639
    %4787 = vmatmul.mubr.f32.gmra.mrb[0].mxu0 %v4638
    %v4788 = vpop.f32.mrb[0].mxu0
    %v4789 = vadd.f32 %v4709, %v4788
    %v4790 = vpop.f32.mrb[0].mxu0
    %v4791 = vadd.f32 %v4713, %v4790
    %4792 = vdwg.mxu0
    %v4793 = vmax.f32 %v4783, 0.0
    %v4794 = vmax.f32 %v4785, 0.0
    %v4795 = vmax.f32 %v4789, 0.0
    %v4796 = vmax.f32 %v4791, 0.0
    %v4797 = vld [vmem:[#allocation14] sm:$0xff]
    %v4798 = vld [vmem:[#allocation14 + $0x8] sm:$0xff]
    %v4799 = vld [vmem:[#allocation14 + $0x10] sm:$0xff]
    %v4800 = vld [vmem:[#allocation14 + $0x18] sm:$0xff]
    %v4801 = vld [vmem:[#allocation14 + $0x20] sm:$0xff]
    %v4802 = vld [vmem:[#allocation14 + $0x28] sm:$0xff]
    %v4803 = vld [vmem:[#allocation14 + $0x30] sm:$0xff]
    %v4804 = vld [vmem:[#allocation14 + $0x38] sm:$0xff]
    %v4805 = vld [vmem:[#allocation14 + $0x40] sm:$0xff]
    %v4806 = vld [vmem:[#allocation14 + $0x48] sm:$0xff]
    %v4807 = vld [vmem:[#allocation14 + $0x50] sm:$0xff]
    %v4808 = vld [vmem:[#allocation14 + $0x58] sm:$0xff]
    %v4809 = vld [vmem:[#allocation14 + $0x60] sm:$0xff]
    %v4810 = vld [vmem:[#allocation14 + $0x68] sm:$0xff]
    %v4811 = vld [vmem:[#allocation14 + $0x70] sm:$0xff]
    %v4812 = vld [vmem:[#allocation14 + $0x78] sm:$0xff]
    %v4813 = vld [vmem:[#allocation14 + $0x80] sm:$0xff]
    %v4814 = vld [vmem:[#allocation14 + $0x88] sm:$0xff]
    %v4815 = vld [vmem:[#allocation14 + $0x90] sm:$0xff]
    %v4816 = vld [vmem:[#allocation14 + $0x98] sm:$0xff]
    %v4817 = vld [vmem:[#allocation14 + $0xa0] sm:$0xff]
    %v4818 = vld [vmem:[#allocation14 + $0xa8] sm:$0xff]
    %v4819 = vld [vmem:[#allocation14 + $0xb0] sm:$0xff]
    %v4820 = vld [vmem:[#allocation14 + $0xb8] sm:$0xff]
    %v4821 = vld [vmem:[#allocation14 + $0xc0] sm:$0xff]
    %v4822 = vld [vmem:[#allocation14 + $0xc8] sm:$0xff]
    %v4823 = vld [vmem:[#allocation14 + $0xd0] sm:$0xff]
    %v4824 = vld [vmem:[#allocation14 + $0xd8] sm:$0xff]
    %v4825 = vld [vmem:[#allocation14 + $0xe0] sm:$0xff]
    %v4826 = vld [vmem:[#allocation14 + $0xe8] sm:$0xff]
    %v4827 = vld [vmem:[#allocation14 + $0xf0] sm:$0xff]
    %v4828 = vld [vmem:[#allocation14 + $0xf8] sm:$0xff]
    %v4829 = vld [vmem:[%s10] sm:$0x1]
    %v4831 = vlaneseq
    %v4832 = vshrl.u32 %v4831, 7
    %v4833 = vsub.s32 0, %v4832
    %v4834 = vrot.slane %v4829, %v4833
    %4836 = vmatprep.subr.mxu0 0.0
    %4837 = vmatpush1.msra.mxu0 %v4797
    %4838 = vmatprep.subr.mxu0 0.0
    %4839 = vmatpush1.msra.mxu0 %v4798
    %4840 = vmatprep.subr.mxu0 0.0
    %4841 = vmatpush1.msra.mxu0 %v4799
    %4842 = vmatprep.subr.mxu0 0.0
    %4843 = vmatpush1.msra.mxu0 %v4800
    %4844 = vmatprep.subr.mxu0 0.0
    %4845 = vmatpush1.msra.mxu0 %v4801
    %4846 = vmatprep.subr.mxu0 0.0
    %4847 = vmatpush1.msra.mxu0 %v4802
    %4848 = vmatprep.subr.mxu0 0.0
    %4849 = vmatpush1.msra.mxu0 %v4803
    %4850 = vmatprep.subr.mxu0 0.0
    %4851 = vmatpush1.msra.mxu0 %v4804
    %4852 = vmatprep.subr.mxu0 0.0
    %4853 = vmatpush1.msra.mxu0 %v4805
    %4854 = vmatprep.subr.mxu0 0.0
    %4855 = vmatpush1.msra.mxu0 %v4806
    %4856 = vmatprep.subr.mxu0 0.0
    %4857 = vmatpush1.msra.mxu0 %v4807
    %4858 = vmatprep.subr.mxu0 0.0
    %4859 = vmatpush1.msra.mxu0 %v4808
    %4860 = vmatprep.subr.mxu0 0.0
    %4861 = vmatpush1.msra.mxu0 %v4809
    %4862 = vmatprep.subr.mxu0 0.0
    %4863 = vmatpush1.msra.mxu0 %v4810
    %4864 = vmatprep.subr.mxu0 0.0
    %4865 = vmatpush1.msra.mxu0 %v4811
    %4866 = vmatprep.subr.mxu0 0.0
    %4867 = vmatpush1.msra.mxu0 %v4812
    %4868 = vmatprep.subr.mxu0 0.0
    %4869 = vmatpush1.msra.mxu0 %v4813
    %4870 = vmatprep.subr.mxu0 0.0
    %4871 = vmatpush1.msra.mxu0 %v4814
    %4872 = vmatprep.subr.mxu0 0.0
    %4873 = vmatpush1.msra.mxu0 %v4815
    %4874 = vmatprep.subr.mxu0 0.0
    %4875 = vmatpush1.msra.mxu0 %v4816
    %4876 = vmatprep.subr.mxu0 0.0
    %4877 = vmatpush1.msra.mxu0 %v4817
    %4878 = vmatprep.subr.mxu0 0.0
    %4879 = vmatpush1.msra.mxu0 %v4818
    %4880 = vmatprep.subr.mxu0 0.0
    %4881 = vmatpush1.msra.mxu0 %v4819
    %4882 = vmatprep.subr.mxu0 0.0
    %4883 = vmatpush1.msra.mxu0 %v4820
    %4884 = vmatprep.subr.mxu0 0.0
    %4885 = vmatpush1.msra.mxu0 %v4821
    %4886 = vmatprep.subr.mxu0 0.0
    %4887 = vmatpush1.msra.mxu0 %v4822
    %4888 = vmatprep.subr.mxu0 0.0
    %4889 = vmatpush1.msra.mxu0 %v4823
    %4890 = vmatprep.subr.mxu0 0.0
    %4891 = vmatpush1.msra.mxu0 %v4824
    %4892 = vmatprep.subr.mxu0 0.0
    %4893 = vmatpush1.msra.mxu0 %v4825
    %4894 = vmatprep.subr.mxu0 0.0
    %4895 = vmatpush1.msra.mxu0 %v4826
    %4896 = vmatprep.subr.mxu0 0.0
    %4897 = vmatpush1.msra.mxu0 %v4827
    %4898 = vmatprep.subr.mxu0 0.0
    %4899 = vmatpush1.msra.mxu0 %v4828
    %4900 = vmatprep.mubr.f32.mxu0 %v4794
    %4901 = vmatmul.mubr.f32.gmra.mrb[0].mxu0 %v4793
    %v4902 = vpop.f32.mrb[0].mxu0
    %v4903 = vadd.f32 %v4834, %v4902
    %v4904 = vpop.f32.mrb[0].mxu0
    %4905 = vmatprep.mubr.f32.mxu0 %v4796
    %4906 = vmatmul.mubr.f32.gmra.mrb[0].mxu0 %v4795
    %v4907 = vpop.f32.mrb[0].mxu0
    %v4908 = vadd.f32 %v4834, %v4907
    %v4909 = vpop.f32.mrb[0].mxu0
    %4910 = vdwg.mxu0
    %v4911 = vlaneseq
    %v4912 = vand.u32 %v4911, 127
    %vm4913 = vcmp.ge.s32.totalorder %v4912, 4
    %vm4914 = vcmp.lt.s32.totalorder %v4912, 8
    %vm4915 = vmand %vm4913, %vm4914
    %v4916 = vtanh.pop %v4903
    %v4917 = vtanh.pop %v4908
    %v4918 = vadd.f32 %v4916, 1.0
    %v4919 = vadd.f32 %v4917, 1.0
    %v4920 = vmul.f32 %v4918, 3.5
    %v4921 = vmul.f32 %v4919, 3.5
    %v4922 = vadd.f32 %v4920, -5.0
    %v4923 = vadd.f32 %v4921, -5.0
    %v4924 = vsel %vm4915, %v4922, %v4903
    %v4925 = vsel %vm4915, %v4923, %v4908
    %4926 = vst [vmem:[#allocation16] sm:$0xff] %v4924
    %4927 = vst [vmem:[#allocation16 + $0x8] sm:$0xff] %v4925
    // Predicated region
    $region74: #{tpu_custom_call.1} parent=1 // pred_check
      _
    $region75: #{tpu_custom_call.1} parent=1 // pred_check_branch
      %4929 = sbr.rel (0) target = $region77
    $region76: #{tpu_custom_call.1} parent=1 // pred_region
      %s4931 = ssub.s32 256, 256
      %4932 = vsyncadd [#allocation7], %s4931
      %s4933 = sshll.u32 [#allocation16], 4
      %s4934 = int_to_ptr.vmem [resolvable:$true] %s4933
      %4939 = dma.vmem_to_hbm [thread:$0]  %s4934, 256, %s11, [#allocation7], 128, 128, 8
    $region77: #{tpu_custom_call.1} parent=1 // pred_fallthru
      _
    // Predicated region
    $region78: #{tpu_custom_call.1} parent=1 // pred_check
      _
    $region79: #{tpu_custom_call.1} parent=1 // pred_check_branch
      %4941 = sbr.rel (0) target = $region81
    $region80: #{tpu_custom_call.1} parent=1 // pred_region
      %s4943 = ssub.s32 64, 64
      %4944 = vsyncadd [#allocation18], %s4943
      %s4946 = sshll.u32 [#allocation17], 4
      %s4947 = int_to_ptr.vmem [resolvable:$true] %s4946
      %4949 = dma.vmem_to_hbm [thread:$0]  %s4947, 64, %s12, [#allocation18]
    $region81: #{tpu_custom_call.1} parent=1 // pred_fallthru
      _
    // Predicated region
    $region82: #{tpu_custom_call.1} parent=1 // pred_check
      _
    $region83: #{tpu_custom_call.1} parent=1 // pred_check_branch
      %4951 = sbr.rel (0) target = $region85
    $region84: #{tpu_custom_call.1} parent=1 // pred_region
      %s4953 = ssub.s32 64, 64
      %4954 = vsyncadd [#allocation18], %s4953
      %s4956 = sshll.u32 [#allocation19], 4
      %s4957 = int_to_ptr.vmem [resolvable:$true] %s4956
      %4959 = dma.vmem_to_hbm [thread:$0]  %s4957, 64, %s13, [#allocation18]
    $region85: #{tpu_custom_call.1} parent=1 // pred_fallthru
      _
    // Predicated region
    $region86: #{tpu_custom_call.1} parent=1 // pred_check
      _
    $region87: #{tpu_custom_call.1} parent=1 // pred_check_branch
      %4961 = sbr.rel (0) target = $region89
    $region88: #{tpu_custom_call.1} parent=1 // pred_region
      %4962 = dma.done [#allocation7], 256
    $region89: #{tpu_custom_call.1} parent=1 // pred_fallthru
      _
    // Predicated region
    $region90: #{tpu_custom_call.1} parent=1 // pred_check
      _
    $region91: #{tpu_custom_call.1} parent=1 // pred_check_branch
      %4964 = sbr.rel (0) target = $region93
    $region92: #{tpu_custom_call.1} parent=1 // pred_region
      %4965 = dma.done [#allocation18], 64
    $region93: #{tpu_custom_call.1} parent=1 // pred_fallthru
      _
    // Predicated region
    $region94: #{tpu_custom_call.1} parent=1 // pred_check
      _
    $region95: #{tpu_custom_call.1} parent=1 // pred_check_branch
      %4967 = sbr.rel (0) target = $region97
    $region96: #{tpu_custom_call.1} parent=1 // pred_region
      %4968 = dma.done [#allocation18], 64
    $region97: #{tpu_custom_call.1} parent=1 // pred_fallthru
      _
    %4969 = vsyncpa [#allocation6], 1
    %4970 = vsyncpa [#allocation9], 1
    %4971 = vsyncpa [#allocation12], 1
    %4972 = vsyncpa [#allocation15], 1
    %4973 = vsyncpa [#allocation7], 1
    %4974 = vsyncpa [#allocation18], 1

</llo_original>
